<compile_context>
chip_gen: v7x
topology: tpu7x:2x2x1
jax: 0.10.0
libtpu: 0.0.40
codegen_flags: <defaults>
</compile_context>

<pallas_src>
import functools

import jax
import jax.numpy as jnp
from jax import lax
from jax.experimental import pallas as pl
from jax.experimental.pallas import tpu as pltpu

EPS = 1e-5
LANE = 128
_VMEM_LIMIT = 32 * 1024 * 1024


def _round_up(x, m):
    return (x + m - 1) // m * m


# ----------------------------- Pallas kernels ------------------------------


def _conv1_kernel(*refs, kh, kw, stride, pad, ho, wo, b_blk, has_shortcut):
    """conv_1 (kh x kw, stride) [+ 1x1 shortcut conv] for one batch block,
    plus per-grid-step partial BN sum / sum-of-squares outputs."""
    if has_shortcut:
        (x_ref, w1_ref, ws_ref,
         h1_ref, sum1_ref, ssq1_ref, s_ref, sums_ref, ssqs_ref) = refs
    else:
        (x_ref, w1_ref, h1_ref, sum1_ref, ssq1_ref) = refs

    cp_in = x_ref.shape[-1]
    cp_out = h1_ref.shape[-1]
    m = b_blk * ho * wo

    # 3x3 conv as kh*kw accumulated MXU matmuls.  Phase-decomposed input:
    #   x_pad[dy + s*oh, dx + s*ow] = x_ref[b, dy%s, dx%s, oh + dy//s, ow + dx//s]
    acc = jnp.zeros((m, cp_out), jnp.float32)
    for dy in range(kh):
        for dx in range(kw):
            py, px = dy % stride, dx % stride
            oy, ox = dy // stride, dx // stride
            xt = x_ref[:, py, px, oy:oy + ho, ox:ox + wo, :]   # bf16
            xt = xt.reshape(m, cp_in)
            acc += jnp.dot(xt, w1_ref[dy * kw + dx],
                           preferred_element_type=jnp.float32)
    h1_ref[...] = acc.astype(h1_ref.dtype)
    sum1_ref[...] = jnp.sum(acc, axis=0, keepdims=True)        # partial stats
    ssq1_ref[...] = jnp.sum(acc * acc, axis=0, keepdims=True)

    if has_shortcut:
        # 1x1 stride-s conv reuses the same phase-decomposed input (no pad):
        #   x[s*oh, s*ow] = x_pad[s*oh + pad, s*ow + pad]
        p = pad % stride
        off = pad // stride
        xs = x_ref[:, p, p, off:off + ho, off:off + wo, :].reshape(m, cp_in)
        accs = jnp.dot(xs, ws_ref[0], preferred_element_type=jnp.float32)
        s_ref[...] = accs.astype(s_ref.dtype)
        sums_ref[...] = jnp.sum(accs, axis=0, keepdims=True)
        ssqs_ref[...] = jnp.sum(accs * accs, axis=0, keepdims=True)


def _bn1_conv2_kernel(h1_ref, psum1_ref, pssq1_ref, g1_ref, be1_ref, w2_ref,
                      h2_ref, sum2_ref, ssq2_ref, pad_ref,
                      *, ho, wo, b_blk, count):
    """relu(bn_1(conv_1 out)) fused with conv_2 (3x3, stride 1, pad 1) and
    bn_2 partial stats.  The normalized activation never leaves VMEM."""
    cp = h2_ref.shape[-1]
    m = b_blk * ho * wo
    inv = 1.0 / float(count)

    # Prologue: reduce kernel A's per-step partial stats (tiny: G x 1 x cp).
    sum1 = jnp.sum(psum1_ref[...], axis=0)
    ssq1 = jnp.sum(pssq1_ref[...], axis=0)
    mean = sum1 * inv
    var = jnp.maximum(ssq1 * inv - mean * mean, 0.0)
    scale = lax.rsqrt(var + EPS) * g1_ref[...]
    shift = be1_ref[...] - mean * scale

    x = h1_ref[...].astype(jnp.float32)                        # (m, cp)
    y = jnp.maximum(x * scale + shift, 0.0).astype(pad_ref.dtype)

    # Zero only the padding borders each step (interior fully rewritten;
    # columns beyond wo+1 are never read).  Safe under "parallel" semantics.
    wpad = pad_ref.shape[2]
    zrow = jnp.zeros((b_blk, 1, wpad, cp), pad_ref.dtype)
    zcol = jnp.zeros((b_blk, ho, 1, cp), pad_ref.dtype)
    pad_ref[:, 0:1, :, :] = zrow
    pad_ref[:, ho + 1:ho + 2, :, :] = zrow
    pad_ref[:, 1:1 + ho, 0:1, :] = zcol
    pad_ref[:, 1:1 + ho, wo + 1:wo + 2, :] = zcol
    pad_ref[:, 1:1 + ho, 1:1 + wo, :] = y.reshape(b_blk, ho, wo, cp)

    acc = jnp.zeros((m, cp), jnp.float32)
    for dy in range(3):
        for dx in range(3):
            xt = pad_ref[:, dy:dy + ho, dx:dx + wo, :].reshape(m, cp)  # bf16
            acc += jnp.dot(xt, w2_ref[dy * 3 + dx],
                           preferred_element_type=jnp.float32)
    h2_ref[...] = acc.astype(h2_ref.dtype)
    sum2_ref[...] = jnp.sum(acc, axis=0, keepdims=True)
    ssq2_ref[...] = jnp.sum(acc * acc, axis=0, keepdims=True)


def _final_kernel(*refs, count, has_shortcut):
    """out = bn_2(conv_2 out) + (bn_s(conv_s out) | identity)."""
    if has_shortcut:
        (h2_ref, psum2_ref, pssq2_ref, g2_ref, be2_ref,
         s_ref, psums_ref, pssqs_ref, gs_ref, bes_ref, o_ref) = refs
    else:
        (h2_ref, psum2_ref, pssq2_ref, g2_ref, be2_ref, xid_ref, o_ref) = refs

    inv = 1.0 / float(count)
    mean2 = jnp.sum(psum2_ref[...], axis=0) * inv
    var2 = jnp.maximum(jnp.sum(pssq2_ref[...], axis=0) * inv - mean2 * mean2, 0.0)
    sc2 = lax.rsqrt(var2 + EPS) * g2_ref[...]
    sh2 = be2_ref[...] - mean2 * sc2
    out = h2_ref[...].astype(jnp.float32) * sc2 + sh2

    if has_shortcut:
        means = jnp.sum(psums_ref[...], axis=0) * inv
        vars_ = jnp.maximum(jnp.sum(pssqs_ref[...], axis=0) * inv - means * means, 0.0)
        scs = lax.rsqrt(vars_ + EPS) * gs_ref[...]
        shs = bes_ref[...] - means * scs
        out = out + s_ref[...].astype(jnp.float32) * scs + shs
    else:
        out = out + xid_ref[...].astype(jnp.float32)
    o_ref[...] = out


# ------------------------------ host-side glue ------------------------------


def _phase_decompose(x_nhwc, pad, stride):
    """Pad spatially and space-to-depth decompose so every conv tap becomes a
    contiguous (unstrided) slice inside the kernel:
        out[n, py, px, a, b, c] = x_pad[n, py + stride*a, px + stride*b, c]"""
    n, h, w, c = x_nhwc.shape
    hp, wp = h + 2 * pad, w + 2 * pad
    hps, wps = -(-hp // stride), -(-wp // stride)
    xp = jnp.pad(x_nhwc, ((0, 0),
                          (pad, hps * stride - hp + pad),
                          (pad, wps * stride - wp + pad),
                          (0, 0)))
    xp = xp.reshape(n, hps, stride, wps, stride, c)
    return jnp.transpose(xp, (0, 2, 4, 1, 3, 5)), hps, wps


def _prep_weight(w_oihw, cp_in, cp_out):
    """OIHW conv weight -> (kh*kw, cp_in, cp_out) bf16 per-tap matrices,
    zero-padded to lane-dense channel counts."""
    cout, cin, kh, kw = w_oihw.shape
    wt = jnp.transpose(w_oihw, (2, 3, 1, 0)).reshape(kh * kw, cin, cout)
    wt = jnp.pad(wt, ((0, 0), (0, cp_in - cin), (0, cp_out - cout)))
    return wt.astype(jnp.bfloat16)


def _prep_affine(v, cp):
    return jnp.pad(v, (0, cp - v.shape[0])).reshape(1, cp).astype(jnp.float32)


def init_resblock_params(key, ch_in, ch_out):
    """Deterministic synthetic parameters (PyTorch shapes; BN gamma=1, beta=0)."""
    keys = jax.random.split(key, 6)
    p = {
        "w1": 0.1 * jax.random.normal(keys[0], (ch_out, ch_in, 3, 3), jnp.float32),
        "b1": 0.1 * jax.random.normal(keys[1], (ch_out,), jnp.float32),
        "g1": jnp.ones((ch_out,), jnp.float32),
        "be1": jnp.zeros((ch_out,), jnp.float32),
        "w2": 0.1 * jax.random.normal(keys[2], (ch_out, ch_out, 3, 3), jnp.float32),
        "b2": 0.1 * jax.random.normal(keys[3], (ch_out,), jnp.float32),
        "g2": jnp.ones((ch_out,), jnp.float32),
        "be2": jnp.zeros((ch_out,), jnp.float32),
    }
    if ch_in != ch_out:
        p["ws"] = 0.1 * jax.random.normal(keys[4], (ch_out, ch_in, 1, 1), jnp.float32)
        p["bs"] = 0.1 * jax.random.normal(keys[5], (ch_out,), jnp.float32)
        p["gs"] = jnp.ones((ch_out,), jnp.float32)
        p["bes"] = jnp.zeros((ch_out,), jnp.float32)
    return p


def resblock_forward(x_nchw, params, ch_in, ch_out, stride):
    n, _, h, w = x_nchw.shape
    has_shortcut = ch_in != ch_out
    if not has_shortcut:
        # PyTorch's empty nn.Sequential shortcut only shape-checks for stride 1.
        assert stride == 1, "identity shortcut requires stride == 1"

    cp_in = _round_up(ch_in, LANE)
    cp = _round_up(ch_out, LANE)
    kh, kw = params["w1"].shape[2], params["w1"].shape[3]
    ho = (h + 2 - kh) // stride + 1
    wo = (w + 2 - kw) // stride + 1
    m = ho * wo
    count = n * m                     # BN statistics count (training mode)

    # Batch-block the grid so M per MXU matmul ~= 256 (vreg-safe, fills MXU rows
    # and amortizes per-grid-step overhead).
    b_blk = max(1, min(n, 256 // m)) if m <= 256 else 1
    while n % b_blk:
        b_blk -= 1
    if (b_blk * m) % 8:
        b_blk = n                     # fall back: block == full array dim
    g = n // b_blk
    m_blk = b_blk * m

    # NCHW -> NHWC in bf16 (MXU operand dtype), channels zero-padded lane-dense.
    x = jnp.transpose(x_nchw, (0, 2, 3, 1)).astype(jnp.bfloat16)
    x = jnp.pad(x, ((0, 0), (0, 0), (0, 0), (0, cp_in - ch_in)))
    xph, hps, wps = _phase_decompose(x, pad=1, stride=stride)

    w1 = _prep_weight(params["w1"], cp_in, cp)
    w2 = _prep_weight(params["w2"], cp, cp)
    g1, be1 = _prep_affine(params["g1"], cp), _prep_affine(params["be1"], cp)
    g2, be2 = _prep_affine(params["g2"], cp), _prep_affine(params["be2"], cp)
    # NOTE: conv biases (b1/b2/bs) are intentionally unused — training-mode BN
    # subtracts the per-batch mean, which cancels any per-channel constant.

    act = jax.ShapeDtypeStruct((n * m, cp), jnp.bfloat16)
    pstat = jax.ShapeDtypeStruct((g, 1, cp), jnp.float32)
    act_spec = pl.BlockSpec((m_blk, cp), lambda i: (i, 0))
    pstat_out_spec = pl.BlockSpec((None, 1, cp), lambda i: (i, 0, 0))
    pstat_in_spec = pl.BlockSpec((g, 1, cp), lambda i: (0, 0, 0))
    vec_spec = pl.BlockSpec((1, cp), lambda i: (0, 0))
    x_spec = pl.BlockSpec((b_blk, stride, stride, hps, wps, cp_in),
                          lambda i: (i, 0, 0, 0, 0, 0))
    w1_spec = pl.BlockSpec(w1.shape, lambda i: (0, 0, 0))
    w2_spec = pl.BlockSpec(w2.shape, lambda i: (0, 0, 0))

    # All grid axes are fully parallel now (partial stats per step), so every
    # kernel is megacore-shardable on v7x.
    par_params = pltpu.CompilerParams(dimension_semantics=("parallel",),
                                      vmem_limit_bytes=_VMEM_LIMIT)

    # --- kernel A: conv_1 (+ conv_s) + partial BN statistics, one read of x --
    a_in_specs = [x_spec, w1_spec]
    a_args = [xph, w1]
    a_out_shape = [act, pstat, pstat]
    a_out_specs = [act_spec, pstat_out_spec, pstat_out_spec]
    if has_shortcut:
        ws = _prep_weight(params["ws"], cp_in, cp)
        a_in_specs.append(pl.BlockSpec(ws.shape, lambda i: (0, 0, 0)))
        a_args.append(ws)
        a_out_shape += [act, pstat, pstat]
        a_out_specs += [act_spec, pstat_out_spec, pstat_out_spec]

    res_a = pl.pallas_call(
        functools.partial(_conv1_kernel, kh=kh, kw=kw, stride=stride, pad=1,
                          ho=ho, wo=wo, b_blk=b_blk, has_shortcut=has_shortcut),
        grid=(g,),
        in_specs=a_in_specs,
        out_specs=a_out_specs,
        out_shape=a_out_shape,
        compiler_params=par_params,
    )(*a_args)
    if has_shortcut:
        h1, sum1, ssq1, s_raw, sums, ssqs = res_a
    else:
        h1, sum1, ssq1 = res_a

    # --- kernel B: bn_1 apply + ReLU + conv_2 + partial bn_2 statistics ------
    wpad = _round_up(wo + 2, 8)       # sublane-aligned scratch rows (VMEM only)
    h2, sum2, ssq2 = pl.pallas_call(
        functools.partial(_bn1_conv2_kernel, ho=ho, wo=wo, b_blk=b_blk,
                          count=count),
        grid=(g,),
        in_specs=[act_spec, pstat_in_spec, pstat_in_spec, vec_spec, vec_spec,
                  w2_spec],
        out_specs=[act_spec, pstat_out_spec, pstat_out_spec],
        out_shape=[act, pstat, pstat],
        scratch_shapes=[pltpu.VMEM((b_blk, ho + 2, wpad, cp), jnp.bfloat16)],
        compiler_params=par_params,
    )(h1, sum1, ssq1, g1, be1, w2)

    # --- kernel C: bn_2 apply + (bn_s apply | identity) + residual add -------
    c_in_specs = [act_spec, pstat_in_spec, pstat_in_spec, vec_spec, vec_spec]
    c_args = [h2, sum2, ssq2, g2, be2]
    if has_shortcut:
        gs, bes = _prep_affine(params["gs"], cp), _prep_affine(params["bes"], cp)
        c_in_specs += [act_spec, pstat_in_spec, pstat_in_spec, vec_spec, vec_spec]
        c_args += [s_raw, sums, ssqs, gs, bes]
    else:
        c_in_specs.append(act_spec)
        c_args.append(x.reshape(n * m, cp_in))   # bf16 identity (stride==1)

    out = pl.pallas_call(
        functools.partial(_final_kernel, count=count, has_shortcut=has_shortcut),
        grid=(g,),
        in_specs=c_in_specs,
        out_specs=pl.BlockSpec((m_blk, cp), lambda i: (i, 0)),
        out_shape=jax.ShapeDtypeStruct((n * m, cp), jnp.float32),
        compiler_params=par_params,
    )(*c_args)

    out = out.reshape(n, ho, wo, cp)[..., :ch_out]
    return jnp.transpose(out, (0, 3, 1, 2))   # back to NCHW


# --------------------------- pure-JAX reference ------------------------------


def _bn_train(x, gamma, beta):
    mean = jnp.mean(x, axis=(0, 2, 3), keepdims=True)
    var = jnp.mean((x - mean) ** 2, axis=(0, 2, 3), keepdims=True)
    return ((x - mean) * lax.rsqrt(var + EPS) * gamma.reshape(1, -1, 1, 1)
            + beta.reshape(1, -1, 1, 1))


def resblock_reference(x, params, ch_in, ch_out, stride):
    def conv(inp, w, b, s, pad):
        y = lax.conv_general_dilated(inp, w, (s, s), [(pad, pad), (pad, pad)],
                                     dimension_numbers=("NCHW", "OIHW", "NCHW"))
        return y + b.reshape(1, -1, 1, 1)

    h = jax.nn.relu(_bn_train(conv(x, params["w1"], params["b1"], stride, 1),
                              params["g1"], params["be1"]))
    h = _bn_train(conv(h, params["w2"], params["b2"], 1, 1),
                  params["g2"], params["be2"])
    if ch_in != ch_out:
        s = _bn_train(conv(x, params["ws"], params["bs"], stride, 0),
                      params["gs"], params["bes"])
    else:
        s = x
    return h + s


if __name__ == "__main__":
    key = jax.random.PRNGKey(0)
    kx, kp = jax.random.split(key)

    N, CH_IN, CH_OUT, H, W, STRIDE = 2, 4, 8, 16, 16, 2
    x = jax.random.normal(kx, (N, CH_IN, H, W), jnp.float32)
    params = init_resblock_params(kp, CH_IN, CH_OUT)

    out = resblock_forward(x, params, CH_IN, CH_OUT, STRIDE)
    out = jax.block_until_ready(out)

    assert out.shape == (N, CH_OUT, H // STRIDE, W // STRIDE), out.shape
    assert bool(jnp.all(jnp.isfinite(out)))

    ref = jax.block_until_ready(resblock_reference(x, params, CH_IN, CH_OUT, STRIDE))
    max_err = float(jnp.max(jnp.abs(out - ref)))
    assert max_err < 0.2, f"max abs error vs reference: {max_err}"
    print("KERNEL_OK")
</pallas_src>

<mosaic_0001>
module attributes {stable_mosaic.version = 11 : i64} {
  func.func @_conv1_kernel(%arg0: i32, %arg1: memref<2x2x2x9x9x128xbf16, #tpu.memory_space<vmem>>, %arg2: memref<9x128x128xbf16, #tpu.memory_space<vmem>>, %arg3: memref<1x128x128xbf16, #tpu.memory_space<vmem>>, %arg4: memref<128x128xbf16, #tpu.memory_space<vmem>>, %arg5: memref<1x1x128xf32, #tpu.memory_space<vmem>>, %arg6: memref<1x1x128xf32, #tpu.memory_space<vmem>>, %arg7: memref<128x128xbf16, #tpu.memory_space<vmem>>, %arg8: memref<1x1x128xf32, #tpu.memory_space<vmem>>, %arg9: memref<1x1x128xf32, #tpu.memory_space<vmem>>) attributes {dimension_semantics = [#tpu.dimension_semantics<parallel>], iteration_bounds = array<i64: 1>, scalar_prefetch = 0 : i64, scratch_operands = 0 : i64, tpu.core_type = #tpu.core_type<tc>, window_params = [{transform_indices = @transform_0, window_bounds = array<i64: 2, 2, 2, 9, 9, 128>}, {pipeline_mode = #tpu.pipeline_mode<synchronous>, transform_indices = @transform_1, window_bounds = array<i64: 9, 128, 128>}, {pipeline_mode = #tpu.pipeline_mode<synchronous>, transform_indices = @transform_2, window_bounds = array<i64: 1, 128, 128>}, {transform_indices = @transform_3, window_bounds = array<i64: 128, 128>}, {transform_indices = @transform_4, window_bounds = array<i64: 1, 1, 128>}, {transform_indices = @transform_5, window_bounds = array<i64: 1, 1, 128>}, {transform_indices = @transform_6, window_bounds = array<i64: 128, 128>}, {transform_indices = @transform_7, window_bounds = array<i64: 1, 1, 128>}, {transform_indices = @transform_8, window_bounds = array<i64: 1, 1, 128>}]} {
    %cst = arith.constant 0.000000e+00 : f32
    %0 = vector.broadcast %cst : f32 to vector<128x128xf32>
    %c0 = arith.constant 0 : index
    %c0_0 = arith.constant 0 : index
    %c0_1 = arith.constant 0 : index
    %c0_2 = arith.constant 0 : index
    %c0_3 = arith.constant 0 : index
    %c0_4 = arith.constant 0 : index
    %1 = vector.load %arg1[%c0, %c0_0, %c0_1, %c0_2, %c0_3, %c0_4] : memref<2x2x2x9x9x128xbf16, #tpu.memory_space<vmem>>, vector<2x1x1x8x8x128xbf16>
    %2 = vector.shape_cast %1 : vector<2x1x1x8x8x128xbf16> to vector<2x8x8x128xbf16>
    %3 = vector.shape_cast %2 : vector<2x8x8x128xbf16> to vector<128x128xbf16>
    %c0_5 = arith.constant 0 : index
    %c0_6 = arith.constant 0 : index
    %c0_7 = arith.constant 0 : index
    %4 = vector.load %arg2[%c0_5, %c0_6, %c0_7] : memref<9x128x128xbf16, #tpu.memory_space<vmem>>, vector<1x128x128xbf16>
    %5 = vector.shape_cast %4 : vector<1x128x128xbf16> to vector<128x128xbf16>
    %cst_8 = arith.constant dense<0.000000e+00> : vector<128x128xf32>
    %6 = tpu.matmul %3, %5, %cst_8 {dimension_numbers = #tpu.dot_dimension_numbers<[1], [0], [0], [1], [0, 0, 1, 1], [], []>} : vector<128x128xbf16>, vector<128x128xbf16>, vector<128x128xf32> -> vector<128x128xf32>
    %7 = arith.addf %0, %6 : vector<128x128xf32>
    %c0_9 = arith.constant 0 : index
    %c0_10 = arith.constant 0 : index
    %c1 = arith.constant 1 : index
    %c0_11 = arith.constant 0 : index
    %c0_12 = arith.constant 0 : index
    %c0_13 = arith.constant 0 : index
    %8 = vector.load %arg1[%c0_9, %c0_10, %c1, %c0_11, %c0_12, %c0_13] : memref<2x2x2x9x9x128xbf16, #tpu.memory_space<vmem>>, vector<2x1x1x8x8x128xbf16>
    %9 = vector.shape_cast %8 : vector<2x1x1x8x8x128xbf16> to vector<2x8x8x128xbf16>
    %10 = vector.shape_cast %9 : vector<2x8x8x128xbf16> to vector<128x128xbf16>
    %c1_14 = arith.constant 1 : index
    %c0_15 = arith.constant 0 : index
    %c0_16 = arith.constant 0 : index
    %11 = vector.load %arg2[%c1_14, %c0_15, %c0_16] : memref<9x128x128xbf16, #tpu.memory_space<vmem>>, vector<1x128x128xbf16>
    %12 = vector.shape_cast %11 : vector<1x128x128xbf16> to vector<128x128xbf16>
    %cst_17 = arith.constant dense<0.000000e+00> : vector<128x128xf32>
    %13 = tpu.matmul %10, %12, %cst_17 {dimension_numbers = #tpu.dot_dimension_numbers<[1], [0], [0], [1], [0, 0, 1, 1], [], []>} : vector<128x128xbf16>, vector<128x128xbf16>, vector<128x128xf32> -> vector<128x128xf32>
    %14 = arith.addf %7, %13 : vector<128x128xf32>
    %c0_18 = arith.constant 0 : index
    %c0_19 = arith.constant 0 : index
    %c0_20 = arith.constant 0 : index
    %c0_21 = arith.constant 0 : index
    %c1_22 = arith.constant 1 : index
    %c0_23 = arith.constant 0 : index
    %15 = vector.load %arg1[%c0_18, %c0_19, %c0_20, %c0_21, %c1_22, %c0_23] : memref<2x2x2x9x9x128xbf16, #tpu.memory_space<vmem>>, vector<2x1x1x8x8x128xbf16>
    %16 = vector.shape_cast %15 : vector<2x1x1x8x8x128xbf16> to vector<2x8x8x128xbf16>
    %17 = vector.shape_cast %16 : vector<2x8x8x128xbf16> to vector<128x128xbf16>
    %c2 = arith.constant 2 : index
    %c0_24 = arith.constant 0 : index
    %c0_25 = arith.constant 0 : index
    %18 = vector.load %arg2[%c2, %c0_24, %c0_25] : memref<9x128x128xbf16, #tpu.memory_space<vmem>>, vector<1x128x128xbf16>
    %19 = vector.shape_cast %18 : vector<1x128x128xbf16> to vector<128x128xbf16>
    %cst_26 = arith.constant dense<0.000000e+00> : vector<128x128xf32>
    %20 = tpu.matmul %17, %19, %cst_26 {dimension_numbers = #tpu.dot_dimension_numbers<[1], [0], [0], [1], [0, 0, 1, 1], [], []>} : vector<128x128xbf16>, vector<128x128xbf16>, vector<128x128xf32> -> vector<128x128xf32>
    %21 = arith.addf %14, %20 : vector<128x128xf32>
    %c0_27 = arith.constant 0 : index
    %c1_28 = arith.constant 1 : index
    %c0_29 = arith.constant 0 : index
    %c0_30 = arith.constant 0 : index
    %c0_31 = arith.constant 0 : index
    %c0_32 = arith.constant 0 : index
    %22 = vector.load %arg1[%c0_27, %c1_28, %c0_29, %c0_30, %c0_31, %c0_32] : memref<2x2x2x9x9x128xbf16, #tpu.memory_space<vmem>>, vector<2x1x1x8x8x128xbf16>
    %23 = vector.shape_cast %22 : vector<2x1x1x8x8x128xbf16> to vector<2x8x8x128xbf16>
    %24 = vector.shape_cast %23 : vector<2x8x8x128xbf16> to vector<128x128xbf16>
    %c3 = arith.constant 3 : index
    %c0_33 = arith.constant 0 : index
    %c0_34 = arith.constant 0 : index
    %25 = vector.load %arg2[%c3, %c0_33, %c0_34] : memref<9x128x128xbf16, #tpu.memory_space<vmem>>, vector<1x128x128xbf16>
    %26 = vector.shape_cast %25 : vector<1x128x128xbf16> to vector<128x128xbf16>
    %cst_35 = arith.constant dense<0.000000e+00> : vector<128x128xf32>
    %27 = tpu.matmul %24, %26, %cst_35 {dimension_numbers = #tpu.dot_dimension_numbers<[1], [0], [0], [1], [0, 0, 1, 1], [], []>} : vector<128x128xbf16>, vector<128x128xbf16>, vector<128x128xf32> -> vector<128x128xf32>
    %28 = arith.addf %21, %27 : vector<128x128xf32>
    %c0_36 = arith.constant 0 : index
    %c1_37 = arith.constant 1 : index
    %c1_38 = arith.constant 1 : index
    %c0_39 = arith.constant 0 : index
    %c0_40 = arith.constant 0 : index
    %c0_41 = arith.constant 0 : index
    %29 = vector.load %arg1[%c0_36, %c1_37, %c1_38, %c0_39, %c0_40, %c0_41] : memref<2x2x2x9x9x128xbf16, #tpu.memory_space<vmem>>, vector<2x1x1x8x8x128xbf16>
    %30 = vector.shape_cast %29 : vector<2x1x1x8x8x128xbf16> to vector<2x8x8x128xbf16>
    %31 = vector.shape_cast %30 : vector<2x8x8x128xbf16> to vector<128x128xbf16>
    %c4 = arith.constant 4 : index
    %c0_42 = arith.constant 0 : index
    %c0_43 = arith.constant 0 : index
    %32 = vector.load %arg2[%c4, %c0_42, %c0_43] : memref<9x128x128xbf16, #tpu.memory_space<vmem>>, vector<1x128x128xbf16>
    %33 = vector.shape_cast %32 : vector<1x128x128xbf16> to vector<128x128xbf16>
    %cst_44 = arith.constant dense<0.000000e+00> : vector<128x128xf32>
    %34 = tpu.matmul %31, %33, %cst_44 {dimension_numbers = #tpu.dot_dimension_numbers<[1], [0], [0], [1], [0, 0, 1, 1], [], []>} : vector<128x128xbf16>, vector<128x128xbf16>, vector<128x128xf32> -> vector<128x128xf32>
    %35 = arith.addf %28, %34 : vector<128x128xf32>
    %c0_45 = arith.constant 0 : index
    %c1_46 = arith.constant 1 : index
    %c0_47 = arith.constant 0 : index
    %c0_48 = arith.constant 0 : index
    %c1_49 = arith.constant 1 : index
    %c0_50 = arith.constant 0 : index
    %36 = vector.load %arg1[%c0_45, %c1_46, %c0_47, %c0_48, %c1_49, %c0_50] : memref<2x2x2x9x9x128xbf16, #tpu.memory_space<vmem>>, vector<2x1x1x8x8x128xbf16>
    %37 = vector.shape_cast %36 : vector<2x1x1x8x8x128xbf16> to vector<2x8x8x128xbf16>
    %38 = vector.shape_cast %37 : vector<2x8x8x128xbf16> to vector<128x128xbf16>
    %c5 = arith.constant 5 : index
    %c0_51 = arith.constant 0 : index
    %c0_52 = arith.constant 0 : index
    %39 = vector.load %arg2[%c5, %c0_51, %c0_52] : memref<9x128x128xbf16, #tpu.memory_space<vmem>>, vector<1x128x128xbf16>
    %40 = vector.shape_cast %39 : vector<1x128x128xbf16> to vector<128x128xbf16>
    %cst_53 = arith.constant dense<0.000000e+00> : vector<128x128xf32>
    %41 = tpu.matmul %38, %40, %cst_53 {dimension_numbers = #tpu.dot_dimension_numbers<[1], [0], [0], [1], [0, 0, 1, 1], [], []>} : vector<128x128xbf16>, vector<128x128xbf16>, vector<128x128xf32> -> vector<128x128xf32>
    %42 = arith.addf %35, %41 : vector<128x128xf32>
    %c0_54 = arith.constant 0 : index
    %c0_55 = arith.constant 0 : index
    %c0_56 = arith.constant 0 : index
    %c1_57 = arith.constant 1 : index
    %c0_58 = arith.constant 0 : index
    %c0_59 = arith.constant 0 : index
    %43 = vector.load %arg1[%c0_54, %c0_55, %c0_56, %c1_57, %c0_58, %c0_59] : memref<2x2x2x9x9x128xbf16, #tpu.memory_space<vmem>>, vector<2x1x1x8x8x128xbf16>
    %44 = vector.shape_cast %43 : vector<2x1x1x8x8x128xbf16> to vector<2x8x8x128xbf16>
    %45 = vector.shape_cast %44 : vector<2x8x8x128xbf16> to vector<128x128xbf16>
    %c6 = arith.constant 6 : index
    %c0_60 = arith.constant 0 : index
    %c0_61 = arith.constant 0 : index
    %46 = vector.load %arg2[%c6, %c0_60, %c0_61] : memref<9x128x128xbf16, #tpu.memory_space<vmem>>, vector<1x128x128xbf16>
    %47 = vector.shape_cast %46 : vector<1x128x128xbf16> to vector<128x128xbf16>
    %cst_62 = arith.constant dense<0.000000e+00> : vector<128x128xf32>
    %48 = tpu.matmul %45, %47, %cst_62 {dimension_numbers = #tpu.dot_dimension_numbers<[1], [0], [0], [1], [0, 0, 1, 1], [], []>} : vector<128x128xbf16>, vector<128x128xbf16>, vector<128x128xf32> -> vector<128x128xf32>
    %49 = arith.addf %42, %48 : vector<128x128xf32>
    %c0_63 = arith.constant 0 : index
    %c0_64 = arith.constant 0 : index
    %c1_65 = arith.constant 1 : index
    %c1_66 = arith.constant 1 : index
    %c0_67 = arith.constant 0 : index
    %c0_68 = arith.constant 0 : index
    %50 = vector.load %arg1[%c0_63, %c0_64, %c1_65, %c1_66, %c0_67, %c0_68] : memref<2x2x2x9x9x128xbf16, #tpu.memory_space<vmem>>, vector<2x1x1x8x8x128xbf16>
    %51 = vector.shape_cast %50 : vector<2x1x1x8x8x128xbf16> to vector<2x8x8x128xbf16>
    %52 = vector.shape_cast %51 : vector<2x8x8x128xbf16> to vector<128x128xbf16>
    %c7 = arith.constant 7 : index
    %c0_69 = arith.constant 0 : index
    %c0_70 = arith.constant 0 : index
    %53 = vector.load %arg2[%c7, %c0_69, %c0_70] : memref<9x128x128xbf16, #tpu.memory_space<vmem>>, vector<1x128x128xbf16>
    %54 = vector.shape_cast %53 : vector<1x128x128xbf16> to vector<128x128xbf16>
    %cst_71 = arith.constant dense<0.000000e+00> : vector<128x128xf32>
    %55 = tpu.matmul %52, %54, %cst_71 {dimension_numbers = #tpu.dot_dimension_numbers<[1], [0], [0], [1], [0, 0, 1, 1], [], []>} : vector<128x128xbf16>, vector<128x128xbf16>, vector<128x128xf32> -> vector<128x128xf32>
    %56 = arith.addf %49, %55 : vector<128x128xf32>
    %c0_72 = arith.constant 0 : index
    %c0_73 = arith.constant 0 : index
    %c0_74 = arith.constant 0 : index
    %c1_75 = arith.constant 1 : index
    %c1_76 = arith.constant 1 : index
    %c0_77 = arith.constant 0 : index
    %57 = vector.load %arg1[%c0_72, %c0_73, %c0_74, %c1_75, %c1_76, %c0_77] : memref<2x2x2x9x9x128xbf16, #tpu.memory_space<vmem>>, vector<2x1x1x8x8x128xbf16>
    %58 = vector.shape_cast %57 : vector<2x1x1x8x8x128xbf16> to vector<2x8x8x128xbf16>
    %59 = vector.shape_cast %58 : vector<2x8x8x128xbf16> to vector<128x128xbf16>
    %c8 = arith.constant 8 : index
    %c0_78 = arith.constant 0 : index
    %c0_79 = arith.constant 0 : index
    %60 = vector.load %arg2[%c8, %c0_78, %c0_79] : memref<9x128x128xbf16, #tpu.memory_space<vmem>>, vector<1x128x128xbf16>
    %61 = vector.shape_cast %60 : vector<1x128x128xbf16> to vector<128x128xbf16>
    %cst_80 = arith.constant dense<0.000000e+00> : vector<128x128xf32>
    %62 = tpu.matmul %59, %61, %cst_80 {dimension_numbers = #tpu.dot_dimension_numbers<[1], [0], [0], [1], [0, 0, 1, 1], [], []>} : vector<128x128xbf16>, vector<128x128xbf16>, vector<128x128xf32> -> vector<128x128xf32>
    %63 = arith.addf %56, %62 : vector<128x128xf32>
    %64 = arith.truncf %63 : vector<128x128xf32> to vector<128x128xbf16>
    %c0_81 = arith.constant 0 : index
    %c0_82 = arith.constant 0 : index
    %65 = vector.load %arg4[%c0_81, %c0_82] : memref<128x128xbf16, #tpu.memory_space<vmem>>, vector<128x128xbf16>
    tpu.vector_store %arg4[%c0_81, %c0_82], %64 {strides = array<i32>} : memref<128x128xbf16, #tpu.memory_space<vmem>>, vector<128x128xbf16>,
    %cst_83 = arith.constant dense<0.000000e+00> : vector<128xf32>
    %66 = vector.multi_reduction <add>, %63, %cst_83 [0] : vector<128x128xf32> to vector<128xf32>
    %67 = vector.shape_cast %66 : vector<128xf32> to vector<1x128xf32>
    %c0_84 = arith.constant 0 : index
    %c0_85 = arith.constant 0 : index
    %c0_86 = arith.constant 0 : index
    %68 = vector.load %arg5[%c0_84, %c0_85, %c0_86] : memref<1x1x128xf32, #tpu.memory_space<vmem>>, vector<1x1x128xf32>
    %69 = vector.shape_cast %68 : vector<1x1x128xf32> to vector<1x128xf32>
    %70 = vector.shape_cast %67 : vector<1x128xf32> to vector<1x1x128xf32>
    tpu.vector_store %arg5[%c0_84, %c0_85, %c0_86], %70 {strides = array<i32>} : memref<1x1x128xf32, #tpu.memory_space<vmem>>, vector<1x1x128xf32>,
    %71 = arith.mulf %63, %63 : vector<128x128xf32>
    %cst_87 = arith.constant dense<0.000000e+00> : vector<128xf32>
    %72 = vector.multi_reduction <add>, %71, %cst_87 [0] : vector<128x128xf32> to vector<128xf32>
    %73 = vector.shape_cast %72 : vector<128xf32> to vector<1x128xf32>
    %c0_88 = arith.constant 0 : index
    %c0_89 = arith.constant 0 : index
    %c0_90 = arith.constant 0 : index
    %74 = vector.load %arg6[%c0_88, %c0_89, %c0_90] : memref<1x1x128xf32, #tpu.memory_space<vmem>>, vector<1x1x128xf32>
    %75 = vector.shape_cast %74 : vector<1x1x128xf32> to vector<1x128xf32>
    %76 = vector.shape_cast %73 : vector<1x128xf32> to vector<1x1x128xf32>
    tpu.vector_store %arg6[%c0_88, %c0_89, %c0_90], %76 {strides = array<i32>} : memref<1x1x128xf32, #tpu.memory_space<vmem>>, vector<1x1x128xf32>,
    %c0_91 = arith.constant 0 : index
    %c1_92 = arith.constant 1 : index
    %c1_93 = arith.constant 1 : index
    %c0_94 = arith.constant 0 : index
    %c0_95 = arith.constant 0 : index
    %c0_96 = arith.constant 0 : index
    %77 = vector.load %arg1[%c0_91, %c1_92, %c1_93, %c0_94, %c0_95, %c0_96] : memref<2x2x2x9x9x128xbf16, #tpu.memory_space<vmem>>, vector<2x1x1x8x8x128xbf16>
    %78 = vector.shape_cast %77 : vector<2x1x1x8x8x128xbf16> to vector<2x8x8x128xbf16>
    %79 = vector.shape_cast %78 : vector<2x8x8x128xbf16> to vector<128x128xbf16>
    %c0_97 = arith.constant 0 : index
    %c0_98 = arith.constant 0 : index
    %c0_99 = arith.constant 0 : index
    %80 = vector.load %arg3[%c0_97, %c0_98, %c0_99] : memref<1x128x128xbf16, #tpu.memory_space<vmem>>, vector<1x128x128xbf16>
    %81 = vector.shape_cast %80 : vector<1x128x128xbf16> to vector<128x128xbf16>
    %cst_100 = arith.constant dense<0.000000e+00> : vector<128x128xf32>
    %82 = tpu.matmul %79, %81, %cst_100 {dimension_numbers = #tpu.dot_dimension_numbers<[1], [0], [0], [1], [0, 0, 1, 1], [], []>} : vector<128x128xbf16>, vector<128x128xbf16>, vector<128x128xf32> -> vector<128x128xf32>
    %83 = arith.truncf %82 : vector<128x128xf32> to vector<128x128xbf16>
    %c0_101 = arith.constant 0 : index
    %c0_102 = arith.constant 0 : index
    %84 = vector.load %arg7[%c0_101, %c0_102] : memref<128x128xbf16, #tpu.memory_space<vmem>>, vector<128x128xbf16>
    tpu.vector_store %arg7[%c0_101, %c0_102], %83 {strides = array<i32>} : memref<128x128xbf16, #tpu.memory_space<vmem>>, vector<128x128xbf16>,
    %cst_103 = arith.constant dense<0.000000e+00> : vector<128xf32>
    %85 = vector.multi_reduction <add>, %82, %cst_103 [0] : vector<128x128xf32> to vector<128xf32>
    %86 = vector.shape_cast %85 : vector<128xf32> to vector<1x128xf32>
    %c0_104 = arith.constant 0 : index
    %c0_105 = arith.constant 0 : index
    %c0_106 = arith.constant 0 : index
    %87 = vector.load %arg8[%c0_104, %c0_105, %c0_106] : memref<1x1x128xf32, #tpu.memory_space<vmem>>, vector<1x1x128xf32>
    %88 = vector.shape_cast %87 : vector<1x1x128xf32> to vector<1x128xf32>
    %89 = vector.shape_cast %86 : vector<1x128xf32> to vector<1x1x128xf32>
    tpu.vector_store %arg8[%c0_104, %c0_105, %c0_106], %89 {strides = array<i32>} : memref<1x1x128xf32, #tpu.memory_space<vmem>>, vector<1x1x128xf32>,
    %90 = arith.mulf %82, %82 : vector<128x128xf32>
    %cst_107 = arith.constant dense<0.000000e+00> : vector<128xf32>
    %91 = vector.multi_reduction <add>, %90, %cst_107 [0] : vector<128x128xf32> to vector<128xf32>
    %92 = vector.shape_cast %91 : vector<128xf32> to vector<1x128xf32>
    %c0_108 = arith.constant 0 : index
    %c0_109 = arith.constant 0 : index
    %c0_110 = arith.constant 0 : index
    %93 = vector.load %arg9[%c0_108, %c0_109, %c0_110] : memref<1x1x128xf32, #tpu.memory_space<vmem>>, vector<1x1x128xf32>
    %94 = vector.shape_cast %93 : vector<1x1x128xf32> to vector<1x128xf32>
    %95 = vector.shape_cast %92 : vector<1x128xf32> to vector<1x1x128xf32>
    tpu.vector_store %arg9[%c0_108, %c0_109, %c0_110], %95 {strides = array<i32>} : memref<1x1x128xf32, #tpu.memory_space<vmem>>, vector<1x1x128xf32>,
    return
  }
  func.func @transform_0(%arg0: i32) -> (i32, i32, i32, i32, i32, i32) {
    %c0_i32 = arith.constant 0 : i32
    %c0_i32_0 = arith.constant 0 : i32
    %c0_i32_1 = arith.constant 0 : i32
    %c0_i32_2 = arith.constant 0 : i32
    %c0_i32_3 = arith.constant 0 : i32
    %c0_i32_4 = arith.constant 0 : i32
    return %arg0, %c0_i32, %c0_i32_0, %c0_i32_1, %c0_i32_2, %c0_i32_3 : i32, i32, i32, i32, i32, i32
  }
  func.func @transform_1(%arg0: i32) -> (i32, i32, i32) {
    %c0_i32 = arith.constant 0 : i32
    %c0_i32_0 = arith.constant 0 : i32
    %c0_i32_1 = arith.constant 0 : i32
    %c0_i32_2 = arith.constant 0 : i32
    return %c0_i32, %c0_i32_0, %c0_i32_1 : i32, i32, i32
  }
  func.func @transform_2(%arg0: i32) -> (i32, i32, i32) {
    %c0_i32 = arith.constant 0 : i32
    %c0_i32_0 = arith.constant 0 : i32
    %c0_i32_1 = arith.constant 0 : i32
    %c0_i32_2 = arith.constant 0 : i32
    return %c0_i32, %c0_i32_0, %c0_i32_1 : i32, i32, i32
  }
  func.func @transform_3(%arg0: i32) -> (i32, i32) {
    %c0_i32 = arith.constant 0 : i32
    %c0_i32_0 = arith.constant 0 : i32
    return %arg0, %c0_i32 : i32, i32
  }
  func.func @transform_4(%arg0: i32) -> (i32, i32, i32) {
    %c0_i32 = arith.constant 0 : i32
    %c0_i32_0 = arith.constant 0 : i32
    %c0_i32_1 = arith.constant 0 : i32
    return %arg0, %c0_i32, %c0_i32_0 : i32, i32, i32
  }
  func.func @transform_5(%arg0: i32) -> (i32, i32, i32) {
    %c0_i32 = arith.constant 0 : i32
    %c0_i32_0 = arith.constant 0 : i32
    %c0_i32_1 = arith.constant 0 : i32
    return %arg0, %c0_i32, %c0_i32_0 : i32, i32, i32
  }
  func.func @transform_6(%arg0: i32) -> (i32, i32) {
    %c0_i32 = arith.constant 0 : i32
    %c0_i32_0 = arith.constant 0 : i32
    return %arg0, %c0_i32 : i32, i32
  }
  func.func @transform_7(%arg0: i32) -> (i32, i32, i32) {
    %c0_i32 = arith.constant 0 : i32
    %c0_i32_0 = arith.constant 0 : i32
    %c0_i32_1 = arith.constant 0 : i32
    return %arg0, %c0_i32, %c0_i32_0 : i32, i32, i32
  }
  func.func @transform_8(%arg0: i32) -> (i32, i32, i32) {
    %c0_i32 = arith.constant 0 : i32
    %c0_i32_0 = arith.constant 0 : i32
    %c0_i32_1 = arith.constant 0 : i32
    return %arg0, %c0_i32, %c0_i32_0 : i32, i32, i32
  }
}

</mosaic_0001>

<llo_original>
// kernel: tpu_custom_call.1
$region0: #{tpu_custom_call.1}
  #allocation0 [shape = 'u32[]', space=smem, size = 0x4, offset = 0x4, fixed_abs, tag = 'smem constant byte address 0x4 - core index']
  #allocation1 [shape = 'u32[144,128]{1,0:T(1,128)}', space=vmem, size = 0x12000, scoped, tag = 'internal scratch']
  %s0 = inlined_call_operand.vmem [shape: bf16[2,2,2,9,9,128], index: 0, kind: input, shape index: {}]
  %s1 = inlined_call_operand.vmem [shape: bf16[9,128,128], index: 1, kind: input, shape index: {}]
  %s2 = inlined_call_operand.vmem [shape: bf16[1,128,128], index: 2, kind: input, shape index: {}]
  %s3 = inlined_call_operand.hbm [shape: bf16[128,128], index: 3, kind: output, shape index: {0}]
  %s4 = inlined_call_operand.hbm [shape: f32[1,1,128], index: 4, kind: output, shape index: {1}]
  %s5 = inlined_call_operand.hbm [shape: f32[1,1,128], index: 5, kind: output, shape index: {2}]
  %s6 = inlined_call_operand.hbm [shape: bf16[128,128], index: 6, kind: output, shape index: {3}]
  %s7 = inlined_call_operand.hbm [shape: f32[1,1,128], index: 7, kind: output, shape index: {4}]
  %s8 = inlined_call_operand.hbm [shape: f32[1,1,128], index: 8, kind: output, shape index: {5}]
  %9 = xla_tuple %s3, %s4, %s5, %s6, %s7, %s8
  %s10 = sld [smem:[#allocation0]]
  $region62: #{tpu_custom_call.1} parent=0
    _
  %s12 = ssub.s32 1, %s10
  %s13 = scalar_select 0, %s12, %s10
  $region1: #{tpu_custom_call.1} parent=0
    #allocation2 [shape = 'u8[32768]{0}', space=vmem, size = 0x8000, scoped, tag = 'output window, operand 0, single buffered']
    #allocation3 [shape = 's32[1]{0}', space=sflag, size = 0x4, scoped, tag = 'scoped memory for tpu_custom_call.1']
    #allocation4 [shape = 'u8[512]{0}', space=vmem, size = 0x400, scoped, tag = 'output window, operand 1, single buffered']
    #allocation5 [shape = 's32[1]{0}', space=sflag, size = 0x4, scoped, tag = 'scoped memory for tpu_custom_call.1']
    #allocation6 [shape = 'u8[512]{0}', space=vmem, size = 0x400, scoped, tag = 'output window, operand 2, single buffered']
    #allocation7 [shape = 'u8[32768]{0}', space=vmem, size = 0x8000, scoped, tag = 'output window, operand 3, single buffered']
    #allocation8 [shape = 's32[1]{0}', space=sflag, size = 0x4, scoped, tag = 'scoped memory for tpu_custom_call.1']
    #allocation9 [shape = 'u8[512]{0}', space=vmem, size = 0x400, scoped, tag = 'output window, operand 4, single buffered']
    #allocation10 [shape = 'u8[512]{0}', space=vmem, size = 0x400, scoped, tag = 'output window, operand 5, single buffered']
    #allocation11 [shape = 's32[1]{0}', space=sflag, size = 0x4, scoped, tag = 'scoped memory for tpu_custom_call.1']
    %14 = vsyncpa [#allocation3], 0
    %15 = vsyncpa [#allocation5], 0
    %16 = vsyncpa [#allocation8], 0
    %17 = vsyncpa [#allocation11], 0
    // Predicated region
    $region2: #{tpu_custom_call.1} parent=1 // pred_check
      _
    $region3: #{tpu_custom_call.1} parent=1 // pred_check_branch
      %19 = sbr.rel (0) target = $region5
    $region4: #{tpu_custom_call.1} parent=1 // pred_region
      _
    $region5: #{tpu_custom_call.1} parent=1 // pred_fallthru
      _
    // Predicated region
    $region6: #{tpu_custom_call.1} parent=1 // pred_check
      _
    $region7: #{tpu_custom_call.1} parent=1 // pred_check_branch
      %21 = sbr.rel (0) target = $region9
    $region8: #{tpu_custom_call.1} parent=1 // pred_region
      _
    $region9: #{tpu_custom_call.1} parent=1 // pred_fallthru
      _
    // Predicated region
    $region10: #{tpu_custom_call.1} parent=1 // pred_check
      _
    $region11: #{tpu_custom_call.1} parent=1 // pred_check_branch
      %23 = sbr.rel (0) target = $region13
    $region12: #{tpu_custom_call.1} parent=1 // pred_region
      _
    $region13: #{tpu_custom_call.1} parent=1 // pred_fallthru
      _
    %v25 = vld [vmem:[%s0] sm:$0xf]
    %v26 = vld [vmem:[%s0 + $0x8] sm:$0xf]
    %v27 = vld [vmem:[%s0 + $0x10] sm:$0xf]
    %v28 = vld [vmem:[%s0 + $0x18] sm:$0xf]
    %v29 = vld [vmem:[%s0 + $0x20] sm:$0xf]
    %v30 = vld [vmem:[%s0 + $0x28] sm:$0xf]
    %v31 = vld [vmem:[%s0 + $0x30] sm:$0xf]
    %v32 = vld [vmem:[%s0 + $0x38] sm:$0xf]
    %v33 = vld [vmem:[%s0 + $0x120] sm:$0xf]
    %v34 = vld [vmem:[%s0 + $0x128] sm:$0xf]
    %v35 = vld [vmem:[%s0 + $0x130] sm:$0xf]
    %v36 = vld [vmem:[%s0 + $0x138] sm:$0xf]
    %v37 = vld [vmem:[%s0 + $0x140] sm:$0xf]
    %v38 = vld [vmem:[%s0 + $0x148] sm:$0xf]
    %v39 = vld [vmem:[%s0 + $0x150] sm:$0xf]
    %v40 = vld [vmem:[%s0 + $0x158] sm:$0xf]
    %v41 = vld [vmem:[%s1] sm:$0xf]
    %v42 = vld [vmem:[%s1 + $0x4] sm:$0xf]
    %v43 = vld [vmem:[%s1 + $0x8] sm:$0xf]
    %v44 = vld [vmem:[%s1 + $0xc] sm:$0xf]
    %v45 = vld [vmem:[%s1 + $0x10] sm:$0xf]
    %v46 = vld [vmem:[%s1 + $0x14] sm:$0xf]
    %v47 = vld [vmem:[%s1 + $0x18] sm:$0xf]
    %v48 = vld [vmem:[%s1 + $0x1c] sm:$0xf]
    %v49 = vld [vmem:[%s1 + $0x20] sm:$0xf]
    %v50 = vld [vmem:[%s1 + $0x24] sm:$0xf]
    %v51 = vld [vmem:[%s1 + $0x28] sm:$0xf]
    %v52 = vld [vmem:[%s1 + $0x2c] sm:$0xf]
    %v53 = vld [vmem:[%s1 + $0x30] sm:$0xf]
    %v54 = vld [vmem:[%s1 + $0x34] sm:$0xf]
    %v55 = vld [vmem:[%s1 + $0x38] sm:$0xf]
    %v56 = vld [vmem:[%s1 + $0x3c] sm:$0xf]
    %s57 = scalar_lea.vmem %s0, 72
    %v58 = vld [vmem:[%s57] sm:$0xf]
    %v59 = vld [vmem:[%s57 + $0x8] sm:$0xf]
    %v60 = vld [vmem:[%s57 + $0x10] sm:$0xf]
    %v61 = vld [vmem:[%s57 + $0x18] sm:$0xf]
    %v62 = vld [vmem:[%s57 + $0x20] sm:$0xf]
    %v63 = vld [vmem:[%s57 + $0x28] sm:$0xf]
    %v64 = vld [vmem:[%s57 + $0x30] sm:$0xf]
    %v65 = vld [vmem:[%s57 + $0x38] sm:$0xf]
    %v66 = vld [vmem:[%s57 + $0x120] sm:$0xf]
    %v67 = vld [vmem:[%s57 + $0x128] sm:$0xf]
    %v68 = vld [vmem:[%s57 + $0x130] sm:$0xf]
    %v69 = vld [vmem:[%s57 + $0x138] sm:$0xf]
    %v70 = vld [vmem:[%s57 + $0x140] sm:$0xf]
    %v71 = vld [vmem:[%s57 + $0x148] sm:$0xf]
    %v72 = vld [vmem:[%s57 + $0x150] sm:$0xf]
    %v73 = vld [vmem:[%s57 + $0x158] sm:$0xf]
    %s74 = scalar_lea.vmem %s1, 64
    %v75 = vld [vmem:[%s74] sm:$0xf]
    %v76 = vld [vmem:[%s74 + $0x4] sm:$0xf]
    %v77 = vld [vmem:[%s74 + $0x8] sm:$0xf]
    %v78 = vld [vmem:[%s74 + $0xc] sm:$0xf]
    %v79 = vld [vmem:[%s74 + $0x10] sm:$0xf]
    %v80 = vld [vmem:[%s74 + $0x14] sm:$0xf]
    %v81 = vld [vmem:[%s74 + $0x18] sm:$0xf]
    %v82 = vld [vmem:[%s74 + $0x1c] sm:$0xf]
    %v83 = vld [vmem:[%s74 + $0x20] sm:$0xf]
    %v84 = vld [vmem:[%s74 + $0x24] sm:$0xf]
    %v85 = vld [vmem:[%s74 + $0x28] sm:$0xf]
    %v86 = vld [vmem:[%s74 + $0x2c] sm:$0xf]
    %v87 = vld [vmem:[%s74 + $0x30] sm:$0xf]
    %v88 = vld [vmem:[%s74 + $0x34] sm:$0xf]
    %v89 = vld [vmem:[%s74 + $0x38] sm:$0xf]
    %v90 = vld [vmem:[%s74 + $0x3c] sm:$0xf]
    %v107 = vunpack.c.l.b16 %v58
    %v108 = vunpack.c.l.b16 %v59
    %v109 = vunpack.c.l.b16 %v60
    %v110 = vunpack.c.l.b16 %v61
    %v111 = vunpack.c.l.b16 %v62
    %v112 = vunpack.c.l.b16 %v63
    %v113 = vunpack.c.l.b16 %v64
    %v114 = vunpack.c.l.b16 %v65
    %v115 = vunpack.c.l.b16 %v66
    %v116 = vunpack.c.l.b16 %v67
    %v117 = vunpack.c.l.b16 %v68
    %v118 = vunpack.c.l.b16 %v69
    %v119 = vunpack.c.l.b16 %v70
    %v120 = vunpack.c.l.b16 %v71
    %v121 = vunpack.c.l.b16 %v72
    %v122 = vunpack.c.l.b16 %v73
    %v123 = vpack.c.b16 %v108, %v107
    %v124 = vpack.c.b16 %v110, %v109
    %v125 = vpack.c.b16 %v112, %v111
    %v126 = vpack.c.b16 %v114, %v113
    %v127 = vpack.c.b16 %v116, %v115
    %v128 = vpack.c.b16 %v118, %v117
    %v129 = vpack.c.b16 %v120, %v119
    %v130 = vpack.c.b16 %v122, %v121
    %v155 = vunpack.c.l.b16 %v75
    %v156 = vunpack.c.l.b16 %v76
    %v157 = vunpack.c.l.b16 %v77
    %v158 = vunpack.c.l.b16 %v78
    %v159 = vunpack.c.l.b16 %v79
    %v160 = vunpack.c.l.b16 %v80
    %v161 = vunpack.c.l.b16 %v81
    %v162 = vunpack.c.l.b16 %v82
    %v163 = vunpack.c.l.b16 %v83
    %v164 = vunpack.c.l.b16 %v84
    %v165 = vunpack.c.l.b16 %v85
    %v166 = vunpack.c.l.b16 %v86
    %v167 = vunpack.c.l.b16 %v87
    %v168 = vunpack.c.l.b16 %v88
    %v169 = vunpack.c.l.b16 %v89
    %v170 = vunpack.c.l.b16 %v90
    %v171 = vpack.c.b16 %v156, %v155
    %v172 = vpack.c.b16 %v158, %v157
    %v173 = vpack.c.b16 %v160, %v159
    %v174 = vpack.c.b16 %v162, %v161
    %v175 = vpack.c.b16 %v164, %v163
    %v176 = vpack.c.b16 %v166, %v165
    %v177 = vpack.c.b16 %v168, %v167
    %v178 = vpack.c.b16 %v170, %v169
    %187 = vmatprep.subr.bf16.mxu0 0
    %188 = vmatpush1.bf16.msra.mxu0 %v171
    %189 = vmatprep.subr.bf16.mxu0 0
    %190 = vmatpush1.bf16.msra.mxu0 %v172
    %191 = vmatprep.subr.bf16.mxu0 0
    %192 = vmatpush1.bf16.msra.mxu0 %v173
    %193 = vmatprep.subr.bf16.mxu0 0
    %194 = vmatpush1.bf16.msra.mxu0 %v174
    %195 = vmatprep.subr.bf16.mxu0 0
    %196 = vmatpush1.bf16.msra.mxu0 %v175
    %197 = vmatprep.subr.bf16.mxu0 0
    %198 = vmatpush1.bf16.msra.mxu0 %v176
    %199 = vmatprep.subr.bf16.mxu0 0
    %200 = vmatpush1.bf16.msra.mxu0 %v177
    %201 = vmatprep.subr.bf16.mxu0 0
    %202 = vmatpush1.bf16.msra.mxu0 %v178
    %203 = vmatprep.subr.bf16.mxu0 0
    %204 = vmatpush1.bf16.msra.mxu0 0
    %205 = vmatprep.subr.bf16.mxu0 0
    %206 = vmatpush1.bf16.msra.mxu0 0
    %207 = vmatprep.subr.bf16.mxu0 0
    %208 = vmatpush1.bf16.msra.mxu0 0
    %209 = vmatprep.subr.bf16.mxu0 0
    %210 = vmatpush1.bf16.msra.mxu0 0
    %211 = vmatprep.subr.bf16.mxu0 0
    %212 = vmatpush1.bf16.msra.mxu0 0
    %213 = vmatprep.subr.bf16.mxu0 0
    %214 = vmatpush1.bf16.msra.mxu0 0
    %215 = vmatprep.subr.bf16.mxu0 0
    %216 = vmatpush1.bf16.msra.mxu0 0
    %217 = vmatprep.subr.bf16.mxu0 0
    %218 = vmatpush1.bf16.msra.mxu0 0
    %219 = vmatprep.mubr.bf16.mxu0 0
    %220 = vmatmul.mubr.bf16.gmra.mrb[0].mxu0 %v123
    %v221 = vpop.f32.mrb[0].mxu0
    %v222 = vadd.f32 0.0, %v221
    %v223 = vpop.f32.mrb[0].mxu0
    %v224 = vpop.f32.mrb[0].mxu0
    %v225 = vadd.f32 0.0, %v224
    %v226 = vpop.f32.mrb[0].mxu0
    %227 = vmatprep.mubr.bf16.mxu0 0
    %228 = vmatmul.mubr.bf16.gmra.mrb[0].mxu0 %v124
    %v229 = vpop.f32.mrb[0].mxu0
    %v230 = vadd.f32 0.0, %v229
    %v231 = vpop.f32.mrb[0].mxu0
    %v232 = vpop.f32.mrb[0].mxu0
    %v233 = vadd.f32 0.0, %v232
    %v234 = vpop.f32.mrb[0].mxu0
    %235 = vmatprep.mubr.bf16.mxu0 0
    %236 = vmatmul.mubr.bf16.gmra.mrb[0].mxu0 %v125
    %v237 = vpop.f32.mrb[0].mxu0
    %v238 = vadd.f32 0.0, %v237
    %v239 = vpop.f32.mrb[0].mxu0
    %v240 = vpop.f32.mrb[0].mxu0
    %v241 = vadd.f32 0.0, %v240
    %v242 = vpop.f32.mrb[0].mxu0
    %243 = vmatprep.mubr.bf16.mxu0 0
    %244 = vmatmul.mubr.bf16.gmra.mrb[0].mxu0 %v126
    %v245 = vpop.f32.mrb[0].mxu0
    %v246 = vadd.f32 0.0, %v245
    %v247 = vpop.f32.mrb[0].mxu0
    %v248 = vpop.f32.mrb[0].mxu0
    %v249 = vadd.f32 0.0, %v248
    %v250 = vpop.f32.mrb[0].mxu0
    %251 = vmatprep.mubr.bf16.mxu0 0
    %252 = vmatmul.mubr.bf16.gmra.mrb[0].mxu0 %v127
    %v253 = vpop.f32.mrb[0].mxu0
    %v254 = vadd.f32 0.0, %v253
    %v255 = vpop.f32.mrb[0].mxu0
    %v256 = vpop.f32.mrb[0].mxu0
    %v257 = vadd.f32 0.0, %v256
    %v258 = vpop.f32.mrb[0].mxu0
    %259 = vmatprep.mubr.bf16.mxu0 0
    %260 = vmatmul.mubr.bf16.gmra.mrb[0].mxu0 %v128
    %v261 = vpop.f32.mrb[0].mxu0
    %v262 = vadd.f32 0.0, %v261
    %v263 = vpop.f32.mrb[0].mxu0
    %v264 = vpop.f32.mrb[0].mxu0
    %v265 = vadd.f32 0.0, %v264
    %v266 = vpop.f32.mrb[0].mxu0
    %267 = vmatprep.mubr.bf16.mxu0 0
    %268 = vmatmul.mubr.bf16.gmra.mrb[0].mxu0 %v129
    %v269 = vpop.f32.mrb[0].mxu0
    %v270 = vadd.f32 0.0, %v269
    %v271 = vpop.f32.mrb[0].mxu0
    %v272 = vpop.f32.mrb[0].mxu0
    %v273 = vadd.f32 0.0, %v272
    %v274 = vpop.f32.mrb[0].mxu0
    %275 = vmatprep.mubr.bf16.mxu0 0
    %276 = vmatmul.mubr.bf16.gmra.mrb[0].mxu0 %v130
    %v277 = vpop.f32.mrb[0].mxu0
    %v278 = vadd.f32 0.0, %v277
    %v279 = vpop.f32.mrb[0].mxu0
    %v280 = vpop.f32.mrb[0].mxu0
    %v281 = vadd.f32 0.0, %v280
    %v282 = vpop.f32.mrb[0].mxu0
    %283 = vdwg.mxu0
    %v300 = vunpack.c.l.b16 %v25
    %v301 = vunpack.c.l.b16 %v26
    %v302 = vunpack.c.l.b16 %v27
    %v303 = vunpack.c.l.b16 %v28
    %v304 = vunpack.c.l.b16 %v29
    %v305 = vunpack.c.l.b16 %v30
    %v306 = vunpack.c.l.b16 %v31
    %v307 = vunpack.c.l.b16 %v32
    %v308 = vunpack.c.l.b16 %v33
    %v309 = vunpack.c.l.b16 %v34
    %v310 = vunpack.c.l.b16 %v35
    %v311 = vunpack.c.l.b16 %v36
    %v312 = vunpack.c.l.b16 %v37
    %v313 = vunpack.c.l.b16 %v38
    %v314 = vunpack.c.l.b16 %v39
    %v315 = vunpack.c.l.b16 %v40
    %v316 = vpack.c.b16 %v301, %v300
    %v317 = vpack.c.b16 %v303, %v302
    %v318 = vpack.c.b16 %v305, %v304
    %v319 = vpack.c.b16 %v307, %v306
    %v320 = vpack.c.b16 %v309, %v308
    %v321 = vpack.c.b16 %v311, %v310
    %v322 = vpack.c.b16 %v313, %v312
    %v323 = vpack.c.b16 %v315, %v314
    %v348 = vunpack.c.l.b16 %v41
    %v349 = vunpack.c.l.b16 %v42
    %v350 = vunpack.c.l.b16 %v43
    %v351 = vunpack.c.l.b16 %v44
    %v352 = vunpack.c.l.b16 %v45
    %v353 = vunpack.c.l.b16 %v46
    %v354 = vunpack.c.l.b16 %v47
    %v355 = vunpack.c.l.b16 %v48
    %v356 = vunpack.c.l.b16 %v49
    %v357 = vunpack.c.l.b16 %v50
    %v358 = vunpack.c.l.b16 %v51
    %v359 = vunpack.c.l.b16 %v52
    %v360 = vunpack.c.l.b16 %v53
    %v361 = vunpack.c.l.b16 %v54
    %v362 = vunpack.c.l.b16 %v55
    %v363 = vunpack.c.l.b16 %v56
    %v364 = vpack.c.b16 %v349, %v348
    %v365 = vpack.c.b16 %v351, %v350
    %v366 = vpack.c.b16 %v353, %v352
    %v367 = vpack.c.b16 %v355, %v354
    %v368 = vpack.c.b16 %v357, %v356
    %v369 = vpack.c.b16 %v359, %v358
    %v370 = vpack.c.b16 %v361, %v360
    %v371 = vpack.c.b16 %v363, %v362
    %380 = vmatprep.subr.bf16.mxu0 0
    %381 = vmatpush1.bf16.msra.mxu0 %v364
    %382 = vmatprep.subr.bf16.mxu0 0
    %383 = vmatpush1.bf16.msra.mxu0 %v365
    %384 = vmatprep.subr.bf16.mxu0 0
    %385 = vmatpush1.bf16.msra.mxu0 %v366
    %386 = vmatprep.subr.bf16.mxu0 0
    %387 = vmatpush1.bf16.msra.mxu0 %v367
    %388 = vmatprep.subr.bf16.mxu0 0
    %389 = vmatpush1.bf16.msra.mxu0 %v368
    %390 = vmatprep.subr.bf16.mxu0 0
    %391 = vmatpush1.bf16.msra.mxu0 %v369
    %392 = vmatprep.subr.bf16.mxu0 0
    %393 = vmatpush1.bf16.msra.mxu0 %v370
    %394 = vmatprep.subr.bf16.mxu0 0
    %395 = vmatpush1.bf16.msra.mxu0 %v371
    %396 = vmatprep.subr.bf16.mxu0 0
    %397 = vmatpush1.bf16.msra.mxu0 0
    %398 = vmatprep.subr.bf16.mxu0 0
    %399 = vmatpush1.bf16.msra.mxu0 0
    %400 = vmatprep.subr.bf16.mxu0 0
    %401 = vmatpush1.bf16.msra.mxu0 0
    %402 = vmatprep.subr.bf16.mxu0 0
    %403 = vmatpush1.bf16.msra.mxu0 0
    %404 = vmatprep.subr.bf16.mxu0 0
    %405 = vmatpush1.bf16.msra.mxu0 0
    %406 = vmatprep.subr.bf16.mxu0 0
    %407 = vmatpush1.bf16.msra.mxu0 0
    %408 = vmatprep.subr.bf16.mxu0 0
    %409 = vmatpush1.bf16.msra.mxu0 0
    %410 = vmatprep.subr.bf16.mxu0 0
    %411 = vmatpush1.bf16.msra.mxu0 0
    %412 = vmatprep.mubr.bf16.mxu0 0
    %413 = vmatmul.mubr.bf16.gmra.mrb[0].mxu0 %v316
    %v414 = vpop.f32.mrb[0].mxu0
    %v415 = vadd.f32 %v222, %v414
    %v416 = vpop.f32.mrb[0].mxu0
    %v417 = vpop.f32.mrb[0].mxu0
    %v418 = vadd.f32 %v225, %v417
    %v419 = vpop.f32.mrb[0].mxu0
    %420 = vmatprep.mubr.bf16.mxu0 0
    %421 = vmatmul.mubr.bf16.gmra.mrb[0].mxu0 %v317
    %v422 = vpop.f32.mrb[0].mxu0
    %v423 = vadd.f32 %v230, %v422
    %v424 = vpop.f32.mrb[0].mxu0
    %v425 = vpop.f32.mrb[0].mxu0
    %v426 = vadd.f32 %v233, %v425
    %v427 = vpop.f32.mrb[0].mxu0
    %428 = vmatprep.mubr.bf16.mxu0 0
    %429 = vmatmul.mubr.bf16.gmra.mrb[0].mxu0 %v318
    %v430 = vpop.f32.mrb[0].mxu0
    %v431 = vadd.f32 %v238, %v430
    %v432 = vpop.f32.mrb[0].mxu0
    %v433 = vpop.f32.mrb[0].mxu0
    %v434 = vadd.f32 %v241, %v433
    %v435 = vpop.f32.mrb[0].mxu0
    %436 = vmatprep.mubr.bf16.mxu0 0
    %437 = vmatmul.mubr.bf16.gmra.mrb[0].mxu0 %v319
    %v438 = vpop.f32.mrb[0].mxu0
    %v439 = vadd.f32 %v246, %v438
    %v440 = vpop.f32.mrb[0].mxu0
    %v441 = vpop.f32.mrb[0].mxu0
    %v442 = vadd.f32 %v249, %v441
    %v443 = vpop.f32.mrb[0].mxu0
    %444 = vmatprep.mubr.bf16.mxu0 0
    %445 = vmatmul.mubr.bf16.gmra.mrb[0].mxu0 %v320
    %v446 = vpop.f32.mrb[0].mxu0
    %v447 = vadd.f32 %v254, %v446
    %v448 = vpop.f32.mrb[0].mxu0
    %v449 = vpop.f32.mrb[0].mxu0
    %v450 = vadd.f32 %v257, %v449
    %v451 = vpop.f32.mrb[0].mxu0
    %452 = vmatprep.mubr.bf16.mxu0 0
    %453 = vmatmul.mubr.bf16.gmra.mrb[0].mxu0 %v321
    %v454 = vpop.f32.mrb[0].mxu0
    %v455 = vadd.f32 %v262, %v454
    %v456 = vpop.f32.mrb[0].mxu0
    %v457 = vpop.f32.mrb[0].mxu0
    %v458 = vadd.f32 %v265, %v457
    %v459 = vpop.f32.mrb[0].mxu0
    %460 = vmatprep.mubr.bf16.mxu0 0
    %461 = vmatmul.mubr.bf16.gmra.mrb[0].mxu0 %v322
    %v462 = vpop.f32.mrb[0].mxu0
    %v463 = vadd.f32 %v270, %v462
    %v464 = vpop.f32.mrb[0].mxu0
    %v465 = vpop.f32.mrb[0].mxu0
    %v466 = vadd.f32 %v273, %v465
    %v467 = vpop.f32.mrb[0].mxu0
    %468 = vmatprep.mubr.bf16.mxu0 0
    %469 = vmatmul.mubr.bf16.gmra.mrb[0].mxu0 %v323
    %v470 = vpop.f32.mrb[0].mxu0
    %v471 = vadd.f32 %v278, %v470
    %v472 = vpop.f32.mrb[0].mxu0
    %v473 = vpop.f32.mrb[0].mxu0
    %v474 = vadd.f32 %v281, %v473
    %v475 = vpop.f32.mrb[0].mxu0
    %476 = vdwg.mxu0
    %v477 = vld [vmem:[%s0] sm:$0xf]
    %v478 = vld [vmem:[%s0 + $0x4] sm:$0x1]
    %v479 = vld [vmem:[%s0 + $0x8] sm:$0xf]
    %v480 = vld [vmem:[%s0 + $0xc] sm:$0x1]
    %v481 = vld [vmem:[%s0 + $0x10] sm:$0xf]
    %v482 = vld [vmem:[%s0 + $0x14] sm:$0x1]
    %v483 = vld [vmem:[%s0 + $0x18] sm:$0xf]
    %v484 = vld [vmem:[%s0 + $0x1c] sm:$0x1]
    %v485 = vld [vmem:[%s0 + $0x20] sm:$0xf]
    %v486 = vld [vmem:[%s0 + $0x24] sm:$0x1]
    %v487 = vld [vmem:[%s0 + $0x28] sm:$0xf]
    %v488 = vld [vmem:[%s0 + $0x2c] sm:$0x1]
    %v489 = vld [vmem:[%s0 + $0x30] sm:$0xf]
    %v490 = vld [vmem:[%s0 + $0x34] sm:$0x1]
    %v491 = vld [vmem:[%s0 + $0x38] sm:$0xf]
    %v492 = vld [vmem:[%s0 + $0x3c] sm:$0x1]
    %v493 = vld [vmem:[%s0 + $0x120] sm:$0xf]
    %v494 = vld [vmem:[%s0 + $0x124] sm:$0x1]
    %v495 = vld [vmem:[%s0 + $0x128] sm:$0xf]
    %v496 = vld [vmem:[%s0 + $0x12c] sm:$0x1]
    %v497 = vld [vmem:[%s0 + $0x130] sm:$0xf]
    %v498 = vld [vmem:[%s0 + $0x134] sm:$0x1]
    %v499 = vld [vmem:[%s0 + $0x138] sm:$0xf]
    %v500 = vld [vmem:[%s0 + $0x13c] sm:$0x1]
    %v501 = vld [vmem:[%s0 + $0x140] sm:$0xf]
    %v502 = vld [vmem:[%s0 + $0x144] sm:$0x1]
    %v503 = vld [vmem:[%s0 + $0x148] sm:$0xf]
    %v504 = vld [vmem:[%s0 + $0x14c] sm:$0x1]
    %v505 = vld [vmem:[%s0 + $0x150] sm:$0xf]
    %v506 = vld [vmem:[%s0 + $0x154] sm:$0x1]
    %v507 = vld [vmem:[%s0 + $0x158] sm:$0xf]
    %v508 = vld [vmem:[%s0 + $0x15c] sm:$0x1]
    %vm509 = vsmask.f32 3328
    %vm510 = vsmask.f32 7440
    %vm511 = vmor %vm509, %vm510
    %v513 = vshrl.u32 %v477, 16
    %v515 = vrot.slane %v513, 4
    %v516 = vshll.u32 %v477, 16
    %v518 = vrot.slane %v516, 5
    %v519 = vor.u32 %v515, %v518
    %v520 = vrot.slane %v519, 4
    %v522 = vshll.u32 %v478, 16
    %v524 = vrot.slane %v522, 5
    %v525 = vsel %vm511, %v520, %v524
    %v527 = vshrl.u32 %v479, 16
    %v529 = vrot.slane %v527, 4
    %v530 = vshll.u32 %v479, 16
    %v532 = vrot.slane %v530, 5
    %v533 = vor.u32 %v529, %v532
    %v534 = vrot.slane %v533, 4
    %v536 = vshll.u32 %v480, 16
    %v538 = vrot.slane %v536, 5
    %v539 = vsel %vm511, %v534, %v538
    %v541 = vshrl.u32 %v481, 16
    %v543 = vrot.slane %v541, 4
    %v544 = vshll.u32 %v481, 16
    %v546 = vrot.slane %v544, 5
    %v547 = vor.u32 %v543, %v546
    %v548 = vrot.slane %v547, 4
    %v550 = vshll.u32 %v482, 16
    %v552 = vrot.slane %v550, 5
    %v553 = vsel %vm511, %v548, %v552
    %v555 = vshrl.u32 %v483, 16
    %v557 = vrot.slane %v555, 4
    %v558 = vshll.u32 %v483, 16
    %v560 = vrot.slane %v558, 5
    %v561 = vor.u32 %v557, %v560
    %v562 = vrot.slane %v561, 4
    %v564 = vshll.u32 %v484, 16
    %v566 = vrot.slane %v564, 5
    %v567 = vsel %vm511, %v562, %v566
    %v569 = vshrl.u32 %v485, 16
    %v571 = vrot.slane %v569, 4
    %v572 = vshll.u32 %v485, 16
    %v574 = vrot.slane %v572, 5
    %v575 = vor.u32 %v571, %v574
    %v576 = vrot.slane %v575, 4
    %v578 = vshll.u32 %v486, 16
    %v580 = vrot.slane %v578, 5
    %v581 = vsel %vm511, %v576, %v580
    %v583 = vshrl.u32 %v487, 16
    %v585 = vrot.slane %v583, 4
    %v586 = vshll.u32 %v487, 16
    %v588 = vrot.slane %v586, 5
    %v589 = vor.u32 %v585, %v588
    %v590 = vrot.slane %v589, 4
    %v592 = vshll.u32 %v488, 16
    %v594 = vrot.slane %v592, 5
    %v595 = vsel %vm511, %v590, %v594
    %v597 = vshrl.u32 %v489, 16
    %v599 = vrot.slane %v597, 4
    %v600 = vshll.u32 %v489, 16
    %v602 = vrot.slane %v600, 5
    %v603 = vor.u32 %v599, %v602
    %v604 = vrot.slane %v603, 4
    %v606 = vshll.u32 %v490, 16
    %v608 = vrot.slane %v606, 5
    %v609 = vsel %vm511, %v604, %v608
    %v611 = vshrl.u32 %v491, 16
    %v613 = vrot.slane %v611, 4
    %v614 = vshll.u32 %v491, 16
    %v616 = vrot.slane %v614, 5
    %v617 = vor.u32 %v613, %v616
    %v618 = vrot.slane %v617, 4
    %v620 = vshll.u32 %v492, 16
    %v622 = vrot.slane %v620, 5
    %v623 = vsel %vm511, %v618, %v622
    %v625 = vshrl.u32 %v493, 16
    %v627 = vrot.slane %v625, 4
    %v628 = vshll.u32 %v493, 16
    %v630 = vrot.slane %v628, 5
    %v631 = vor.u32 %v627, %v630
    %v632 = vrot.slane %v631, 4
    %v634 = vshll.u32 %v494, 16
    %v636 = vrot.slane %v634, 5
    %v637 = vsel %vm511, %v632, %v636
    %v639 = vshrl.u32 %v495, 16
    %v641 = vrot.slane %v639, 4
    %v642 = vshll.u32 %v495, 16
    %v644 = vrot.slane %v642, 5
    %v645 = vor.u32 %v641, %v644
    %v646 = vrot.slane %v645, 4
    %v648 = vshll.u32 %v496, 16
    %v650 = vrot.slane %v648, 5
    %v651 = vsel %vm511, %v646, %v650
    %v653 = vshrl.u32 %v497, 16
    %v655 = vrot.slane %v653, 4
    %v656 = vshll.u32 %v497, 16
    %v658 = vrot.slane %v656, 5
    %v659 = vor.u32 %v655, %v658
    %v660 = vrot.slane %v659, 4
    %v662 = vshll.u32 %v498, 16
    %v664 = vrot.slane %v662, 5
    %v665 = vsel %vm511, %v660, %v664
    %v667 = vshrl.u32 %v499, 16
    %v669 = vrot.slane %v667, 4
    %v670 = vshll.u32 %v499, 16
    %v672 = vrot.slane %v670, 5
    %v673 = vor.u32 %v669, %v672
    %v674 = vrot.slane %v673, 4
    %v676 = vshll.u32 %v500, 16
    %v678 = vrot.slane %v676, 5
    %v679 = vsel %vm511, %v674, %v678
    %v681 = vshrl.u32 %v501, 16
    %v683 = vrot.slane %v681, 4
    %v684 = vshll.u32 %v501, 16
    %v686 = vrot.slane %v684, 5
    %v687 = vor.u32 %v683, %v686
    %v688 = vrot.slane %v687, 4
    %v690 = vshll.u32 %v502, 16
    %v692 = vrot.slane %v690, 5
    %v693 = vsel %vm511, %v688, %v692
    %v695 = vshrl.u32 %v503, 16
    %v697 = vrot.slane %v695, 4
    %v698 = vshll.u32 %v503, 16
    %v700 = vrot.slane %v698, 5
    %v701 = vor.u32 %v697, %v700
    %v702 = vrot.slane %v701, 4
    %v704 = vshll.u32 %v504, 16
    %v706 = vrot.slane %v704, 5
    %v707 = vsel %vm511, %v702, %v706
    %v709 = vshrl.u32 %v505, 16
    %v711 = vrot.slane %v709, 4
    %v712 = vshll.u32 %v505, 16
    %v714 = vrot.slane %v712, 5
    %v715 = vor.u32 %v711, %v714
    %v716 = vrot.slane %v715, 4
    %v718 = vshll.u32 %v506, 16
    %v720 = vrot.slane %v718, 5
    %v721 = vsel %vm511, %v716, %v720
    %v723 = vshrl.u32 %v507, 16
    %v725 = vrot.slane %v723, 4
    %v726 = vshll.u32 %v507, 16
    %v728 = vrot.slane %v726, 5
    %v729 = vor.u32 %v725, %v728
    %v730 = vrot.slane %v729, 4
    %v732 = vshll.u32 %v508, 16
    %v734 = vrot.slane %v732, 5
    %v735 = vsel %vm511, %v730, %v734
    %s736 = scalar_lea.vmem %s1, 128
    %v737 = vld [vmem:[%s736] sm:$0xf]
    %v738 = vld [vmem:[%s736 + $0x4] sm:$0xf]
    %v739 = vld [vmem:[%s736 + $0x8] sm:$0xf]
    %v740 = vld [vmem:[%s736 + $0xc] sm:$0xf]
    %v741 = vld [vmem:[%s736 + $0x10] sm:$0xf]
    %v742 = vld [vmem:[%s736 + $0x14] sm:$0xf]
    %v743 = vld [vmem:[%s736 + $0x18] sm:$0xf]
    %v744 = vld [vmem:[%s736 + $0x1c] sm:$0xf]
    %v745 = vld [vmem:[%s736 + $0x20] sm:$0xf]
    %v746 = vld [vmem:[%s736 + $0x24] sm:$0xf]
    %v747 = vld [vmem:[%s736 + $0x28] sm:$0xf]
    %v748 = vld [vmem:[%s736 + $0x2c] sm:$0xf]
    %v749 = vld [vmem:[%s736 + $0x30] sm:$0xf]
    %v750 = vld [vmem:[%s736 + $0x34] sm:$0xf]
    %v751 = vld [vmem:[%s736 + $0x38] sm:$0xf]
    %v752 = vld [vmem:[%s736 + $0x3c] sm:$0xf]
    %v753 = vunpack.c.l.b16 %v525
    %v754 = vunpack.c.l.b16 %v539
    %v755 = vunpack.c.l.b16 %v553
    %v756 = vunpack.c.l.b16 %v567
    %v757 = vunpack.c.l.b16 %v581
    %v758 = vunpack.c.l.b16 %v595
    %v759 = vunpack.c.l.b16 %v609
    %v760 = vunpack.c.l.b16 %v623
    %v761 = vunpack.c.l.b16 %v637
    %v762 = vunpack.c.l.b16 %v651
    %v763 = vunpack.c.l.b16 %v665
    %v764 = vunpack.c.l.b16 %v679
    %v765 = vunpack.c.l.b16 %v693
    %v766 = vunpack.c.l.b16 %v707
    %v767 = vunpack.c.l.b16 %v721
    %v768 = vunpack.c.l.b16 %v735
    %v769 = vpack.c.b16 %v754, %v753
    %v770 = vpack.c.b16 %v756, %v755
    %v771 = vpack.c.b16 %v758, %v757
    %v772 = vpack.c.b16 %v760, %v759
    %v773 = vpack.c.b16 %v762, %v761
    %v774 = vpack.c.b16 %v764, %v763
    %v775 = vpack.c.b16 %v766, %v765
    %v776 = vpack.c.b16 %v768, %v767
    %v801 = vunpack.c.l.b16 %v737
    %v802 = vunpack.c.l.b16 %v738
    %v803 = vunpack.c.l.b16 %v739
    %v804 = vunpack.c.l.b16 %v740
    %v805 = vunpack.c.l.b16 %v741
    %v806 = vunpack.c.l.b16 %v742
    %v807 = vunpack.c.l.b16 %v743
    %v808 = vunpack.c.l.b16 %v744
    %v809 = vunpack.c.l.b16 %v745
    %v810 = vunpack.c.l.b16 %v746
    %v811 = vunpack.c.l.b16 %v747
    %v812 = vunpack.c.l.b16 %v748
    %v813 = vunpack.c.l.b16 %v749
    %v814 = vunpack.c.l.b16 %v750
    %v815 = vunpack.c.l.b16 %v751
    %v816 = vunpack.c.l.b16 %v752
    %v817 = vpack.c.b16 %v802, %v801
    %v818 = vpack.c.b16 %v804, %v803
    %v819 = vpack.c.b16 %v806, %v805
    %v820 = vpack.c.b16 %v808, %v807
    %v821 = vpack.c.b16 %v810, %v809
    %v822 = vpack.c.b16 %v812, %v811
    %v823 = vpack.c.b16 %v814, %v813
    %v824 = vpack.c.b16 %v816, %v815
    %833 = vmatprep.subr.bf16.mxu0 0
    %834 = vmatpush1.bf16.msra.mxu0 %v817
    %835 = vmatprep.subr.bf16.mxu0 0
    %836 = vmatpush1.bf16.msra.mxu0 %v818
    %837 = vmatprep.subr.bf16.mxu0 0
    %838 = vmatpush1.bf16.msra.mxu0 %v819
    %839 = vmatprep.subr.bf16.mxu0 0
    %840 = vmatpush1.bf16.msra.mxu0 %v820
    %841 = vmatprep.subr.bf16.mxu0 0
    %842 = vmatpush1.bf16.msra.mxu0 %v821
    %843 = vmatprep.subr.bf16.mxu0 0
    %844 = vmatpush1.bf16.msra.mxu0 %v822
    %845 = vmatprep.subr.bf16.mxu0 0
    %846 = vmatpush1.bf16.msra.mxu0 %v823
    %847 = vmatprep.subr.bf16.mxu0 0
    %848 = vmatpush1.bf16.msra.mxu0 %v824
    %849 = vmatprep.subr.bf16.mxu0 0
    %850 = vmatpush1.bf16.msra.mxu0 0
    %851 = vmatprep.subr.bf16.mxu0 0
    %852 = vmatpush1.bf16.msra.mxu0 0
    %853 = vmatprep.subr.bf16.mxu0 0
    %854 = vmatpush1.bf16.msra.mxu0 0
    %855 = vmatprep.subr.bf16.mxu0 0
    %856 = vmatpush1.bf16.msra.mxu0 0
    %857 = vmatprep.subr.bf16.mxu0 0
    %858 = vmatpush1.bf16.msra.mxu0 0
    %859 = vmatprep.subr.bf16.mxu0 0
    %860 = vmatpush1.bf16.msra.mxu0 0
    %861 = vmatprep.subr.bf16.mxu0 0
    %862 = vmatpush1.bf16.msra.mxu0 0
    %863 = vmatprep.subr.bf16.mxu0 0
    %864 = vmatpush1.bf16.msra.mxu0 0
    %865 = vmatprep.mubr.bf16.mxu0 0
    %866 = vmatmul.mubr.bf16.gmra.mrb[0].mxu0 %v769
    %v867 = vpop.f32.mrb[0].mxu0
    %v868 = vadd.f32 0.0, %v867
    %v869 = vpop.f32.mrb[0].mxu0
    %v870 = vpop.f32.mrb[0].mxu0
    %v871 = vadd.f32 0.0, %v870
    %v872 = vpop.f32.mrb[0].mxu0
    %873 = vmatprep.mubr.bf16.mxu0 0
    %874 = vmatmul.mubr.bf16.gmra.mrb[0].mxu0 %v770
    %v875 = vpop.f32.mrb[0].mxu0
    %v876 = vadd.f32 0.0, %v875
    %v877 = vpop.f32.mrb[0].mxu0
    %v878 = vpop.f32.mrb[0].mxu0
    %v879 = vadd.f32 0.0, %v878
    %v880 = vpop.f32.mrb[0].mxu0
    %881 = vmatprep.mubr.bf16.mxu0 0
    %882 = vmatmul.mubr.bf16.gmra.mrb[0].mxu0 %v771
    %v883 = vpop.f32.mrb[0].mxu0
    %v884 = vadd.f32 0.0, %v883
    %v885 = vpop.f32.mrb[0].mxu0
    %v886 = vpop.f32.mrb[0].mxu0
    %v887 = vadd.f32 0.0, %v886
    %v888 = vpop.f32.mrb[0].mxu0
    %889 = vmatprep.mubr.bf16.mxu0 0
    %890 = vmatmul.mubr.bf16.gmra.mrb[0].mxu0 %v772
    %v891 = vpop.f32.mrb[0].mxu0
    %v892 = vadd.f32 0.0, %v891
    %v893 = vpop.f32.mrb[0].mxu0
    %v894 = vpop.f32.mrb[0].mxu0
    %v895 = vadd.f32 0.0, %v894
    %v896 = vpop.f32.mrb[0].mxu0
    %897 = vmatprep.mubr.bf16.mxu0 0
    %898 = vmatmul.mubr.bf16.gmra.mrb[0].mxu0 %v773
    %v899 = vpop.f32.mrb[0].mxu0
    %v900 = vadd.f32 0.0, %v899
    %v901 = vpop.f32.mrb[0].mxu0
    %v902 = vpop.f32.mrb[0].mxu0
    %v903 = vadd.f32 0.0, %v902
    %v904 = vpop.f32.mrb[0].mxu0
    %905 = vmatprep.mubr.bf16.mxu0 0
    %906 = vmatmul.mubr.bf16.gmra.mrb[0].mxu0 %v774
    %v907 = vpop.f32.mrb[0].mxu0
    %v908 = vadd.f32 0.0, %v907
    %v909 = vpop.f32.mrb[0].mxu0
    %v910 = vpop.f32.mrb[0].mxu0
    %v911 = vadd.f32 0.0, %v910
    %v912 = vpop.f32.mrb[0].mxu0
    %913 = vmatprep.mubr.bf16.mxu0 0
    %914 = vmatmul.mubr.bf16.gmra.mrb[0].mxu0 %v775
    %v915 = vpop.f32.mrb[0].mxu0
    %v916 = vadd.f32 0.0, %v915
    %v917 = vpop.f32.mrb[0].mxu0
    %v918 = vpop.f32.mrb[0].mxu0
    %v919 = vadd.f32 0.0, %v918
    %v920 = vpop.f32.mrb[0].mxu0
    %921 = vmatprep.mubr.bf16.mxu0 0
    %922 = vmatmul.mubr.bf16.gmra.mrb[0].mxu0 %v776
    %v923 = vpop.f32.mrb[0].mxu0
    %v924 = vadd.f32 0.0, %v923
    %v925 = vpop.f32.mrb[0].mxu0
    %v926 = vpop.f32.mrb[0].mxu0
    %v927 = vadd.f32 0.0, %v926
    %v928 = vpop.f32.mrb[0].mxu0
    %929 = vdwg.mxu0
    %v930 = vadd.f32 %v415, %v868
    %v931 = vadd.f32 %v418, %v871
    %v932 = vadd.f32 %v423, %v876
    %v933 = vadd.f32 %v426, %v879
    %v934 = vadd.f32 %v431, %v884
    %v935 = vadd.f32 %v434, %v887
    %v936 = vadd.f32 %v439, %v892
    %v937 = vadd.f32 %v442, %v895
    %v938 = vadd.f32 %v447, %v900
    %v939 = vadd.f32 %v450, %v903
    %v940 = vadd.f32 %v455, %v908
    %v941 = vadd.f32 %v458, %v911
    %v942 = vadd.f32 %v463, %v916
    %v943 = vadd.f32 %v466, %v919
    %v944 = vadd.f32 %v471, %v924
    %v945 = vadd.f32 %v474, %v927
    %s946 = scalar_lea.vmem %s0, 144
    %v947 = vld [vmem:[%s946] sm:$0xf]
    %v948 = vld [vmem:[%s946 + $0x8] sm:$0xf]
    %v949 = vld [vmem:[%s946 + $0x10] sm:$0xf]
    %v950 = vld [vmem:[%s946 + $0x18] sm:$0xf]
    %v951 = vld [vmem:[%s946 + $0x20] sm:$0xf]
    %v952 = vld [vmem:[%s946 + $0x28] sm:$0xf]
    %v953 = vld [vmem:[%s946 + $0x30] sm:$0xf]
    %v954 = vld [vmem:[%s946 + $0x38] sm:$0xf]
    %v955 = vld [vmem:[%s946 + $0x120] sm:$0xf]
    %v956 = vld [vmem:[%s946 + $0x128] sm:$0xf]
    %v957 = vld [vmem:[%s946 + $0x130] sm:$0xf]
    %v958 = vld [vmem:[%s946 + $0x138] sm:$0xf]
    %v959 = vld [vmem:[%s946 + $0x140] sm:$0xf]
    %v960 = vld [vmem:[%s946 + $0x148] sm:$0xf]
    %v961 = vld [vmem:[%s946 + $0x150] sm:$0xf]
    %v962 = vld [vmem:[%s946 + $0x158] sm:$0xf]
    %s963 = scalar_lea.vmem %s1, 192
    %v964 = vld [vmem:[%s963] sm:$0xf]
    %v965 = vld [vmem:[%s963 + $0x4] sm:$0xf]
    %v966 = vld [vmem:[%s963 + $0x8] sm:$0xf]
    %v967 = vld [vmem:[%s963 + $0xc] sm:$0xf]
    %v968 = vld [vmem:[%s963 + $0x10] sm:$0xf]
    %v969 = vld [vmem:[%s963 + $0x14] sm:$0xf]
    %v970 = vld [vmem:[%s963 + $0x18] sm:$0xf]
    %v971 = vld [vmem:[%s963 + $0x1c] sm:$0xf]
    %v972 = vld [vmem:[%s963 + $0x20] sm:$0xf]
    %v973 = vld [vmem:[%s963 + $0x24] sm:$0xf]
    %v974 = vld [vmem:[%s963 + $0x28] sm:$0xf]
    %v975 = vld [vmem:[%s963 + $0x2c] sm:$0xf]
    %v976 = vld [vmem:[%s963 + $0x30] sm:$0xf]
    %v977 = vld [vmem:[%s963 + $0x34] sm:$0xf]
    %v978 = vld [vmem:[%s963 + $0x38] sm:$0xf]
    %v979 = vld [vmem:[%s963 + $0x3c] sm:$0xf]
    %v996 = vunpack.c.l.b16 %v947
    %v997 = vunpack.c.l.b16 %v948
    %v998 = vunpack.c.l.b16 %v949
    %v999 = vunpack.c.l.b16 %v950
    %v1000 = vunpack.c.l.b16 %v951
    %v1001 = vunpack.c.l.b16 %v952
    %v1002 = vunpack.c.l.b16 %v953
    %v1003 = vunpack.c.l.b16 %v954
    %v1004 = vunpack.c.l.b16 %v955
    %v1005 = vunpack.c.l.b16 %v956
    %v1006 = vunpack.c.l.b16 %v957
    %v1007 = vunpack.c.l.b16 %v958
    %v1008 = vunpack.c.l.b16 %v959
    %v1009 = vunpack.c.l.b16 %v960
    %v1010 = vunpack.c.l.b16 %v961
    %v1011 = vunpack.c.l.b16 %v962
    %v1012 = vpack.c.b16 %v997, %v996
    %v1013 = vpack.c.b16 %v999, %v998
    %v1014 = vpack.c.b16 %v1001, %v1000
    %v1015 = vpack.c.b16 %v1003, %v1002
    %v1016 = vpack.c.b16 %v1005, %v1004
    %v1017 = vpack.c.b16 %v1007, %v1006
    %v1018 = vpack.c.b16 %v1009, %v1008
    %v1019 = vpack.c.b16 %v1011, %v1010
    %v1044 = vunpack.c.l.b16 %v964
    %v1045 = vunpack.c.l.b16 %v965
    %v1046 = vunpack.c.l.b16 %v966
    %v1047 = vunpack.c.l.b16 %v967
    %v1048 = vunpack.c.l.b16 %v968
    %v1049 = vunpack.c.l.b16 %v969
    %v1050 = vunpack.c.l.b16 %v970
    %v1051 = vunpack.c.l.b16 %v971
    %v1052 = vunpack.c.l.b16 %v972
    %v1053 = vunpack.c.l.b16 %v973
    %v1054 = vunpack.c.l.b16 %v974
    %v1055 = vunpack.c.l.b16 %v975
    %v1056 = vunpack.c.l.b16 %v976
    %v1057 = vunpack.c.l.b16 %v977
    %v1058 = vunpack.c.l.b16 %v978
    %v1059 = vunpack.c.l.b16 %v979
    %v1060 = vpack.c.b16 %v1045, %v1044
    %v1061 = vpack.c.b16 %v1047, %v1046
    %v1062 = vpack.c.b16 %v1049, %v1048
    %v1063 = vpack.c.b16 %v1051, %v1050
    %v1064 = vpack.c.b16 %v1053, %v1052
    %v1065 = vpack.c.b16 %v1055, %v1054
    %v1066 = vpack.c.b16 %v1057, %v1056
    %v1067 = vpack.c.b16 %v1059, %v1058
    %1076 = vmatprep.subr.bf16.mxu0 0
    %1077 = vmatpush1.bf16.msra.mxu0 %v1060
    %1078 = vmatprep.subr.bf16.mxu0 0
    %1079 = vmatpush1.bf16.msra.mxu0 %v1061
    %1080 = vmatprep.subr.bf16.mxu0 0
    %1081 = vmatpush1.bf16.msra.mxu0 %v1062
    %1082 = vmatprep.subr.bf16.mxu0 0
    %1083 = vmatpush1.bf16.msra.mxu0 %v1063
    %1084 = vmatprep.subr.bf16.mxu0 0
    %1085 = vmatpush1.bf16.msra.mxu0 %v1064
    %1086 = vmatprep.subr.bf16.mxu0 0
    %1087 = vmatpush1.bf16.msra.mxu0 %v1065
    %1088 = vmatprep.subr.bf16.mxu0 0
    %1089 = vmatpush1.bf16.msra.mxu0 %v1066
    %1090 = vmatprep.subr.bf16.mxu0 0
    %1091 = vmatpush1.bf16.msra.mxu0 %v1067
    %1092 = vmatprep.subr.bf16.mxu0 0
    %1093 = vmatpush1.bf16.msra.mxu0 0
    %1094 = vmatprep.subr.bf16.mxu0 0
    %1095 = vmatpush1.bf16.msra.mxu0 0
    %1096 = vmatprep.subr.bf16.mxu0 0
    %1097 = vmatpush1.bf16.msra.mxu0 0
    %1098 = vmatprep.subr.bf16.mxu0 0
    %1099 = vmatpush1.bf16.msra.mxu0 0
    %1100 = vmatprep.subr.bf16.mxu0 0
    %1101 = vmatpush1.bf16.msra.mxu0 0
    %1102 = vmatprep.subr.bf16.mxu0 0
    %1103 = vmatpush1.bf16.msra.mxu0 0
    %1104 = vmatprep.subr.bf16.mxu0 0
    %1105 = vmatpush1.bf16.msra.mxu0 0
    %1106 = vmatprep.subr.bf16.mxu0 0
    %1107 = vmatpush1.bf16.msra.mxu0 0
    %1108 = vmatprep.mubr.bf16.mxu0 0
    %1109 = vmatmul.mubr.bf16.gmra.mrb[0].mxu0 %v1012
    %v1110 = vpop.f32.mrb[0].mxu0
    %v1111 = vadd.f32 0.0, %v1110
    %v1112 = vpop.f32.mrb[0].mxu0
    %v1113 = vpop.f32.mrb[0].mxu0
    %v1114 = vadd.f32 0.0, %v1113
    %v1115 = vpop.f32.mrb[0].mxu0
    %1116 = vmatprep.mubr.bf16.mxu0 0
    %1117 = vmatmul.mubr.bf16.gmra.mrb[0].mxu0 %v1013
    %v1118 = vpop.f32.mrb[0].mxu0
    %v1119 = vadd.f32 0.0, %v1118
    %v1120 = vpop.f32.mrb[0].mxu0
    %v1121 = vpop.f32.mrb[0].mxu0
    %v1122 = vadd.f32 0.0, %v1121
    %v1123 = vpop.f32.mrb[0].mxu0
    %1124 = vmatprep.mubr.bf16.mxu0 0
    %1125 = vmatmul.mubr.bf16.gmra.mrb[0].mxu0 %v1014
    %v1126 = vpop.f32.mrb[0].mxu0
    %v1127 = vadd.f32 0.0, %v1126
    %v1128 = vpop.f32.mrb[0].mxu0
    %v1129 = vpop.f32.mrb[0].mxu0
    %v1130 = vadd.f32 0.0, %v1129
    %v1131 = vpop.f32.mrb[0].mxu0
    %1132 = vmatprep.mubr.bf16.mxu0 0
    %1133 = vmatmul.mubr.bf16.gmra.mrb[0].mxu0 %v1015
    %v1134 = vpop.f32.mrb[0].mxu0
    %v1135 = vadd.f32 0.0, %v1134
    %v1136 = vpop.f32.mrb[0].mxu0
    %v1137 = vpop.f32.mrb[0].mxu0
    %v1138 = vadd.f32 0.0, %v1137
    %v1139 = vpop.f32.mrb[0].mxu0
    %1140 = vmatprep.mubr.bf16.mxu0 0
    %1141 = vmatmul.mubr.bf16.gmra.mrb[0].mxu0 %v1016
    %v1142 = vpop.f32.mrb[0].mxu0
    %v1143 = vadd.f32 0.0, %v1142
    %v1144 = vpop.f32.mrb[0].mxu0
    %v1145 = vpop.f32.mrb[0].mxu0
    %v1146 = vadd.f32 0.0, %v1145
    %v1147 = vpop.f32.mrb[0].mxu0
    %1148 = vmatprep.mubr.bf16.mxu0 0
    %1149 = vmatmul.mubr.bf16.gmra.mrb[0].mxu0 %v1017
    %v1150 = vpop.f32.mrb[0].mxu0
    %v1151 = vadd.f32 0.0, %v1150
    %v1152 = vpop.f32.mrb[0].mxu0
    %v1153 = vpop.f32.mrb[0].mxu0
    %v1154 = vadd.f32 0.0, %v1153
    %v1155 = vpop.f32.mrb[0].mxu0
    %1156 = vmatprep.mubr.bf16.mxu0 0
    %1157 = vmatmul.mubr.bf16.gmra.mrb[0].mxu0 %v1018
    %v1158 = vpop.f32.mrb[0].mxu0
    %v1159 = vadd.f32 0.0, %v1158
    %v1160 = vpop.f32.mrb[0].mxu0
    %v1161 = vpop.f32.mrb[0].mxu0
    %v1162 = vadd.f32 0.0, %v1161
    %v1163 = vpop.f32.mrb[0].mxu0
    %1164 = vmatprep.mubr.bf16.mxu0 0
    %1165 = vmatmul.mubr.bf16.gmra.mrb[0].mxu0 %v1019
    %v1166 = vpop.f32.mrb[0].mxu0
    %v1167 = vadd.f32 0.0, %v1166
    %v1168 = vpop.f32.mrb[0].mxu0
    %v1169 = vpop.f32.mrb[0].mxu0
    %v1170 = vadd.f32 0.0, %v1169
    %v1171 = vpop.f32.mrb[0].mxu0
    %1172 = vdwg.mxu0
    %v1173 = vadd.f32 %v930, %v1111
    %v1174 = vadd.f32 %v931, %v1114
    %v1175 = vadd.f32 %v932, %v1119
    %v1176 = vadd.f32 %v933, %v1122
    %v1177 = vadd.f32 %v934, %v1127
    %v1178 = vadd.f32 %v935, %v1130
    %v1179 = vadd.f32 %v936, %v1135
    %v1180 = vadd.f32 %v937, %v1138
    %v1181 = vadd.f32 %v938, %v1143
    %v1182 = vadd.f32 %v939, %v1146
    %v1183 = vadd.f32 %v940, %v1151
    %v1184 = vadd.f32 %v941, %v1154
    %v1185 = vadd.f32 %v942, %v1159
    %v1186 = vadd.f32 %v943, %v1162
    %v1187 = vadd.f32 %v944, %v1167
    %v1188 = vadd.f32 %v945, %v1170
    %s1189 = scalar_lea.vmem %s0, 216
    %v1190 = vld [vmem:[%s1189] sm:$0xf]
    %v1191 = vld [vmem:[%s1189 + $0x8] sm:$0xf]
    %v1192 = vld [vmem:[%s1189 + $0x10] sm:$0xf]
    %v1193 = vld [vmem:[%s1189 + $0x18] sm:$0xf]
    %v1194 = vld [vmem:[%s1189 + $0x20] sm:$0xf]
    %v1195 = vld [vmem:[%s1189 + $0x28] sm:$0xf]
    %v1196 = vld [vmem:[%s1189 + $0x30] sm:$0xf]
    %v1197 = vld [vmem:[%s1189 + $0x38] sm:$0xf]
    %v1198 = vld [vmem:[%s1189 + $0x120] sm:$0xf]
    %v1199 = vld [vmem:[%s1189 + $0x128] sm:$0xf]
    %v1200 = vld [vmem:[%s1189 + $0x130] sm:$0xf]
    %v1201 = vld [vmem:[%s1189 + $0x138] sm:$0xf]
    %v1202 = vld [vmem:[%s1189 + $0x140] sm:$0xf]
    %v1203 = vld [vmem:[%s1189 + $0x148] sm:$0xf]
    %v1204 = vld [vmem:[%s1189 + $0x150] sm:$0xf]
    %v1205 = vld [vmem:[%s1189 + $0x158] sm:$0xf]
    %s1206 = scalar_lea.vmem %s1, 256
    %v1207 = vld [vmem:[%s1206] sm:$0xf]
    %v1208 = vld [vmem:[%s1206 + $0x4] sm:$0xf]
    %v1209 = vld [vmem:[%s1206 + $0x8] sm:$0xf]
    %v1210 = vld [vmem:[%s1206 + $0xc] sm:$0xf]
    %v1211 = vld [vmem:[%s1206 + $0x10] sm:$0xf]
    %v1212 = vld [vmem:[%s1206 + $0x14] sm:$0xf]
    %v1213 = vld [vmem:[%s1206 + $0x18] sm:$0xf]
    %v1214 = vld [vmem:[%s1206 + $0x1c] sm:$0xf]
    %v1215 = vld [vmem:[%s1206 + $0x20] sm:$0xf]
    %v1216 = vld [vmem:[%s1206 + $0x24] sm:$0xf]
    %v1217 = vld [vmem:[%s1206 + $0x28] sm:$0xf]
    %v1218 = vld [vmem:[%s1206 + $0x2c] sm:$0xf]
    %v1219 = vld [vmem:[%s1206 + $0x30] sm:$0xf]
    %v1220 = vld [vmem:[%s1206 + $0x34] sm:$0xf]
    %v1221 = vld [vmem:[%s1206 + $0x38] sm:$0xf]
    %v1222 = vld [vmem:[%s1206 + $0x3c] sm:$0xf]
    %v1239 = vunpack.c.l.b16 %v1190
    %v1240 = vunpack.c.l.b16 %v1191
    %v1241 = vunpack.c.l.b16 %v1192
    %v1242 = vunpack.c.l.b16 %v1193
    %v1243 = vunpack.c.l.b16 %v1194
    %v1244 = vunpack.c.l.b16 %v1195
    %v1245 = vunpack.c.l.b16 %v1196
    %v1246 = vunpack.c.l.b16 %v1197
    %v1247 = vunpack.c.l.b16 %v1198
    %v1248 = vunpack.c.l.b16 %v1199
    %v1249 = vunpack.c.l.b16 %v1200
    %v1250 = vunpack.c.l.b16 %v1201
    %v1251 = vunpack.c.l.b16 %v1202
    %v1252 = vunpack.c.l.b16 %v1203
    %v1253 = vunpack.c.l.b16 %v1204
    %v1254 = vunpack.c.l.b16 %v1205
    %v1255 = vpack.c.b16 %v1240, %v1239
    %v1256 = vpack.c.b16 %v1242, %v1241
    %v1257 = vpack.c.b16 %v1244, %v1243
    %v1258 = vpack.c.b16 %v1246, %v1245
    %v1259 = vpack.c.b16 %v1248, %v1247
    %v1260 = vpack.c.b16 %v1250, %v1249
    %v1261 = vpack.c.b16 %v1252, %v1251
    %v1262 = vpack.c.b16 %v1254, %v1253
    %v1287 = vunpack.c.l.b16 %v1207
    %v1288 = vunpack.c.l.b16 %v1208
    %v1289 = vunpack.c.l.b16 %v1209
    %v1290 = vunpack.c.l.b16 %v1210
    %v1291 = vunpack.c.l.b16 %v1211
    %v1292 = vunpack.c.l.b16 %v1212
    %v1293 = vunpack.c.l.b16 %v1213
    %v1294 = vunpack.c.l.b16 %v1214
    %v1295 = vunpack.c.l.b16 %v1215
    %v1296 = vunpack.c.l.b16 %v1216
    %v1297 = vunpack.c.l.b16 %v1217
    %v1298 = vunpack.c.l.b16 %v1218
    %v1299 = vunpack.c.l.b16 %v1219
    %v1300 = vunpack.c.l.b16 %v1220
    %v1301 = vunpack.c.l.b16 %v1221
    %v1302 = vunpack.c.l.b16 %v1222
    %v1303 = vpack.c.b16 %v1288, %v1287
    %v1304 = vpack.c.b16 %v1290, %v1289
    %v1305 = vpack.c.b16 %v1292, %v1291
    %v1306 = vpack.c.b16 %v1294, %v1293
    %v1307 = vpack.c.b16 %v1296, %v1295
    %v1308 = vpack.c.b16 %v1298, %v1297
    %v1309 = vpack.c.b16 %v1300, %v1299
    %v1310 = vpack.c.b16 %v1302, %v1301
    %1319 = vmatprep.subr.bf16.mxu0 0
    %1320 = vmatpush1.bf16.msra.mxu0 %v1303
    %1321 = vmatprep.subr.bf16.mxu0 0
    %1322 = vmatpush1.bf16.msra.mxu0 %v1304
    %1323 = vmatprep.subr.bf16.mxu0 0
    %1324 = vmatpush1.bf16.msra.mxu0 %v1305
    %1325 = vmatprep.subr.bf16.mxu0 0
    %1326 = vmatpush1.bf16.msra.mxu0 %v1306
    %1327 = vmatprep.subr.bf16.mxu0 0
    %1328 = vmatpush1.bf16.msra.mxu0 %v1307
    %1329 = vmatprep.subr.bf16.mxu0 0
    %1330 = vmatpush1.bf16.msra.mxu0 %v1308
    %1331 = vmatprep.subr.bf16.mxu0 0
    %1332 = vmatpush1.bf16.msra.mxu0 %v1309
    %1333 = vmatprep.subr.bf16.mxu0 0
    %1334 = vmatpush1.bf16.msra.mxu0 %v1310
    %1335 = vmatprep.subr.bf16.mxu0 0
    %1336 = vmatpush1.bf16.msra.mxu0 0
    %1337 = vmatprep.subr.bf16.mxu0 0
    %1338 = vmatpush1.bf16.msra.mxu0 0
    %1339 = vmatprep.subr.bf16.mxu0 0
    %1340 = vmatpush1.bf16.msra.mxu0 0
    %1341 = vmatprep.subr.bf16.mxu0 0
    %1342 = vmatpush1.bf16.msra.mxu0 0
    %1343 = vmatprep.subr.bf16.mxu0 0
    %1344 = vmatpush1.bf16.msra.mxu0 0
    %1345 = vmatprep.subr.bf16.mxu0 0
    %1346 = vmatpush1.bf16.msra.mxu0 0
    %1347 = vmatprep.subr.bf16.mxu0 0
    %1348 = vmatpush1.bf16.msra.mxu0 0
    %1349 = vmatprep.subr.bf16.mxu0 0
    %1350 = vmatpush1.bf16.msra.mxu0 0
    %1351 = vmatprep.mubr.bf16.mxu0 0
    %1352 = vmatmul.mubr.bf16.gmra.mrb[0].mxu0 %v1255
    %v1353 = vpop.f32.mrb[0].mxu0
    %v1354 = vadd.f32 0.0, %v1353
    %v1355 = vpop.f32.mrb[0].mxu0
    %v1356 = vpop.f32.mrb[0].mxu0
    %v1357 = vadd.f32 0.0, %v1356
    %v1358 = vpop.f32.mrb[0].mxu0
    %1359 = vmatprep.mubr.bf16.mxu0 0
    %1360 = vmatmul.mubr.bf16.gmra.mrb[0].mxu0 %v1256
    %v1361 = vpop.f32.mrb[0].mxu0
    %v1362 = vadd.f32 0.0, %v1361
    %v1363 = vpop.f32.mrb[0].mxu0
    %v1364 = vpop.f32.mrb[0].mxu0
    %v1365 = vadd.f32 0.0, %v1364
    %v1366 = vpop.f32.mrb[0].mxu0
    %1367 = vmatprep.mubr.bf16.mxu0 0
    %1368 = vmatmul.mubr.bf16.gmra.mrb[0].mxu0 %v1257
    %v1369 = vpop.f32.mrb[0].mxu0
    %v1370 = vadd.f32 0.0, %v1369
    %v1371 = vpop.f32.mrb[0].mxu0
    %v1372 = vpop.f32.mrb[0].mxu0
    %v1373 = vadd.f32 0.0, %v1372
    %v1374 = vpop.f32.mrb[0].mxu0
    %1375 = vmatprep.mubr.bf16.mxu0 0
    %1376 = vmatmul.mubr.bf16.gmra.mrb[0].mxu0 %v1258
    %v1377 = vpop.f32.mrb[0].mxu0
    %v1378 = vadd.f32 0.0, %v1377
    %v1379 = vpop.f32.mrb[0].mxu0
    %v1380 = vpop.f32.mrb[0].mxu0
    %v1381 = vadd.f32 0.0, %v1380
    %v1382 = vpop.f32.mrb[0].mxu0
    %1383 = vmatprep.mubr.bf16.mxu0 0
    %1384 = vmatmul.mubr.bf16.gmra.mrb[0].mxu0 %v1259
    %v1385 = vpop.f32.mrb[0].mxu0
    %v1386 = vadd.f32 0.0, %v1385
    %v1387 = vpop.f32.mrb[0].mxu0
    %v1388 = vpop.f32.mrb[0].mxu0
    %v1389 = vadd.f32 0.0, %v1388
    %v1390 = vpop.f32.mrb[0].mxu0
    %1391 = vmatprep.mubr.bf16.mxu0 0
    %1392 = vmatmul.mubr.bf16.gmra.mrb[0].mxu0 %v1260
    %v1393 = vpop.f32.mrb[0].mxu0
    %v1394 = vadd.f32 0.0, %v1393
    %v1395 = vpop.f32.mrb[0].mxu0
    %v1396 = vpop.f32.mrb[0].mxu0
    %v1397 = vadd.f32 0.0, %v1396
    %v1398 = vpop.f32.mrb[0].mxu0
    %1399 = vmatprep.mubr.bf16.mxu0 0
    %1400 = vmatmul.mubr.bf16.gmra.mrb[0].mxu0 %v1261
    %v1401 = vpop.f32.mrb[0].mxu0
    %v1402 = vadd.f32 0.0, %v1401
    %v1403 = vpop.f32.mrb[0].mxu0
    %v1404 = vpop.f32.mrb[0].mxu0
    %v1405 = vadd.f32 0.0, %v1404
    %v1406 = vpop.f32.mrb[0].mxu0
    %1407 = vmatprep.mubr.bf16.mxu0 0
    %1408 = vmatmul.mubr.bf16.gmra.mrb[0].mxu0 %v1262
    %v1409 = vpop.f32.mrb[0].mxu0
    %v1410 = vadd.f32 0.0, %v1409
    %v1411 = vpop.f32.mrb[0].mxu0
    %v1412 = vpop.f32.mrb[0].mxu0
    %v1413 = vadd.f32 0.0, %v1412
    %v1414 = vpop.f32.mrb[0].mxu0
    %1415 = vdwg.mxu0
    %v1416 = vadd.f32 %v1173, %v1354
    %v1417 = vadd.f32 %v1174, %v1357
    %v1418 = vadd.f32 %v1175, %v1362
    %v1419 = vadd.f32 %v1176, %v1365
    %v1420 = vadd.f32 %v1177, %v1370
    %v1421 = vadd.f32 %v1178, %v1373
    %v1422 = vadd.f32 %v1179, %v1378
    %v1423 = vadd.f32 %v1180, %v1381
    %v1424 = vadd.f32 %v1181, %v1386
    %v1425 = vadd.f32 %v1182, %v1389
    %v1426 = vadd.f32 %v1183, %v1394
    %v1427 = vadd.f32 %v1184, %v1397
    %v1428 = vadd.f32 %v1185, %v1402
    %v1429 = vadd.f32 %v1186, %v1405
    %v1430 = vadd.f32 %v1187, %v1410
    %v1431 = vadd.f32 %v1188, %v1413
    %v1432 = vld [vmem:[%s946] sm:$0xf]
    %v1433 = vld [vmem:[%s946 + $0x4] sm:$0x1]
    %v1434 = vld [vmem:[%s946 + $0x8] sm:$0xf]
    %v1435 = vld [vmem:[%s946 + $0xc] sm:$0x1]
    %v1436 = vld [vmem:[%s946 + $0x10] sm:$0xf]
    %v1437 = vld [vmem:[%s946 + $0x14] sm:$0x1]
    %v1438 = vld [vmem:[%s946 + $0x18] sm:$0xf]
    %v1439 = vld [vmem:[%s946 + $0x1c] sm:$0x1]
    %v1440 = vld [vmem:[%s946 + $0x20] sm:$0xf]
    %v1441 = vld [vmem:[%s946 + $0x24] sm:$0x1]
    %v1442 = vld [vmem:[%s946 + $0x28] sm:$0xf]
    %v1443 = vld [vmem:[%s946 + $0x2c] sm:$0x1]
    %v1444 = vld [vmem:[%s946 + $0x30] sm:$0xf]
    %v1445 = vld [vmem:[%s946 + $0x34] sm:$0x1]
    %v1446 = vld [vmem:[%s946 + $0x38] sm:$0xf]
    %v1447 = vld [vmem:[%s946 + $0x3c] sm:$0x1]
    %v1448 = vld [vmem:[%s946 + $0x120] sm:$0xf]
    %v1449 = vld [vmem:[%s946 + $0x124] sm:$0x1]
    %v1450 = vld [vmem:[%s946 + $0x128] sm:$0xf]
    %v1451 = vld [vmem:[%s946 + $0x12c] sm:$0x1]
    %v1452 = vld [vmem:[%s946 + $0x130] sm:$0xf]
    %v1453 = vld [vmem:[%s946 + $0x134] sm:$0x1]
    %v1454 = vld [vmem:[%s946 + $0x138] sm:$0xf]
    %v1455 = vld [vmem:[%s946 + $0x13c] sm:$0x1]
    %v1456 = vld [vmem:[%s946 + $0x140] sm:$0xf]
    %v1457 = vld [vmem:[%s946 + $0x144] sm:$0x1]
    %v1458 = vld [vmem:[%s946 + $0x148] sm:$0xf]
    %v1459 = vld [vmem:[%s946 + $0x14c] sm:$0x1]
    %v1460 = vld [vmem:[%s946 + $0x150] sm:$0xf]
    %v1461 = vld [vmem:[%s946 + $0x154] sm:$0x1]
    %v1462 = vld [vmem:[%s946 + $0x158] sm:$0xf]
    %v1463 = vld [vmem:[%s946 + $0x15c] sm:$0x1]
    %v1465 = vshrl.u32 %v1432, 16
    %v1467 = vrot.slane %v1465, 4
    %v1468 = vshll.u32 %v1432, 16
    %v1470 = vrot.slane %v1468, 5
    %v1471 = vor.u32 %v1467, %v1470
    %v1472 = vrot.slane %v1471, 4
    %v1474 = vshll.u32 %v1433, 16
    %v1476 = vrot.slane %v1474, 5
    %v1477 = vsel %vm511, %v1472, %v1476
    %v1479 = vshrl.u32 %v1434, 16
    %v1481 = vrot.slane %v1479, 4
    %v1482 = vshll.u32 %v1434, 16
    %v1484 = vrot.slane %v1482, 5
    %v1485 = vor.u32 %v1481, %v1484
    %v1486 = vrot.slane %v1485, 4
    %v1488 = vshll.u32 %v1435, 16
    %v1490 = vrot.slane %v1488, 5
    %v1491 = vsel %vm511, %v1486, %v1490
    %v1493 = vshrl.u32 %v1436, 16
    %v1495 = vrot.slane %v1493, 4
    %v1496 = vshll.u32 %v1436, 16
    %v1498 = vrot.slane %v1496, 5
    %v1499 = vor.u32 %v1495, %v1498
    %v1500 = vrot.slane %v1499, 4
    %v1502 = vshll.u32 %v1437, 16
    %v1504 = vrot.slane %v1502, 5
    %v1505 = vsel %vm511, %v1500, %v1504
    %v1507 = vshrl.u32 %v1438, 16
    %v1509 = vrot.slane %v1507, 4
    %v1510 = vshll.u32 %v1438, 16
    %v1512 = vrot.slane %v1510, 5
    %v1513 = vor.u32 %v1509, %v1512
    %v1514 = vrot.slane %v1513, 4
    %v1516 = vshll.u32 %v1439, 16
    %v1518 = vrot.slane %v1516, 5
    %v1519 = vsel %vm511, %v1514, %v1518
    %v1521 = vshrl.u32 %v1440, 16
    %v1523 = vrot.slane %v1521, 4
    %v1524 = vshll.u32 %v1440, 16
    %v1526 = vrot.slane %v1524, 5
    %v1527 = vor.u32 %v1523, %v1526
    %v1528 = vrot.slane %v1527, 4
    %v1530 = vshll.u32 %v1441, 16
    %v1532 = vrot.slane %v1530, 5
    %v1533 = vsel %vm511, %v1528, %v1532
    %v1535 = vshrl.u32 %v1442, 16
    %v1537 = vrot.slane %v1535, 4
    %v1538 = vshll.u32 %v1442, 16
    %v1540 = vrot.slane %v1538, 5
    %v1541 = vor.u32 %v1537, %v1540
    %v1542 = vrot.slane %v1541, 4
    %v1544 = vshll.u32 %v1443, 16
    %v1546 = vrot.slane %v1544, 5
    %v1547 = vsel %vm511, %v1542, %v1546
    %v1549 = vshrl.u32 %v1444, 16
    %v1551 = vrot.slane %v1549, 4
    %v1552 = vshll.u32 %v1444, 16
    %v1554 = vrot.slane %v1552, 5
    %v1555 = vor.u32 %v1551, %v1554
    %v1556 = vrot.slane %v1555, 4
    %v1558 = vshll.u32 %v1445, 16
    %v1560 = vrot.slane %v1558, 5
    %v1561 = vsel %vm511, %v1556, %v1560
    %v1563 = vshrl.u32 %v1446, 16
    %v1565 = vrot.slane %v1563, 4
    %v1566 = vshll.u32 %v1446, 16
    %v1568 = vrot.slane %v1566, 5
    %v1569 = vor.u32 %v1565, %v1568
    %v1570 = vrot.slane %v1569, 4
    %v1572 = vshll.u32 %v1447, 16
    %v1574 = vrot.slane %v1572, 5
    %v1575 = vsel %vm511, %v1570, %v1574
    %v1577 = vshrl.u32 %v1448, 16
    %v1579 = vrot.slane %v1577, 4
    %v1580 = vshll.u32 %v1448, 16
    %v1582 = vrot.slane %v1580, 5
    %v1583 = vor.u32 %v1579, %v1582
    %v1584 = vrot.slane %v1583, 4
    %v1586 = vshll.u32 %v1449, 16
    %v1588 = vrot.slane %v1586, 5
    %v1589 = vsel %vm511, %v1584, %v1588
    %v1591 = vshrl.u32 %v1450, 16
    %v1593 = vrot.slane %v1591, 4
    %v1594 = vshll.u32 %v1450, 16
    %v1596 = vrot.slane %v1594, 5
    %v1597 = vor.u32 %v1593, %v1596
    %v1598 = vrot.slane %v1597, 4
    %v1600 = vshll.u32 %v1451, 16
    %v1602 = vrot.slane %v1600, 5
    %v1603 = vsel %vm511, %v1598, %v1602
    %v1605 = vshrl.u32 %v1452, 16
    %v1607 = vrot.slane %v1605, 4
    %v1608 = vshll.u32 %v1452, 16
    %v1610 = vrot.slane %v1608, 5
    %v1611 = vor.u32 %v1607, %v1610
    %v1612 = vrot.slane %v1611, 4
    %v1614 = vshll.u32 %v1453, 16
    %v1616 = vrot.slane %v1614, 5
    %v1617 = vsel %vm511, %v1612, %v1616
    %v1619 = vshrl.u32 %v1454, 16
    %v1621 = vrot.slane %v1619, 4
    %v1622 = vshll.u32 %v1454, 16
    %v1624 = vrot.slane %v1622, 5
    %v1625 = vor.u32 %v1621, %v1624
    %v1626 = vrot.slane %v1625, 4
    %v1628 = vshll.u32 %v1455, 16
    %v1630 = vrot.slane %v1628, 5
    %v1631 = vsel %vm511, %v1626, %v1630
    %v1633 = vshrl.u32 %v1456, 16
    %v1635 = vrot.slane %v1633, 4
    %v1636 = vshll.u32 %v1456, 16
    %v1638 = vrot.slane %v1636, 5
    %v1639 = vor.u32 %v1635, %v1638
    %v1640 = vrot.slane %v1639, 4
    %v1642 = vshll.u32 %v1457, 16
    %v1644 = vrot.slane %v1642, 5
    %v1645 = vsel %vm511, %v1640, %v1644
    %v1647 = vshrl.u32 %v1458, 16
    %v1649 = vrot.slane %v1647, 4
    %v1650 = vshll.u32 %v1458, 16
    %v1652 = vrot.slane %v1650, 5
    %v1653 = vor.u32 %v1649, %v1652
    %v1654 = vrot.slane %v1653, 4
    %v1656 = vshll.u32 %v1459, 16
    %v1658 = vrot.slane %v1656, 5
    %v1659 = vsel %vm511, %v1654, %v1658
    %v1661 = vshrl.u32 %v1460, 16
    %v1663 = vrot.slane %v1661, 4
    %v1664 = vshll.u32 %v1460, 16
    %v1666 = vrot.slane %v1664, 5
    %v1667 = vor.u32 %v1663, %v1666
    %v1668 = vrot.slane %v1667, 4
    %v1670 = vshll.u32 %v1461, 16
    %v1672 = vrot.slane %v1670, 5
    %v1673 = vsel %vm511, %v1668, %v1672
    %v1675 = vshrl.u32 %v1462, 16
    %v1677 = vrot.slane %v1675, 4
    %v1678 = vshll.u32 %v1462, 16
    %v1680 = vrot.slane %v1678, 5
    %v1681 = vor.u32 %v1677, %v1680
    %v1682 = vrot.slane %v1681, 4
    %v1684 = vshll.u32 %v1463, 16
    %v1686 = vrot.slane %v1684, 5
    %v1687 = vsel %vm511, %v1682, %v1686
    %s1688 = scalar_lea.vmem %s1, 320
    %v1689 = vld [vmem:[%s1688] sm:$0xf]
    %v1690 = vld [vmem:[%s1688 + $0x4] sm:$0xf]
    %v1691 = vld [vmem:[%s1688 + $0x8] sm:$0xf]
    %v1692 = vld [vmem:[%s1688 + $0xc] sm:$0xf]
    %v1693 = vld [vmem:[%s1688 + $0x10] sm:$0xf]
    %v1694 = vld [vmem:[%s1688 + $0x14] sm:$0xf]
    %v1695 = vld [vmem:[%s1688 + $0x18] sm:$0xf]
    %v1696 = vld [vmem:[%s1688 + $0x1c] sm:$0xf]
    %v1697 = vld [vmem:[%s1688 + $0x20] sm:$0xf]
    %v1698 = vld [vmem:[%s1688 + $0x24] sm:$0xf]
    %v1699 = vld [vmem:[%s1688 + $0x28] sm:$0xf]
    %v1700 = vld [vmem:[%s1688 + $0x2c] sm:$0xf]
    %v1701 = vld [vmem:[%s1688 + $0x30] sm:$0xf]
    %v1702 = vld [vmem:[%s1688 + $0x34] sm:$0xf]
    %v1703 = vld [vmem:[%s1688 + $0x38] sm:$0xf]
    %v1704 = vld [vmem:[%s1688 + $0x3c] sm:$0xf]
    %v1705 = vunpack.c.l.b16 %v1477
    %v1706 = vunpack.c.l.b16 %v1491
    %v1707 = vunpack.c.l.b16 %v1505
    %v1708 = vunpack.c.l.b16 %v1519
    %v1709 = vunpack.c.l.b16 %v1533
    %v1710 = vunpack.c.l.b16 %v1547
    %v1711 = vunpack.c.l.b16 %v1561
    %v1712 = vunpack.c.l.b16 %v1575
    %v1713 = vunpack.c.l.b16 %v1589
    %v1714 = vunpack.c.l.b16 %v1603
    %v1715 = vunpack.c.l.b16 %v1617
    %v1716 = vunpack.c.l.b16 %v1631
    %v1717 = vunpack.c.l.b16 %v1645
    %v1718 = vunpack.c.l.b16 %v1659
    %v1719 = vunpack.c.l.b16 %v1673
    %v1720 = vunpack.c.l.b16 %v1687
    %v1721 = vpack.c.b16 %v1706, %v1705
    %v1722 = vpack.c.b16 %v1708, %v1707
    %v1723 = vpack.c.b16 %v1710, %v1709
    %v1724 = vpack.c.b16 %v1712, %v1711
    %v1725 = vpack.c.b16 %v1714, %v1713
    %v1726 = vpack.c.b16 %v1716, %v1715
    %v1727 = vpack.c.b16 %v1718, %v1717
    %v1728 = vpack.c.b16 %v1720, %v1719
    %v1753 = vunpack.c.l.b16 %v1689
    %v1754 = vunpack.c.l.b16 %v1690
    %v1755 = vunpack.c.l.b16 %v1691
    %v1756 = vunpack.c.l.b16 %v1692
    %v1757 = vunpack.c.l.b16 %v1693
    %v1758 = vunpack.c.l.b16 %v1694
    %v1759 = vunpack.c.l.b16 %v1695
    %v1760 = vunpack.c.l.b16 %v1696
    %v1761 = vunpack.c.l.b16 %v1697
    %v1762 = vunpack.c.l.b16 %v1698
    %v1763 = vunpack.c.l.b16 %v1699
    %v1764 = vunpack.c.l.b16 %v1700
    %v1765 = vunpack.c.l.b16 %v1701
    %v1766 = vunpack.c.l.b16 %v1702
    %v1767 = vunpack.c.l.b16 %v1703
    %v1768 = vunpack.c.l.b16 %v1704
    %v1769 = vpack.c.b16 %v1754, %v1753
    %v1770 = vpack.c.b16 %v1756, %v1755
    %v1771 = vpack.c.b16 %v1758, %v1757
    %v1772 = vpack.c.b16 %v1760, %v1759
    %v1773 = vpack.c.b16 %v1762, %v1761
    %v1774 = vpack.c.b16 %v1764, %v1763
    %v1775 = vpack.c.b16 %v1766, %v1765
    %v1776 = vpack.c.b16 %v1768, %v1767
    %1785 = vmatprep.subr.bf16.mxu0 0
    %1786 = vmatpush1.bf16.msra.mxu0 %v1769
    %1787 = vmatprep.subr.bf16.mxu0 0
    %1788 = vmatpush1.bf16.msra.mxu0 %v1770
    %1789 = vmatprep.subr.bf16.mxu0 0
    %1790 = vmatpush1.bf16.msra.mxu0 %v1771
    %1791 = vmatprep.subr.bf16.mxu0 0
    %1792 = vmatpush1.bf16.msra.mxu0 %v1772
    %1793 = vmatprep.subr.bf16.mxu0 0
    %1794 = vmatpush1.bf16.msra.mxu0 %v1773
    %1795 = vmatprep.subr.bf16.mxu0 0
    %1796 = vmatpush1.bf16.msra.mxu0 %v1774
    %1797 = vmatprep.subr.bf16.mxu0 0
    %1798 = vmatpush1.bf16.msra.mxu0 %v1775
    %1799 = vmatprep.subr.bf16.mxu0 0
    %1800 = vmatpush1.bf16.msra.mxu0 %v1776
    %1801 = vmatprep.subr.bf16.mxu0 0
    %1802 = vmatpush1.bf16.msra.mxu0 0
    %1803 = vmatprep.subr.bf16.mxu0 0
    %1804 = vmatpush1.bf16.msra.mxu0 0
    %1805 = vmatprep.subr.bf16.mxu0 0
    %1806 = vmatpush1.bf16.msra.mxu0 0
    %1807 = vmatprep.subr.bf16.mxu0 0
    %1808 = vmatpush1.bf16.msra.mxu0 0
    %1809 = vmatprep.subr.bf16.mxu0 0
    %1810 = vmatpush1.bf16.msra.mxu0 0
    %1811 = vmatprep.subr.bf16.mxu0 0
    %1812 = vmatpush1.bf16.msra.mxu0 0
    %1813 = vmatprep.subr.bf16.mxu0 0
    %1814 = vmatpush1.bf16.msra.mxu0 0
    %1815 = vmatprep.subr.bf16.mxu0 0
    %1816 = vmatpush1.bf16.msra.mxu0 0
    %1817 = vmatprep.mubr.bf16.mxu0 0
    %1818 = vmatmul.mubr.bf16.gmra.mrb[0].mxu0 %v1721
    %v1819 = vpop.f32.mrb[0].mxu0
    %v1820 = vadd.f32 0.0, %v1819
    %v1821 = vpop.f32.mrb[0].mxu0
    %v1822 = vpop.f32.mrb[0].mxu0
    %v1823 = vadd.f32 0.0, %v1822
    %v1824 = vpop.f32.mrb[0].mxu0
    %1825 = vmatprep.mubr.bf16.mxu0 0
    %1826 = vmatmul.mubr.bf16.gmra.mrb[0].mxu0 %v1722
    %v1827 = vpop.f32.mrb[0].mxu0
    %v1828 = vadd.f32 0.0, %v1827
    %v1829 = vpop.f32.mrb[0].mxu0
    %v1830 = vpop.f32.mrb[0].mxu0
    %v1831 = vadd.f32 0.0, %v1830
    %v1832 = vpop.f32.mrb[0].mxu0
    %1833 = vmatprep.mubr.bf16.mxu0 0
    %1834 = vmatmul.mubr.bf16.gmra.mrb[0].mxu0 %v1723
    %v1835 = vpop.f32.mrb[0].mxu0
    %v1836 = vadd.f32 0.0, %v1835
    %v1837 = vpop.f32.mrb[0].mxu0
    %v1838 = vpop.f32.mrb[0].mxu0
    %v1839 = vadd.f32 0.0, %v1838
    %v1840 = vpop.f32.mrb[0].mxu0
    %1841 = vmatprep.mubr.bf16.mxu0 0
    %1842 = vmatmul.mubr.bf16.gmra.mrb[0].mxu0 %v1724
    %v1843 = vpop.f32.mrb[0].mxu0
    %v1844 = vadd.f32 0.0, %v1843
    %v1845 = vpop.f32.mrb[0].mxu0
    %v1846 = vpop.f32.mrb[0].mxu0
    %v1847 = vadd.f32 0.0, %v1846
    %v1848 = vpop.f32.mrb[0].mxu0
    %1849 = vmatprep.mubr.bf16.mxu0 0
    %1850 = vmatmul.mubr.bf16.gmra.mrb[0].mxu0 %v1725
    %v1851 = vpop.f32.mrb[0].mxu0
    %v1852 = vadd.f32 0.0, %v1851
    %v1853 = vpop.f32.mrb[0].mxu0
    %v1854 = vpop.f32.mrb[0].mxu0
    %v1855 = vadd.f32 0.0, %v1854
    %v1856 = vpop.f32.mrb[0].mxu0
    %1857 = vmatprep.mubr.bf16.mxu0 0
    %1858 = vmatmul.mubr.bf16.gmra.mrb[0].mxu0 %v1726
    %v1859 = vpop.f32.mrb[0].mxu0
    %v1860 = vadd.f32 0.0, %v1859
    %v1861 = vpop.f32.mrb[0].mxu0
    %v1862 = vpop.f32.mrb[0].mxu0
    %v1863 = vadd.f32 0.0, %v1862
    %v1864 = vpop.f32.mrb[0].mxu0
    %1865 = vmatprep.mubr.bf16.mxu0 0
    %1866 = vmatmul.mubr.bf16.gmra.mrb[0].mxu0 %v1727
    %v1867 = vpop.f32.mrb[0].mxu0
    %v1868 = vadd.f32 0.0, %v1867
    %v1869 = vpop.f32.mrb[0].mxu0
    %v1870 = vpop.f32.mrb[0].mxu0
    %v1871 = vadd.f32 0.0, %v1870
    %v1872 = vpop.f32.mrb[0].mxu0
    %1873 = vmatprep.mubr.bf16.mxu0 0
    %1874 = vmatmul.mubr.bf16.gmra.mrb[0].mxu0 %v1728
    %v1875 = vpop.f32.mrb[0].mxu0
    %v1876 = vadd.f32 0.0, %v1875
    %v1877 = vpop.f32.mrb[0].mxu0
    %v1878 = vpop.f32.mrb[0].mxu0
    %v1879 = vadd.f32 0.0, %v1878
    %v1880 = vpop.f32.mrb[0].mxu0
    %1881 = vdwg.mxu0
    %v1882 = vadd.f32 %v1416, %v1820
    %v1883 = vadd.f32 %v1417, %v1823
    %v1884 = vadd.f32 %v1418, %v1828
    %v1885 = vadd.f32 %v1419, %v1831
    %v1886 = vadd.f32 %v1420, %v1836
    %v1887 = vadd.f32 %v1421, %v1839
    %v1888 = vadd.f32 %v1422, %v1844
    %v1889 = vadd.f32 %v1423, %v1847
    %v1890 = vadd.f32 %v1424, %v1852
    %v1891 = vadd.f32 %v1425, %v1855
    %v1892 = vadd.f32 %v1426, %v1860
    %v1893 = vadd.f32 %v1427, %v1863
    %v1894 = vadd.f32 %v1428, %v1868
    %v1895 = vadd.f32 %v1429, %v1871
    %v1896 = vadd.f32 %v1430, %v1876
    %v1897 = vadd.f32 %v1431, %v1879
    %s1898 = scalar_lea.vmem %s0, 8
    %v1899 = vld [vmem:[%s1898] sm:$0xf]
    %v1900 = vld [vmem:[%s1898 + $0x8] sm:$0xf]
    %v1901 = vld [vmem:[%s1898 + $0x10] sm:$0xf]
    %v1902 = vld [vmem:[%s1898 + $0x18] sm:$0xf]
    %v1903 = vld [vmem:[%s1898 + $0x20] sm:$0xf]
    %v1904 = vld [vmem:[%s1898 + $0x28] sm:$0xf]
    %v1905 = vld [vmem:[%s1898 + $0x30] sm:$0xf]
    %v1906 = vld [vmem:[%s1898 + $0x38] sm:$0xf]
    %v1907 = vld [vmem:[%s1898 + $0x120] sm:$0xf]
    %v1908 = vld [vmem:[%s1898 + $0x128] sm:$0xf]
    %v1909 = vld [vmem:[%s1898 + $0x130] sm:$0xf]
    %v1910 = vld [vmem:[%s1898 + $0x138] sm:$0xf]
    %v1911 = vld [vmem:[%s1898 + $0x140] sm:$0xf]
    %v1912 = vld [vmem:[%s1898 + $0x148] sm:$0xf]
    %v1913 = vld [vmem:[%s1898 + $0x150] sm:$0xf]
    %v1914 = vld [vmem:[%s1898 + $0x158] sm:$0xf]
    %s1915 = scalar_lea.vmem %s1, 384
    %v1916 = vld [vmem:[%s1915] sm:$0xf]
    %v1917 = vld [vmem:[%s1915 + $0x4] sm:$0xf]
    %v1918 = vld [vmem:[%s1915 + $0x8] sm:$0xf]
    %v1919 = vld [vmem:[%s1915 + $0xc] sm:$0xf]
    %v1920 = vld [vmem:[%s1915 + $0x10] sm:$0xf]
    %v1921 = vld [vmem:[%s1915 + $0x14] sm:$0xf]
    %v1922 = vld [vmem:[%s1915 + $0x18] sm:$0xf]
    %v1923 = vld [vmem:[%s1915 + $0x1c] sm:$0xf]
    %v1924 = vld [vmem:[%s1915 + $0x20] sm:$0xf]
    %v1925 = vld [vmem:[%s1915 + $0x24] sm:$0xf]
    %v1926 = vld [vmem:[%s1915 + $0x28] sm:$0xf]
    %v1927 = vld [vmem:[%s1915 + $0x2c] sm:$0xf]
    %v1928 = vld [vmem:[%s1915 + $0x30] sm:$0xf]
    %v1929 = vld [vmem:[%s1915 + $0x34] sm:$0xf]
    %v1930 = vld [vmem:[%s1915 + $0x38] sm:$0xf]
    %v1931 = vld [vmem:[%s1915 + $0x3c] sm:$0xf]
    %v1948 = vunpack.c.l.b16 %v1899
    %v1949 = vunpack.c.l.b16 %v1900
    %v1950 = vunpack.c.l.b16 %v1901
    %v1951 = vunpack.c.l.b16 %v1902
    %v1952 = vunpack.c.l.b16 %v1903
    %v1953 = vunpack.c.l.b16 %v1904
    %v1954 = vunpack.c.l.b16 %v1905
    %v1955 = vunpack.c.l.b16 %v1906
    %v1956 = vunpack.c.l.b16 %v1907
    %v1957 = vunpack.c.l.b16 %v1908
    %v1958 = vunpack.c.l.b16 %v1909
    %v1959 = vunpack.c.l.b16 %v1910
    %v1960 = vunpack.c.l.b16 %v1911
    %v1961 = vunpack.c.l.b16 %v1912
    %v1962 = vunpack.c.l.b16 %v1913
    %v1963 = vunpack.c.l.b16 %v1914
    %v1964 = vpack.c.b16 %v1949, %v1948
    %v1965 = vpack.c.b16 %v1951, %v1950
    %v1966 = vpack.c.b16 %v1953, %v1952
    %v1967 = vpack.c.b16 %v1955, %v1954
    %v1968 = vpack.c.b16 %v1957, %v1956
    %v1969 = vpack.c.b16 %v1959, %v1958
    %v1970 = vpack.c.b16 %v1961, %v1960
    %v1971 = vpack.c.b16 %v1963, %v1962
    %v1996 = vunpack.c.l.b16 %v1916
    %v1997 = vunpack.c.l.b16 %v1917
    %v1998 = vunpack.c.l.b16 %v1918
    %v1999 = vunpack.c.l.b16 %v1919
    %v2000 = vunpack.c.l.b16 %v1920
    %v2001 = vunpack.c.l.b16 %v1921
    %v2002 = vunpack.c.l.b16 %v1922
    %v2003 = vunpack.c.l.b16 %v1923
    %v2004 = vunpack.c.l.b16 %v1924
    %v2005 = vunpack.c.l.b16 %v1925
    %v2006 = vunpack.c.l.b16 %v1926
    %v2007 = vunpack.c.l.b16 %v1927
    %v2008 = vunpack.c.l.b16 %v1928
    %v2009 = vunpack.c.l.b16 %v1929
    %v2010 = vunpack.c.l.b16 %v1930
    %v2011 = vunpack.c.l.b16 %v1931
    %v2012 = vpack.c.b16 %v1997, %v1996
    %v2013 = vpack.c.b16 %v1999, %v1998
    %v2014 = vpack.c.b16 %v2001, %v2000
    %v2015 = vpack.c.b16 %v2003, %v2002
    %v2016 = vpack.c.b16 %v2005, %v2004
    %v2017 = vpack.c.b16 %v2007, %v2006
    %v2018 = vpack.c.b16 %v2009, %v2008
    %v2019 = vpack.c.b16 %v2011, %v2010
    %2028 = vmatprep.subr.bf16.mxu0 0
    %2029 = vmatpush1.bf16.msra.mxu0 %v2012
    %2030 = vmatprep.subr.bf16.mxu0 0
    %2031 = vmatpush1.bf16.msra.mxu0 %v2013
    %2032 = vmatprep.subr.bf16.mxu0 0
    %2033 = vmatpush1.bf16.msra.mxu0 %v2014
    %2034 = vmatprep.subr.bf16.mxu0 0
    %2035 = vmatpush1.bf16.msra.mxu0 %v2015
    %2036 = vmatprep.subr.bf16.mxu0 0
    %2037 = vmatpush1.bf16.msra.mxu0 %v2016
    %2038 = vmatprep.subr.bf16.mxu0 0
    %2039 = vmatpush1.bf16.msra.mxu0 %v2017
    %2040 = vmatprep.subr.bf16.mxu0 0
    %2041 = vmatpush1.bf16.msra.mxu0 %v2018
    %2042 = vmatprep.subr.bf16.mxu0 0
    %2043 = vmatpush1.bf16.msra.mxu0 %v2019
    %2044 = vmatprep.subr.bf16.mxu0 0
    %2045 = vmatpush1.bf16.msra.mxu0 0
    %2046 = vmatprep.subr.bf16.mxu0 0
    %2047 = vmatpush1.bf16.msra.mxu0 0
    %2048 = vmatprep.subr.bf16.mxu0 0
    %2049 = vmatpush1.bf16.msra.mxu0 0
    %2050 = vmatprep.subr.bf16.mxu0 0
    %2051 = vmatpush1.bf16.msra.mxu0 0
    %2052 = vmatprep.subr.bf16.mxu0 0
    %2053 = vmatpush1.bf16.msra.mxu0 0
    %2054 = vmatprep.subr.bf16.mxu0 0
    %2055 = vmatpush1.bf16.msra.mxu0 0
    %2056 = vmatprep.subr.bf16.mxu0 0
    %2057 = vmatpush1.bf16.msra.mxu0 0
    %2058 = vmatprep.subr.bf16.mxu0 0
    %2059 = vmatpush1.bf16.msra.mxu0 0
    %2060 = vmatprep.mubr.bf16.mxu0 0
    %2061 = vmatmul.mubr.bf16.gmra.mrb[0].mxu0 %v1964
    %v2062 = vpop.f32.mrb[0].mxu0
    %v2063 = vadd.f32 0.0, %v2062
    %v2064 = vpop.f32.mrb[0].mxu0
    %v2065 = vpop.f32.mrb[0].mxu0
    %v2066 = vadd.f32 0.0, %v2065
    %v2067 = vpop.f32.mrb[0].mxu0
    %2068 = vmatprep.mubr.bf16.mxu0 0
    %2069 = vmatmul.mubr.bf16.gmra.mrb[0].mxu0 %v1965
    %v2070 = vpop.f32.mrb[0].mxu0
    %v2071 = vadd.f32 0.0, %v2070
    %v2072 = vpop.f32.mrb[0].mxu0
    %v2073 = vpop.f32.mrb[0].mxu0
    %v2074 = vadd.f32 0.0, %v2073
    %v2075 = vpop.f32.mrb[0].mxu0
    %2076 = vmatprep.mubr.bf16.mxu0 0
    %2077 = vmatmul.mubr.bf16.gmra.mrb[0].mxu0 %v1966
    %v2078 = vpop.f32.mrb[0].mxu0
    %v2079 = vadd.f32 0.0, %v2078
    %v2080 = vpop.f32.mrb[0].mxu0
    %v2081 = vpop.f32.mrb[0].mxu0
    %v2082 = vadd.f32 0.0, %v2081
    %v2083 = vpop.f32.mrb[0].mxu0
    %2084 = vmatprep.mubr.bf16.mxu0 0
    %2085 = vmatmul.mubr.bf16.gmra.mrb[0].mxu0 %v1967
    %v2086 = vpop.f32.mrb[0].mxu0
    %v2087 = vadd.f32 0.0, %v2086
    %v2088 = vpop.f32.mrb[0].mxu0
    %v2089 = vpop.f32.mrb[0].mxu0
    %v2090 = vadd.f32 0.0, %v2089
    %v2091 = vpop.f32.mrb[0].mxu0
    %2092 = vmatprep.mubr.bf16.mxu0 0
    %2093 = vmatmul.mubr.bf16.gmra.mrb[0].mxu0 %v1968
    %v2094 = vpop.f32.mrb[0].mxu0
    %v2095 = vadd.f32 0.0, %v2094
    %v2096 = vpop.f32.mrb[0].mxu0
    %v2097 = vpop.f32.mrb[0].mxu0
    %v2098 = vadd.f32 0.0, %v2097
    %v2099 = vpop.f32.mrb[0].mxu0
    %2100 = vmatprep.mubr.bf16.mxu0 0
    %2101 = vmatmul.mubr.bf16.gmra.mrb[0].mxu0 %v1969
    %v2102 = vpop.f32.mrb[0].mxu0
    %v2103 = vadd.f32 0.0, %v2102
    %v2104 = vpop.f32.mrb[0].mxu0
    %v2105 = vpop.f32.mrb[0].mxu0
    %v2106 = vadd.f32 0.0, %v2105
    %v2107 = vpop.f32.mrb[0].mxu0
    %2108 = vmatprep.mubr.bf16.mxu0 0
    %2109 = vmatmul.mubr.bf16.gmra.mrb[0].mxu0 %v1970
    %v2110 = vpop.f32.mrb[0].mxu0
    %v2111 = vadd.f32 0.0, %v2110
    %v2112 = vpop.f32.mrb[0].mxu0
    %v2113 = vpop.f32.mrb[0].mxu0
    %v2114 = vadd.f32 0.0, %v2113
    %v2115 = vpop.f32.mrb[0].mxu0
    %2116 = vmatprep.mubr.bf16.mxu0 0
    %2117 = vmatmul.mubr.bf16.gmra.mrb[0].mxu0 %v1971
    %v2118 = vpop.f32.mrb[0].mxu0
    %v2119 = vadd.f32 0.0, %v2118
    %v2120 = vpop.f32.mrb[0].mxu0
    %v2121 = vpop.f32.mrb[0].mxu0
    %v2122 = vadd.f32 0.0, %v2121
    %v2123 = vpop.f32.mrb[0].mxu0
    %2124 = vdwg.mxu0
    %v2125 = vadd.f32 %v1882, %v2063
    %v2126 = vadd.f32 %v1883, %v2066
    %v2127 = vadd.f32 %v1884, %v2071
    %v2128 = vadd.f32 %v1885, %v2074
    %v2129 = vadd.f32 %v1886, %v2079
    %v2130 = vadd.f32 %v1887, %v2082
    %v2131 = vadd.f32 %v1888, %v2087
    %v2132 = vadd.f32 %v1889, %v2090
    %v2133 = vadd.f32 %v1890, %v2095
    %v2134 = vadd.f32 %v1891, %v2098
    %v2135 = vadd.f32 %v1892, %v2103
    %v2136 = vadd.f32 %v1893, %v2106
    %v2137 = vadd.f32 %v1894, %v2111
    %v2138 = vadd.f32 %v1895, %v2114
    %v2139 = vadd.f32 %v1896, %v2119
    %v2140 = vadd.f32 %v1897, %v2122
    %s2141 = scalar_lea.vmem %s0, 80
    %v2142 = vld [vmem:[%s2141] sm:$0xf]
    %v2143 = vld [vmem:[%s2141 + $0x8] sm:$0xf]
    %v2144 = vld [vmem:[%s2141 + $0x10] sm:$0xf]
    %v2145 = vld [vmem:[%s2141 + $0x18] sm:$0xf]
    %v2146 = vld [vmem:[%s2141 + $0x20] sm:$0xf]
    %v2147 = vld [vmem:[%s2141 + $0x28] sm:$0xf]
    %v2148 = vld [vmem:[%s2141 + $0x30] sm:$0xf]
    %v2149 = vld [vmem:[%s2141 + $0x38] sm:$0xf]
    %v2150 = vld [vmem:[%s2141 + $0x120] sm:$0xf]
    %v2151 = vld [vmem:[%s2141 + $0x128] sm:$0xf]
    %v2152 = vld [vmem:[%s2141 + $0x130] sm:$0xf]
    %v2153 = vld [vmem:[%s2141 + $0x138] sm:$0xf]
    %v2154 = vld [vmem:[%s2141 + $0x140] sm:$0xf]
    %v2155 = vld [vmem:[%s2141 + $0x148] sm:$0xf]
    %v2156 = vld [vmem:[%s2141 + $0x150] sm:$0xf]
    %v2157 = vld [vmem:[%s2141 + $0x158] sm:$0xf]
    %s2158 = scalar_lea.vmem %s1, 448
    %v2159 = vld [vmem:[%s2158] sm:$0xf]
    %v2160 = vld [vmem:[%s2158 + $0x4] sm:$0xf]
    %v2161 = vld [vmem:[%s2158 + $0x8] sm:$0xf]
    %v2162 = vld [vmem:[%s2158 + $0xc] sm:$0xf]
    %v2163 = vld [vmem:[%s2158 + $0x10] sm:$0xf]
    %v2164 = vld [vmem:[%s2158 + $0x14] sm:$0xf]
    %v2165 = vld [vmem:[%s2158 + $0x18] sm:$0xf]
    %v2166 = vld [vmem:[%s2158 + $0x1c] sm:$0xf]
    %v2167 = vld [vmem:[%s2158 + $0x20] sm:$0xf]
    %v2168 = vld [vmem:[%s2158 + $0x24] sm:$0xf]
    %v2169 = vld [vmem:[%s2158 + $0x28] sm:$0xf]
    %v2170 = vld [vmem:[%s2158 + $0x2c] sm:$0xf]
    %v2171 = vld [vmem:[%s2158 + $0x30] sm:$0xf]
    %v2172 = vld [vmem:[%s2158 + $0x34] sm:$0xf]
    %v2173 = vld [vmem:[%s2158 + $0x38] sm:$0xf]
    %v2174 = vld [vmem:[%s2158 + $0x3c] sm:$0xf]
    %v2191 = vunpack.c.l.b16 %v2142
    %v2192 = vunpack.c.l.b16 %v2143
    %v2193 = vunpack.c.l.b16 %v2144
    %v2194 = vunpack.c.l.b16 %v2145
    %v2195 = vunpack.c.l.b16 %v2146
    %v2196 = vunpack.c.l.b16 %v2147
    %v2197 = vunpack.c.l.b16 %v2148
    %v2198 = vunpack.c.l.b16 %v2149
    %v2199 = vunpack.c.l.b16 %v2150
    %v2200 = vunpack.c.l.b16 %v2151
    %v2201 = vunpack.c.l.b16 %v2152
    %v2202 = vunpack.c.l.b16 %v2153
    %v2203 = vunpack.c.l.b16 %v2154
    %v2204 = vunpack.c.l.b16 %v2155
    %v2205 = vunpack.c.l.b16 %v2156
    %v2206 = vunpack.c.l.b16 %v2157
    %v2207 = vpack.c.b16 %v2192, %v2191
    %v2208 = vpack.c.b16 %v2194, %v2193
    %v2209 = vpack.c.b16 %v2196, %v2195
    %v2210 = vpack.c.b16 %v2198, %v2197
    %v2211 = vpack.c.b16 %v2200, %v2199
    %v2212 = vpack.c.b16 %v2202, %v2201
    %v2213 = vpack.c.b16 %v2204, %v2203
    %v2214 = vpack.c.b16 %v2206, %v2205
    %v2239 = vunpack.c.l.b16 %v2159
    %v2240 = vunpack.c.l.b16 %v2160
    %v2241 = vunpack.c.l.b16 %v2161
    %v2242 = vunpack.c.l.b16 %v2162
    %v2243 = vunpack.c.l.b16 %v2163
    %v2244 = vunpack.c.l.b16 %v2164
    %v2245 = vunpack.c.l.b16 %v2165
    %v2246 = vunpack.c.l.b16 %v2166
    %v2247 = vunpack.c.l.b16 %v2167
    %v2248 = vunpack.c.l.b16 %v2168
    %v2249 = vunpack.c.l.b16 %v2169
    %v2250 = vunpack.c.l.b16 %v2170
    %v2251 = vunpack.c.l.b16 %v2171
    %v2252 = vunpack.c.l.b16 %v2172
    %v2253 = vunpack.c.l.b16 %v2173
    %v2254 = vunpack.c.l.b16 %v2174
    %v2255 = vpack.c.b16 %v2240, %v2239
    %v2256 = vpack.c.b16 %v2242, %v2241
    %v2257 = vpack.c.b16 %v2244, %v2243
    %v2258 = vpack.c.b16 %v2246, %v2245
    %v2259 = vpack.c.b16 %v2248, %v2247
    %v2260 = vpack.c.b16 %v2250, %v2249
    %v2261 = vpack.c.b16 %v2252, %v2251
    %v2262 = vpack.c.b16 %v2254, %v2253
    %2271 = vmatprep.subr.bf16.mxu0 0
    %2272 = vmatpush1.bf16.msra.mxu0 %v2255
    %2273 = vmatprep.subr.bf16.mxu0 0
    %2274 = vmatpush1.bf16.msra.mxu0 %v2256
    %2275 = vmatprep.subr.bf16.mxu0 0
    %2276 = vmatpush1.bf16.msra.mxu0 %v2257
    %2277 = vmatprep.subr.bf16.mxu0 0
    %2278 = vmatpush1.bf16.msra.mxu0 %v2258
    %2279 = vmatprep.subr.bf16.mxu0 0
    %2280 = vmatpush1.bf16.msra.mxu0 %v2259
    %2281 = vmatprep.subr.bf16.mxu0 0
    %2282 = vmatpush1.bf16.msra.mxu0 %v2260
    %2283 = vmatprep.subr.bf16.mxu0 0
    %2284 = vmatpush1.bf16.msra.mxu0 %v2261
    %2285 = vmatprep.subr.bf16.mxu0 0
    %2286 = vmatpush1.bf16.msra.mxu0 %v2262
    %2287 = vmatprep.subr.bf16.mxu0 0
    %2288 = vmatpush1.bf16.msra.mxu0 0
    %2289 = vmatprep.subr.bf16.mxu0 0
    %2290 = vmatpush1.bf16.msra.mxu0 0
    %2291 = vmatprep.subr.bf16.mxu0 0
    %2292 = vmatpush1.bf16.msra.mxu0 0
    %2293 = vmatprep.subr.bf16.mxu0 0
    %2294 = vmatpush1.bf16.msra.mxu0 0
    %2295 = vmatprep.subr.bf16.mxu0 0
    %2296 = vmatpush1.bf16.msra.mxu0 0
    %2297 = vmatprep.subr.bf16.mxu0 0
    %2298 = vmatpush1.bf16.msra.mxu0 0
    %2299 = vmatprep.subr.bf16.mxu0 0
    %2300 = vmatpush1.bf16.msra.mxu0 0
    %2301 = vmatprep.subr.bf16.mxu0 0
    %2302 = vmatpush1.bf16.msra.mxu0 0
    %2303 = vmatprep.mubr.bf16.mxu0 0
    %2304 = vmatmul.mubr.bf16.gmra.mrb[0].mxu0 %v2207
    %v2305 = vpop.f32.mrb[0].mxu0
    %v2306 = vadd.f32 0.0, %v2305
    %v2307 = vpop.f32.mrb[0].mxu0
    %v2308 = vpop.f32.mrb[0].mxu0
    %v2309 = vadd.f32 0.0, %v2308
    %v2310 = vpop.f32.mrb[0].mxu0
    %2311 = vmatprep.mubr.bf16.mxu0 0
    %2312 = vmatmul.mubr.bf16.gmra.mrb[0].mxu0 %v2208
    %v2313 = vpop.f32.mrb[0].mxu0
    %v2314 = vadd.f32 0.0, %v2313
    %v2315 = vpop.f32.mrb[0].mxu0
    %v2316 = vpop.f32.mrb[0].mxu0
    %v2317 = vadd.f32 0.0, %v2316
    %v2318 = vpop.f32.mrb[0].mxu0
    %2319 = vmatprep.mubr.bf16.mxu0 0
    %2320 = vmatmul.mubr.bf16.gmra.mrb[0].mxu0 %v2209
    %v2321 = vpop.f32.mrb[0].mxu0
    %v2322 = vadd.f32 0.0, %v2321
    %v2323 = vpop.f32.mrb[0].mxu0
    %v2324 = vpop.f32.mrb[0].mxu0
    %v2325 = vadd.f32 0.0, %v2324
    %v2326 = vpop.f32.mrb[0].mxu0
    %2327 = vmatprep.mubr.bf16.mxu0 0
    %2328 = vmatmul.mubr.bf16.gmra.mrb[0].mxu0 %v2210
    %v2329 = vpop.f32.mrb[0].mxu0
    %v2330 = vadd.f32 0.0, %v2329
    %v2331 = vpop.f32.mrb[0].mxu0
    %v2332 = vpop.f32.mrb[0].mxu0
    %v2333 = vadd.f32 0.0, %v2332
    %v2334 = vpop.f32.mrb[0].mxu0
    %2335 = vmatprep.mubr.bf16.mxu0 0
    %2336 = vmatmul.mubr.bf16.gmra.mrb[0].mxu0 %v2211
    %v2337 = vpop.f32.mrb[0].mxu0
    %v2338 = vadd.f32 0.0, %v2337
    %v2339 = vpop.f32.mrb[0].mxu0
    %v2340 = vpop.f32.mrb[0].mxu0
    %v2341 = vadd.f32 0.0, %v2340
    %v2342 = vpop.f32.mrb[0].mxu0
    %2343 = vmatprep.mubr.bf16.mxu0 0
    %2344 = vmatmul.mubr.bf16.gmra.mrb[0].mxu0 %v2212
    %v2345 = vpop.f32.mrb[0].mxu0
    %v2346 = vadd.f32 0.0, %v2345
    %v2347 = vpop.f32.mrb[0].mxu0
    %v2348 = vpop.f32.mrb[0].mxu0
    %v2349 = vadd.f32 0.0, %v2348
    %v2350 = vpop.f32.mrb[0].mxu0
    %2351 = vmatprep.mubr.bf16.mxu0 0
    %2352 = vmatmul.mubr.bf16.gmra.mrb[0].mxu0 %v2213
    %v2353 = vpop.f32.mrb[0].mxu0
    %v2354 = vadd.f32 0.0, %v2353
    %v2355 = vpop.f32.mrb[0].mxu0
    %v2356 = vpop.f32.mrb[0].mxu0
    %v2357 = vadd.f32 0.0, %v2356
    %v2358 = vpop.f32.mrb[0].mxu0
    %2359 = vmatprep.mubr.bf16.mxu0 0
    %2360 = vmatmul.mubr.bf16.gmra.mrb[0].mxu0 %v2214
    %v2361 = vpop.f32.mrb[0].mxu0
    %v2362 = vadd.f32 0.0, %v2361
    %v2363 = vpop.f32.mrb[0].mxu0
    %v2364 = vpop.f32.mrb[0].mxu0
    %v2365 = vadd.f32 0.0, %v2364
    %v2366 = vpop.f32.mrb[0].mxu0
    %2367 = vdwg.mxu0
    %v2368 = vadd.f32 %v2125, %v2306
    %v2369 = vadd.f32 %v2126, %v2309
    %v2370 = vadd.f32 %v2127, %v2314
    %v2371 = vadd.f32 %v2128, %v2317
    %v2372 = vadd.f32 %v2129, %v2322
    %v2373 = vadd.f32 %v2130, %v2325
    %v2374 = vadd.f32 %v2131, %v2330
    %v2375 = vadd.f32 %v2132, %v2333
    %v2376 = vadd.f32 %v2133, %v2338
    %v2377 = vadd.f32 %v2134, %v2341
    %v2378 = vadd.f32 %v2135, %v2346
    %v2379 = vadd.f32 %v2136, %v2349
    %v2380 = vadd.f32 %v2137, %v2354
    %v2381 = vadd.f32 %v2138, %v2357
    %v2382 = vadd.f32 %v2139, %v2362
    %v2383 = vadd.f32 %v2140, %v2365
    %v2384 = vld [vmem:[%s1898] sm:$0xf]
    %v2385 = vld [vmem:[%s1898 + $0x4] sm:$0x1]
    %v2386 = vld [vmem:[%s1898 + $0x8] sm:$0xf]
    %v2387 = vld [vmem:[%s1898 + $0xc] sm:$0x1]
    %v2388 = vld [vmem:[%s1898 + $0x10] sm:$0xf]
    %v2389 = vld [vmem:[%s1898 + $0x14] sm:$0x1]
    %v2390 = vld [vmem:[%s1898 + $0x18] sm:$0xf]
    %v2391 = vld [vmem:[%s1898 + $0x1c] sm:$0x1]
    %v2392 = vld [vmem:[%s1898 + $0x20] sm:$0xf]
    %v2393 = vld [vmem:[%s1898 + $0x24] sm:$0x1]
    %v2394 = vld [vmem:[%s1898 + $0x28] sm:$0xf]
    %v2395 = vld [vmem:[%s1898 + $0x2c] sm:$0x1]
    %v2396 = vld [vmem:[%s1898 + $0x30] sm:$0xf]
    %v2397 = vld [vmem:[%s1898 + $0x34] sm:$0x1]
    %v2398 = vld [vmem:[%s1898 + $0x38] sm:$0xf]
    %v2399 = vld [vmem:[%s1898 + $0x3c] sm:$0x1]
    %v2400 = vld [vmem:[%s1898 + $0x120] sm:$0xf]
    %v2401 = vld [vmem:[%s1898 + $0x124] sm:$0x1]
    %v2402 = vld [vmem:[%s1898 + $0x128] sm:$0xf]
    %v2403 = vld [vmem:[%s1898 + $0x12c] sm:$0x1]
    %v2404 = vld [vmem:[%s1898 + $0x130] sm:$0xf]
    %v2405 = vld [vmem:[%s1898 + $0x134] sm:$0x1]
    %v2406 = vld [vmem:[%s1898 + $0x138] sm:$0xf]
    %v2407 = vld [vmem:[%s1898 + $0x13c] sm:$0x1]
    %v2408 = vld [vmem:[%s1898 + $0x140] sm:$0xf]
    %v2409 = vld [vmem:[%s1898 + $0x144] sm:$0x1]
    %v2410 = vld [vmem:[%s1898 + $0x148] sm:$0xf]
    %v2411 = vld [vmem:[%s1898 + $0x14c] sm:$0x1]
    %v2412 = vld [vmem:[%s1898 + $0x150] sm:$0xf]
    %v2413 = vld [vmem:[%s1898 + $0x154] sm:$0x1]
    %v2414 = vld [vmem:[%s1898 + $0x158] sm:$0xf]
    %v2415 = vld [vmem:[%s1898 + $0x15c] sm:$0x1]
    %v2417 = vshrl.u32 %v2384, 16
    %v2419 = vrot.slane %v2417, 4
    %v2420 = vshll.u32 %v2384, 16
    %v2422 = vrot.slane %v2420, 5
    %v2423 = vor.u32 %v2419, %v2422
    %v2424 = vrot.slane %v2423, 4
    %v2426 = vshll.u32 %v2385, 16
    %v2428 = vrot.slane %v2426, 5
    %v2429 = vsel %vm511, %v2424, %v2428
    %v2431 = vshrl.u32 %v2386, 16
    %v2433 = vrot.slane %v2431, 4
    %v2434 = vshll.u32 %v2386, 16
    %v2436 = vrot.slane %v2434, 5
    %v2437 = vor.u32 %v2433, %v2436
    %v2438 = vrot.slane %v2437, 4
    %v2440 = vshll.u32 %v2387, 16
    %v2442 = vrot.slane %v2440, 5
    %v2443 = vsel %vm511, %v2438, %v2442
    %v2445 = vshrl.u32 %v2388, 16
    %v2447 = vrot.slane %v2445, 4
    %v2448 = vshll.u32 %v2388, 16
    %v2450 = vrot.slane %v2448, 5
    %v2451 = vor.u32 %v2447, %v2450
    %v2452 = vrot.slane %v2451, 4
    %v2454 = vshll.u32 %v2389, 16
    %v2456 = vrot.slane %v2454, 5
    %v2457 = vsel %vm511, %v2452, %v2456
    %v2459 = vshrl.u32 %v2390, 16
    %v2461 = vrot.slane %v2459, 4
    %v2462 = vshll.u32 %v2390, 16
    %v2464 = vrot.slane %v2462, 5
    %v2465 = vor.u32 %v2461, %v2464
    %v2466 = vrot.slane %v2465, 4
    %v2468 = vshll.u32 %v2391, 16
    %v2470 = vrot.slane %v2468, 5
    %v2471 = vsel %vm511, %v2466, %v2470
    %v2473 = vshrl.u32 %v2392, 16
    %v2475 = vrot.slane %v2473, 4
    %v2476 = vshll.u32 %v2392, 16
    %v2478 = vrot.slane %v2476, 5
    %v2479 = vor.u32 %v2475, %v2478
    %v2480 = vrot.slane %v2479, 4
    %v2482 = vshll.u32 %v2393, 16
    %v2484 = vrot.slane %v2482, 5
    %v2485 = vsel %vm511, %v2480, %v2484
    %v2487 = vshrl.u32 %v2394, 16
    %v2489 = vrot.slane %v2487, 4
    %v2490 = vshll.u32 %v2394, 16
    %v2492 = vrot.slane %v2490, 5
    %v2493 = vor.u32 %v2489, %v2492
    %v2494 = vrot.slane %v2493, 4
    %v2496 = vshll.u32 %v2395, 16
    %v2498 = vrot.slane %v2496, 5
    %v2499 = vsel %vm511, %v2494, %v2498
    %v2501 = vshrl.u32 %v2396, 16
    %v2503 = vrot.slane %v2501, 4
    %v2504 = vshll.u32 %v2396, 16
    %v2506 = vrot.slane %v2504, 5
    %v2507 = vor.u32 %v2503, %v2506
    %v2508 = vrot.slane %v2507, 4
    %v2510 = vshll.u32 %v2397, 16
    %v2512 = vrot.slane %v2510, 5
    %v2513 = vsel %vm511, %v2508, %v2512
    %v2515 = vshrl.u32 %v2398, 16
    %v2517 = vrot.slane %v2515, 4
    %v2518 = vshll.u32 %v2398, 16
    %v2520 = vrot.slane %v2518, 5
    %v2521 = vor.u32 %v2517, %v2520
    %v2522 = vrot.slane %v2521, 4
    %v2524 = vshll.u32 %v2399, 16
    %v2526 = vrot.slane %v2524, 5
    %v2527 = vsel %vm511, %v2522, %v2526
    %v2529 = vshrl.u32 %v2400, 16
    %v2531 = vrot.slane %v2529, 4
    %v2532 = vshll.u32 %v2400, 16
    %v2534 = vrot.slane %v2532, 5
    %v2535 = vor.u32 %v2531, %v2534
    %v2536 = vrot.slane %v2535, 4
    %v2538 = vshll.u32 %v2401, 16
    %v2540 = vrot.slane %v2538, 5
    %v2541 = vsel %vm511, %v2536, %v2540
    %v2543 = vshrl.u32 %v2402, 16
    %v2545 = vrot.slane %v2543, 4
    %v2546 = vshll.u32 %v2402, 16
    %v2548 = vrot.slane %v2546, 5
    %v2549 = vor.u32 %v2545, %v2548
    %v2550 = vrot.slane %v2549, 4
    %v2552 = vshll.u32 %v2403, 16
    %v2554 = vrot.slane %v2552, 5
    %v2555 = vsel %vm511, %v2550, %v2554
    %v2557 = vshrl.u32 %v2404, 16
    %v2559 = vrot.slane %v2557, 4
    %v2560 = vshll.u32 %v2404, 16
    %v2562 = vrot.slane %v2560, 5
    %v2563 = vor.u32 %v2559, %v2562
    %v2564 = vrot.slane %v2563, 4
    %v2566 = vshll.u32 %v2405, 16
    %v2568 = vrot.slane %v2566, 5
    %v2569 = vsel %vm511, %v2564, %v2568
    %v2571 = vshrl.u32 %v2406, 16
    %v2573 = vrot.slane %v2571, 4
    %v2574 = vshll.u32 %v2406, 16
    %v2576 = vrot.slane %v2574, 5
    %v2577 = vor.u32 %v2573, %v2576
    %v2578 = vrot.slane %v2577, 4
    %v2580 = vshll.u32 %v2407, 16
    %v2582 = vrot.slane %v2580, 5
    %v2583 = vsel %vm511, %v2578, %v2582
    %v2585 = vshrl.u32 %v2408, 16
    %v2587 = vrot.slane %v2585, 4
    %v2588 = vshll.u32 %v2408, 16
    %v2590 = vrot.slane %v2588, 5
    %v2591 = vor.u32 %v2587, %v2590
    %v2592 = vrot.slane %v2591, 4
    %v2594 = vshll.u32 %v2409, 16
    %v2596 = vrot.slane %v2594, 5
    %v2597 = vsel %vm511, %v2592, %v2596
    %v2599 = vshrl.u32 %v2410, 16
    %v2601 = vrot.slane %v2599, 4
    %v2602 = vshll.u32 %v2410, 16
    %v2604 = vrot.slane %v2602, 5
    %v2605 = vor.u32 %v2601, %v2604
    %v2606 = vrot.slane %v2605, 4
    %v2608 = vshll.u32 %v2411, 16
    %v2610 = vrot.slane %v2608, 5
    %v2611 = vsel %vm511, %v2606, %v2610
    %v2613 = vshrl.u32 %v2412, 16
    %v2615 = vrot.slane %v2613, 4
    %v2616 = vshll.u32 %v2412, 16
    %v2618 = vrot.slane %v2616, 5
    %v2619 = vor.u32 %v2615, %v2618
    %v2620 = vrot.slane %v2619, 4
    %v2622 = vshll.u32 %v2413, 16
    %v2624 = vrot.slane %v2622, 5
    %v2625 = vsel %vm511, %v2620, %v2624
    %v2627 = vshrl.u32 %v2414, 16
    %v2629 = vrot.slane %v2627, 4
    %v2630 = vshll.u32 %v2414, 16
    %v2632 = vrot.slane %v2630, 5
    %v2633 = vor.u32 %v2629, %v2632
    %v2634 = vrot.slane %v2633, 4
    %v2636 = vshll.u32 %v2415, 16
    %v2638 = vrot.slane %v2636, 5
    %v2639 = vsel %vm511, %v2634, %v2638
    %s2640 = scalar_lea.vmem %s1, 512
    %v2641 = vld [vmem:[%s2640] sm:$0xf]
    %v2642 = vld [vmem:[%s2640 + $0x4] sm:$0xf]
    %v2643 = vld [vmem:[%s2640 + $0x8] sm:$0xf]
    %v2644 = vld [vmem:[%s2640 + $0xc] sm:$0xf]
    %v2645 = vld [vmem:[%s2640 + $0x10] sm:$0xf]
    %v2646 = vld [vmem:[%s2640 + $0x14] sm:$0xf]
    %v2647 = vld [vmem:[%s2640 + $0x18] sm:$0xf]
    %v2648 = vld [vmem:[%s2640 + $0x1c] sm:$0xf]
    %v2649 = vld [vmem:[%s2640 + $0x20] sm:$0xf]
    %v2650 = vld [vmem:[%s2640 + $0x24] sm:$0xf]
    %v2651 = vld [vmem:[%s2640 + $0x28] sm:$0xf]
    %v2652 = vld [vmem:[%s2640 + $0x2c] sm:$0xf]
    %v2653 = vld [vmem:[%s2640 + $0x30] sm:$0xf]
    %v2654 = vld [vmem:[%s2640 + $0x34] sm:$0xf]
    %v2655 = vld [vmem:[%s2640 + $0x38] sm:$0xf]
    %v2656 = vld [vmem:[%s2640 + $0x3c] sm:$0xf]
    %v2657 = vunpack.c.l.b16 %v2429
    %v2658 = vunpack.c.l.b16 %v2443
    %v2659 = vunpack.c.l.b16 %v2457
    %v2660 = vunpack.c.l.b16 %v2471
    %v2661 = vunpack.c.l.b16 %v2485
    %v2662 = vunpack.c.l.b16 %v2499
    %v2663 = vunpack.c.l.b16 %v2513
    %v2664 = vunpack.c.l.b16 %v2527
    %v2665 = vunpack.c.l.b16 %v2541
    %v2666 = vunpack.c.l.b16 %v2555
    %v2667 = vunpack.c.l.b16 %v2569
    %v2668 = vunpack.c.l.b16 %v2583
    %v2669 = vunpack.c.l.b16 %v2597
    %v2670 = vunpack.c.l.b16 %v2611
    %v2671 = vunpack.c.l.b16 %v2625
    %v2672 = vunpack.c.l.b16 %v2639
    %v2673 = vpack.c.b16 %v2658, %v2657
    %v2674 = vpack.c.b16 %v2660, %v2659
    %v2675 = vpack.c.b16 %v2662, %v2661
    %v2676 = vpack.c.b16 %v2664, %v2663
    %v2677 = vpack.c.b16 %v2666, %v2665
    %v2678 = vpack.c.b16 %v2668, %v2667
    %v2679 = vpack.c.b16 %v2670, %v2669
    %v2680 = vpack.c.b16 %v2672, %v2671
    %v2705 = vunpack.c.l.b16 %v2641
    %v2706 = vunpack.c.l.b16 %v2642
    %v2707 = vunpack.c.l.b16 %v2643
    %v2708 = vunpack.c.l.b16 %v2644
    %v2709 = vunpack.c.l.b16 %v2645
    %v2710 = vunpack.c.l.b16 %v2646
    %v2711 = vunpack.c.l.b16 %v2647
    %v2712 = vunpack.c.l.b16 %v2648
    %v2713 = vunpack.c.l.b16 %v2649
    %v2714 = vunpack.c.l.b16 %v2650
    %v2715 = vunpack.c.l.b16 %v2651
    %v2716 = vunpack.c.l.b16 %v2652
    %v2717 = vunpack.c.l.b16 %v2653
    %v2718 = vunpack.c.l.b16 %v2654
    %v2719 = vunpack.c.l.b16 %v2655
    %v2720 = vunpack.c.l.b16 %v2656
    %v2721 = vpack.c.b16 %v2706, %v2705
    %v2722 = vpack.c.b16 %v2708, %v2707
    %v2723 = vpack.c.b16 %v2710, %v2709
    %v2724 = vpack.c.b16 %v2712, %v2711
    %v2725 = vpack.c.b16 %v2714, %v2713
    %v2726 = vpack.c.b16 %v2716, %v2715
    %v2727 = vpack.c.b16 %v2718, %v2717
    %v2728 = vpack.c.b16 %v2720, %v2719
    %2737 = vmatprep.subr.bf16.mxu0 0
    %2738 = vmatpush1.bf16.msra.mxu0 %v2721
    %2739 = vmatprep.subr.bf16.mxu0 0
    %2740 = vmatpush1.bf16.msra.mxu0 %v2722
    %2741 = vmatprep.subr.bf16.mxu0 0
    %2742 = vmatpush1.bf16.msra.mxu0 %v2723
    %2743 = vmatprep.subr.bf16.mxu0 0
    %2744 = vmatpush1.bf16.msra.mxu0 %v2724
    %2745 = vmatprep.subr.bf16.mxu0 0
    %2746 = vmatpush1.bf16.msra.mxu0 %v2725
    %2747 = vmatprep.subr.bf16.mxu0 0
    %2748 = vmatpush1.bf16.msra.mxu0 %v2726
    %2749 = vmatprep.subr.bf16.mxu0 0
    %2750 = vmatpush1.bf16.msra.mxu0 %v2727
    %2751 = vmatprep.subr.bf16.mxu0 0
    %2752 = vmatpush1.bf16.msra.mxu0 %v2728
    %2753 = vmatprep.subr.bf16.mxu0 0
    %2754 = vmatpush1.bf16.msra.mxu0 0
    %2755 = vmatprep.subr.bf16.mxu0 0
    %2756 = vmatpush1.bf16.msra.mxu0 0
    %2757 = vmatprep.subr.bf16.mxu0 0
    %2758 = vmatpush1.bf16.msra.mxu0 0
    %2759 = vmatprep.subr.bf16.mxu0 0
    %2760 = vmatpush1.bf16.msra.mxu0 0
    %2761 = vmatprep.subr.bf16.mxu0 0
    %2762 = vmatpush1.bf16.msra.mxu0 0
    %2763 = vmatprep.subr.bf16.mxu0 0
    %2764 = vmatpush1.bf16.msra.mxu0 0
    %2765 = vmatprep.subr.bf16.mxu0 0
    %2766 = vmatpush1.bf16.msra.mxu0 0
    %2767 = vmatprep.subr.bf16.mxu0 0
    %2768 = vmatpush1.bf16.msra.mxu0 0
    %2769 = vmatprep.mubr.bf16.mxu0 0
    %2770 = vmatmul.mubr.bf16.gmra.mrb[0].mxu0 %v2673
    %v2771 = vpop.f32.mrb[0].mxu0
    %v2772 = vadd.f32 0.0, %v2771
    %v2773 = vpop.f32.mrb[0].mxu0
    %v2774 = vpop.f32.mrb[0].mxu0
    %v2775 = vadd.f32 0.0, %v2774
    %v2776 = vpop.f32.mrb[0].mxu0
    %2777 = vmatprep.mubr.bf16.mxu0 0
    %2778 = vmatmul.mubr.bf16.gmra.mrb[0].mxu0 %v2674
    %v2779 = vpop.f32.mrb[0].mxu0
    %v2780 = vadd.f32 0.0, %v2779
    %v2781 = vpop.f32.mrb[0].mxu0
    %v2782 = vpop.f32.mrb[0].mxu0
    %v2783 = vadd.f32 0.0, %v2782
    %v2784 = vpop.f32.mrb[0].mxu0
    %2785 = vmatprep.mubr.bf16.mxu0 0
    %2786 = vmatmul.mubr.bf16.gmra.mrb[0].mxu0 %v2675
    %v2787 = vpop.f32.mrb[0].mxu0
    %v2788 = vadd.f32 0.0, %v2787
    %v2789 = vpop.f32.mrb[0].mxu0
    %v2790 = vpop.f32.mrb[0].mxu0
    %v2791 = vadd.f32 0.0, %v2790
    %v2792 = vpop.f32.mrb[0].mxu0
    %2793 = vmatprep.mubr.bf16.mxu0 0
    %2794 = vmatmul.mubr.bf16.gmra.mrb[0].mxu0 %v2676
    %v2795 = vpop.f32.mrb[0].mxu0
    %v2796 = vadd.f32 0.0, %v2795
    %v2797 = vpop.f32.mrb[0].mxu0
    %v2798 = vpop.f32.mrb[0].mxu0
    %v2799 = vadd.f32 0.0, %v2798
    %v2800 = vpop.f32.mrb[0].mxu0
    %2801 = vmatprep.mubr.bf16.mxu0 0
    %2802 = vmatmul.mubr.bf16.gmra.mrb[0].mxu0 %v2677
    %v2803 = vpop.f32.mrb[0].mxu0
    %v2804 = vadd.f32 0.0, %v2803
    %v2805 = vpop.f32.mrb[0].mxu0
    %v2806 = vpop.f32.mrb[0].mxu0
    %v2807 = vadd.f32 0.0, %v2806
    %v2808 = vpop.f32.mrb[0].mxu0
    %2809 = vmatprep.mubr.bf16.mxu0 0
    %2810 = vmatmul.mubr.bf16.gmra.mrb[0].mxu0 %v2678
    %v2811 = vpop.f32.mrb[0].mxu0
    %v2812 = vadd.f32 0.0, %v2811
    %v2813 = vpop.f32.mrb[0].mxu0
    %v2814 = vpop.f32.mrb[0].mxu0
    %v2815 = vadd.f32 0.0, %v2814
    %v2816 = vpop.f32.mrb[0].mxu0
    %2817 = vmatprep.mubr.bf16.mxu0 0
    %2818 = vmatmul.mubr.bf16.gmra.mrb[0].mxu0 %v2679
    %v2819 = vpop.f32.mrb[0].mxu0
    %v2820 = vadd.f32 0.0, %v2819
    %v2821 = vpop.f32.mrb[0].mxu0
    %v2822 = vpop.f32.mrb[0].mxu0
    %v2823 = vadd.f32 0.0, %v2822
    %v2824 = vpop.f32.mrb[0].mxu0
    %2825 = vmatprep.mubr.bf16.mxu0 0
    %2826 = vmatmul.mubr.bf16.gmra.mrb[0].mxu0 %v2680
    %v2827 = vpop.f32.mrb[0].mxu0
    %v2828 = vadd.f32 0.0, %v2827
    %v2829 = vpop.f32.mrb[0].mxu0
    %v2830 = vpop.f32.mrb[0].mxu0
    %v2831 = vadd.f32 0.0, %v2830
    %v2832 = vpop.f32.mrb[0].mxu0
    %2833 = vdwg.mxu0
    %v2834 = vadd.f32 %v2368, %v2772
    %v2835 = vadd.f32 %v2369, %v2775
    %v2836 = vadd.f32 %v2370, %v2780
    %v2837 = vadd.f32 %v2371, %v2783
    %v2838 = vadd.f32 %v2372, %v2788
    %v2839 = vadd.f32 %v2373, %v2791
    %v2840 = vadd.f32 %v2374, %v2796
    %v2841 = vadd.f32 %v2375, %v2799
    %v2842 = vadd.f32 %v2376, %v2804
    %v2843 = vadd.f32 %v2377, %v2807
    %v2844 = vadd.f32 %v2378, %v2812
    %v2845 = vadd.f32 %v2379, %v2815
    %v2846 = vadd.f32 %v2380, %v2820
    %v2847 = vadd.f32 %v2381, %v2823
    %v2848 = vadd.f32 %v2382, %v2828
    %v2849 = vadd.f32 %v2383, %v2831
    %v2850 = vpack.c.bf16 %v2835, %v2834
    %v2851 = vpack.c.bf16 %v2837, %v2836
    %v2852 = vpack.c.bf16 %v2839, %v2838
    %v2853 = vpack.c.bf16 %v2841, %v2840
    %v2854 = vpack.c.bf16 %v2843, %v2842
    %v2855 = vpack.c.bf16 %v2845, %v2844
    %v2856 = vpack.c.bf16 %v2847, %v2846
    %v2857 = vpack.c.bf16 %v2849, %v2848
    %v2866 = vunpack.c.l.b16 %v2850
    %v2867 = vunpack.c.h.b16 %v2850
    %v2868 = vunpack.c.l.b16 %v2851
    %v2869 = vunpack.c.h.b16 %v2851
    %v2870 = vunpack.c.l.b16 %v2852
    %v2871 = vunpack.c.h.b16 %v2852
    %v2872 = vunpack.c.l.b16 %v2853
    %v2873 = vunpack.c.h.b16 %v2853
    %v2874 = vunpack.c.l.b16 %v2854
    %v2875 = vunpack.c.h.b16 %v2854
    %v2876 = vunpack.c.l.b16 %v2855
    %v2877 = vunpack.c.h.b16 %v2855
    %v2878 = vunpack.c.l.b16 %v2856
    %v2879 = vunpack.c.h.b16 %v2856
    %v2880 = vunpack.c.l.b16 %v2857
    %v2881 = vunpack.c.h.b16 %v2857
    %v2882 = vpack.c.b16 %v2866, %v2866
    %v2883 = vpack.c.b16 %v2867, %v2867
    %v2884 = vpack.c.b16 %v2868, %v2868
    %v2885 = vpack.c.b16 %v2869, %v2869
    %v2886 = vpack.c.b16 %v2870, %v2870
    %v2887 = vpack.c.b16 %v2871, %v2871
    %v2888 = vpack.c.b16 %v2872, %v2872
    %v2889 = vpack.c.b16 %v2873, %v2873
    %v2890 = vpack.c.b16 %v2874, %v2874
    %v2891 = vpack.c.b16 %v2875, %v2875
    %v2892 = vpack.c.b16 %v2876, %v2876
    %v2893 = vpack.c.b16 %v2877, %v2877
    %v2894 = vpack.c.b16 %v2878, %v2878
    %v2895 = vpack.c.b16 %v2879, %v2879
    %v2896 = vpack.c.b16 %v2880, %v2880
    %v2897 = vpack.c.b16 %v2881, %v2881
    %2914 = vst [vmem:[#allocation2] sm:$0xf] %v2882
    %2915 = vst [vmem:[#allocation2 + $0x4] sm:$0xf] %v2883
    %2916 = vst [vmem:[#allocation2 + $0x8] sm:$0xf] %v2884
    %2917 = vst [vmem:[#allocation2 + $0xc] sm:$0xf] %v2885
    %2918 = vst [vmem:[#allocation2 + $0x10] sm:$0xf] %v2886
    %2919 = vst [vmem:[#allocation2 + $0x14] sm:$0xf] %v2887
    %2920 = vst [vmem:[#allocation2 + $0x18] sm:$0xf] %v2888
    %2921 = vst [vmem:[#allocation2 + $0x1c] sm:$0xf] %v2889
    %2922 = vst [vmem:[#allocation2 + $0x20] sm:$0xf] %v2890
    %2923 = vst [vmem:[#allocation2 + $0x24] sm:$0xf] %v2891
    %2924 = vst [vmem:[#allocation2 + $0x28] sm:$0xf] %v2892
    %2925 = vst [vmem:[#allocation2 + $0x2c] sm:$0xf] %v2893
    %2926 = vst [vmem:[#allocation2 + $0x30] sm:$0xf] %v2894
    %2927 = vst [vmem:[#allocation2 + $0x34] sm:$0xf] %v2895
    %2928 = vst [vmem:[#allocation2 + $0x38] sm:$0xf] %v2896
    %2929 = vst [vmem:[#allocation2 + $0x3c] sm:$0xf] %v2897
    %v2930 = vadd.f32 %v2834, %v2835
    %v2931 = vadd.f32 %v2930, %v2836
    %v2932 = vadd.f32 %v2931, %v2837
    %v2933 = vadd.f32 %v2932, %v2838
    %v2934 = vadd.f32 %v2933, %v2839
    %v2935 = vadd.f32 %v2934, %v2840
    %v2936 = vadd.f32 %v2935, %v2841
    %v2937 = vadd.f32 %v2936, %v2842
    %v2938 = vadd.f32 %v2937, %v2843
    %v2939 = vadd.f32 %v2938, %v2844
    %v2940 = vadd.f32 %v2939, %v2845
    %v2941 = vadd.f32 %v2940, %v2846
    %v2942 = vadd.f32 %v2941, %v2847
    %v2943 = vadd.f32 %v2942, %v2848
    %v2944 = vadd.f32 %v2943, %v2849
    %v2945 = vrot.slane %v2944, 4
    %v2946 = vadd.f32 %v2944, %v2945
    %v2947 = vrot.slane %v2946, 2
    %v2948 = vadd.f32 %v2946, %v2947
    %v2949 = vrot.slane %v2948, 1
    %v2950 = vadd.f32 %v2948, %v2949
    %2951 = vst [vmem:[#allocation4] sm:$0x1] %v2950
    %v2952 = vmul.f32 %v2834, %v2834
    %v2953 = vmul.f32 %v2835, %v2835
    %v2954 = vmul.f32 %v2836, %v2836
    %v2955 = vmul.f32 %v2837, %v2837
    %v2956 = vmul.f32 %v2838, %v2838
    %v2957 = vmul.f32 %v2839, %v2839
    %v2958 = vmul.f32 %v2840, %v2840
    %v2959 = vmul.f32 %v2841, %v2841
    %v2960 = vmul.f32 %v2842, %v2842
    %v2961 = vmul.f32 %v2843, %v2843
    %v2962 = vmul.f32 %v2844, %v2844
    %v2963 = vmul.f32 %v2845, %v2845
    %v2964 = vmul.f32 %v2846, %v2846
    %v2965 = vmul.f32 %v2847, %v2847
    %v2966 = vmul.f32 %v2848, %v2848
    %v2967 = vmul.f32 %v2849, %v2849
    %v2968 = vadd.f32 %v2952, %v2953
    %v2969 = vadd.f32 %v2968, %v2954
    %v2970 = vadd.f32 %v2969, %v2955
    %v2971 = vadd.f32 %v2970, %v2956
    %v2972 = vadd.f32 %v2971, %v2957
    %v2973 = vadd.f32 %v2972, %v2958
    %v2974 = vadd.f32 %v2973, %v2959
    %v2975 = vadd.f32 %v2974, %v2960
    %v2976 = vadd.f32 %v2975, %v2961
    %v2977 = vadd.f32 %v2976, %v2962
    %v2978 = vadd.f32 %v2977, %v2963
    %v2979 = vadd.f32 %v2978, %v2964
    %v2980 = vadd.f32 %v2979, %v2965
    %v2981 = vadd.f32 %v2980, %v2966
    %v2982 = vadd.f32 %v2981, %v2967
    %v2983 = vrot.slane %v2982, 4
    %v2984 = vadd.f32 %v2982, %v2983
    %v2985 = vrot.slane %v2984, 2
    %v2986 = vadd.f32 %v2984, %v2985
    %v2987 = vrot.slane %v2986, 1
    %v2988 = vadd.f32 %v2986, %v2987
    %2989 = vst [vmem:[#allocation6] sm:$0x1] %v2988
    %v2990 = vld [vmem:[%s1189] sm:$0xf]
    %v2991 = vld [vmem:[%s1189 + $0x8] sm:$0xf]
    %v2992 = vld [vmem:[%s1189 + $0x10] sm:$0xf]
    %v2993 = vld [vmem:[%s1189 + $0x18] sm:$0xf]
    %v2994 = vld [vmem:[%s1189 + $0x20] sm:$0xf]
    %v2995 = vld [vmem:[%s1189 + $0x28] sm:$0xf]
    %v2996 = vld [vmem:[%s1189 + $0x30] sm:$0xf]
    %v2997 = vld [vmem:[%s1189 + $0x38] sm:$0xf]
    %v2998 = vld [vmem:[%s1189 + $0x120] sm:$0xf]
    %v2999 = vld [vmem:[%s1189 + $0x128] sm:$0xf]
    %v3000 = vld [vmem:[%s1189 + $0x130] sm:$0xf]
    %v3001 = vld [vmem:[%s1189 + $0x138] sm:$0xf]
    %v3002 = vld [vmem:[%s1189 + $0x140] sm:$0xf]
    %v3003 = vld [vmem:[%s1189 + $0x148] sm:$0xf]
    %v3004 = vld [vmem:[%s1189 + $0x150] sm:$0xf]
    %v3005 = vld [vmem:[%s1189 + $0x158] sm:$0xf]
    %v3006 = vld [vmem:[%s2] sm:$0xf]
    %v3007 = vld [vmem:[%s2 + $0x4] sm:$0xf]
    %v3008 = vld [vmem:[%s2 + $0x8] sm:$0xf]
    %v3009 = vld [vmem:[%s2 + $0xc] sm:$0xf]
    %v3010 = vld [vmem:[%s2 + $0x10] sm:$0xf]
    %v3011 = vld [vmem:[%s2 + $0x14] sm:$0xf]
    %v3012 = vld [vmem:[%s2 + $0x18] sm:$0xf]
    %v3013 = vld [vmem:[%s2 + $0x1c] sm:$0xf]
    %v3014 = vld [vmem:[%s2 + $0x20] sm:$0xf]
    %v3015 = vld [vmem:[%s2 + $0x24] sm:$0xf]
    %v3016 = vld [vmem:[%s2 + $0x28] sm:$0xf]
    %v3017 = vld [vmem:[%s2 + $0x2c] sm:$0xf]
    %v3018 = vld [vmem:[%s2 + $0x30] sm:$0xf]
    %v3019 = vld [vmem:[%s2 + $0x34] sm:$0xf]
    %v3020 = vld [vmem:[%s2 + $0x38] sm:$0xf]
    %v3021 = vld [vmem:[%s2 + $0x3c] sm:$0xf]
    %v3038 = vunpack.c.l.b16 %v2990
    %v3039 = vunpack.c.l.b16 %v2991
    %v3040 = vunpack.c.l.b16 %v2992
    %v3041 = vunpack.c.l.b16 %v2993
    %v3042 = vunpack.c.l.b16 %v2994
    %v3043 = vunpack.c.l.b16 %v2995
    %v3044 = vunpack.c.l.b16 %v2996
    %v3045 = vunpack.c.l.b16 %v2997
    %v3046 = vunpack.c.l.b16 %v2998
    %v3047 = vunpack.c.l.b16 %v2999
    %v3048 = vunpack.c.l.b16 %v3000
    %v3049 = vunpack.c.l.b16 %v3001
    %v3050 = vunpack.c.l.b16 %v3002
    %v3051 = vunpack.c.l.b16 %v3003
    %v3052 = vunpack.c.l.b16 %v3004
    %v3053 = vunpack.c.l.b16 %v3005
    %v3054 = vpack.c.b16 %v3039, %v3038
    %v3055 = vpack.c.b16 %v3041, %v3040
    %v3056 = vpack.c.b16 %v3043, %v3042
    %v3057 = vpack.c.b16 %v3045, %v3044
    %v3058 = vpack.c.b16 %v3047, %v3046
    %v3059 = vpack.c.b16 %v3049, %v3048
    %v3060 = vpack.c.b16 %v3051, %v3050
    %v3061 = vpack.c.b16 %v3053, %v3052
    %v3086 = vunpack.c.l.b16 %v3006
    %v3087 = vunpack.c.l.b16 %v3007
    %v3088 = vunpack.c.l.b16 %v3008
    %v3089 = vunpack.c.l.b16 %v3009
    %v3090 = vunpack.c.l.b16 %v3010
    %v3091 = vunpack.c.l.b16 %v3011
    %v3092 = vunpack.c.l.b16 %v3012
    %v3093 = vunpack.c.l.b16 %v3013
    %v3094 = vunpack.c.l.b16 %v3014
    %v3095 = vunpack.c.l.b16 %v3015
    %v3096 = vunpack.c.l.b16 %v3016
    %v3097 = vunpack.c.l.b16 %v3017
    %v3098 = vunpack.c.l.b16 %v3018
    %v3099 = vunpack.c.l.b16 %v3019
    %v3100 = vunpack.c.l.b16 %v3020
    %v3101 = vunpack.c.l.b16 %v3021
    %v3102 = vpack.c.b16 %v3087, %v3086
    %v3103 = vpack.c.b16 %v3089, %v3088
    %v3104 = vpack.c.b16 %v3091, %v3090
    %v3105 = vpack.c.b16 %v3093, %v3092
    %v3106 = vpack.c.b16 %v3095, %v3094
    %v3107 = vpack.c.b16 %v3097, %v3096
    %v3108 = vpack.c.b16 %v3099, %v3098
    %v3109 = vpack.c.b16 %v3101, %v3100
    %3118 = vmatprep.subr.bf16.mxu0 0
    %3119 = vmatpush1.bf16.msra.mxu0 %v3102
    %3120 = vmatprep.subr.bf16.mxu0 0
    %3121 = vmatpush1.bf16.msra.mxu0 %v3103
    %3122 = vmatprep.subr.bf16.mxu0 0
    %3123 = vmatpush1.bf16.msra.mxu0 %v3104
    %3124 = vmatprep.subr.bf16.mxu0 0
    %3125 = vmatpush1.bf16.msra.mxu0 %v3105
    %3126 = vmatprep.subr.bf16.mxu0 0
    %3127 = vmatpush1.bf16.msra.mxu0 %v3106
    %3128 = vmatprep.subr.bf16.mxu0 0
    %3129 = vmatpush1.bf16.msra.mxu0 %v3107
    %3130 = vmatprep.subr.bf16.mxu0 0
    %3131 = vmatpush1.bf16.msra.mxu0 %v3108
    %3132 = vmatprep.subr.bf16.mxu0 0
    %3133 = vmatpush1.bf16.msra.mxu0 %v3109
    %3134 = vmatprep.subr.bf16.mxu0 0
    %3135 = vmatpush1.bf16.msra.mxu0 0
    %3136 = vmatprep.subr.bf16.mxu0 0
    %3137 = vmatpush1.bf16.msra.mxu0 0
    %3138 = vmatprep.subr.bf16.mxu0 0
    %3139 = vmatpush1.bf16.msra.mxu0 0
    %3140 = vmatprep.subr.bf16.mxu0 0
    %3141 = vmatpush1.bf16.msra.mxu0 0
    %3142 = vmatprep.subr.bf16.mxu0 0
    %3143 = vmatpush1.bf16.msra.mxu0 0
    %3144 = vmatprep.subr.bf16.mxu0 0
    %3145 = vmatpush1.bf16.msra.mxu0 0
    %3146 = vmatprep.subr.bf16.mxu0 0
    %3147 = vmatpush1.bf16.msra.mxu0 0
    %3148 = vmatprep.subr.bf16.mxu0 0
    %3149 = vmatpush1.bf16.msra.mxu0 0
    %3150 = vmatprep.mubr.bf16.mxu0 0
    %3151 = vmatmul.mubr.bf16.gmra.mrb[0].mxu0 %v3054
    %v3152 = vpop.f32.mrb[0].mxu0
    %v3153 = vadd.f32 0.0, %v3152
    %v3154 = vpop.f32.mrb[0].mxu0
    %v3155 = vpop.f32.mrb[0].mxu0
    %v3156 = vadd.f32 0.0, %v3155
    %v3157 = vpop.f32.mrb[0].mxu0
    %3158 = vmatprep.mubr.bf16.mxu0 0
    %3159 = vmatmul.mubr.bf16.gmra.mrb[0].mxu0 %v3055
    %v3160 = vpop.f32.mrb[0].mxu0
    %v3161 = vadd.f32 0.0, %v3160
    %v3162 = vpop.f32.mrb[0].mxu0
    %v3163 = vpop.f32.mrb[0].mxu0
    %v3164 = vadd.f32 0.0, %v3163
    %v3165 = vpop.f32.mrb[0].mxu0
    %3166 = vmatprep.mubr.bf16.mxu0 0
    %3167 = vmatmul.mubr.bf16.gmra.mrb[0].mxu0 %v3056
    %v3168 = vpop.f32.mrb[0].mxu0
    %v3169 = vadd.f32 0.0, %v3168
    %v3170 = vpop.f32.mrb[0].mxu0
    %v3171 = vpop.f32.mrb[0].mxu0
    %v3172 = vadd.f32 0.0, %v3171
    %v3173 = vpop.f32.mrb[0].mxu0
    %3174 = vmatprep.mubr.bf16.mxu0 0
    %3175 = vmatmul.mubr.bf16.gmra.mrb[0].mxu0 %v3057
    %v3176 = vpop.f32.mrb[0].mxu0
    %v3177 = vadd.f32 0.0, %v3176
    %v3178 = vpop.f32.mrb[0].mxu0
    %v3179 = vpop.f32.mrb[0].mxu0
    %v3180 = vadd.f32 0.0, %v3179
    %v3181 = vpop.f32.mrb[0].mxu0
    %3182 = vmatprep.mubr.bf16.mxu0 0
    %3183 = vmatmul.mubr.bf16.gmra.mrb[0].mxu0 %v3058
    %v3184 = vpop.f32.mrb[0].mxu0
    %v3185 = vadd.f32 0.0, %v3184
    %v3186 = vpop.f32.mrb[0].mxu0
    %v3187 = vpop.f32.mrb[0].mxu0
    %v3188 = vadd.f32 0.0, %v3187
    %v3189 = vpop.f32.mrb[0].mxu0
    %3190 = vmatprep.mubr.bf16.mxu0 0
    %3191 = vmatmul.mubr.bf16.gmra.mrb[0].mxu0 %v3059
    %v3192 = vpop.f32.mrb[0].mxu0
    %v3193 = vadd.f32 0.0, %v3192
    %v3194 = vpop.f32.mrb[0].mxu0
    %v3195 = vpop.f32.mrb[0].mxu0
    %v3196 = vadd.f32 0.0, %v3195
    %v3197 = vpop.f32.mrb[0].mxu0
    %3198 = vmatprep.mubr.bf16.mxu0 0
    %3199 = vmatmul.mubr.bf16.gmra.mrb[0].mxu0 %v3060
    %v3200 = vpop.f32.mrb[0].mxu0
    %v3201 = vadd.f32 0.0, %v3200
    %v3202 = vpop.f32.mrb[0].mxu0
    %v3203 = vpop.f32.mrb[0].mxu0
    %v3204 = vadd.f32 0.0, %v3203
    %v3205 = vpop.f32.mrb[0].mxu0
    %3206 = vmatprep.mubr.bf16.mxu0 0
    %3207 = vmatmul.mubr.bf16.gmra.mrb[0].mxu0 %v3061
    %v3208 = vpop.f32.mrb[0].mxu0
    %v3209 = vadd.f32 0.0, %v3208
    %v3210 = vpop.f32.mrb[0].mxu0
    %v3211 = vpop.f32.mrb[0].mxu0
    %v3212 = vadd.f32 0.0, %v3211
    %v3213 = vpop.f32.mrb[0].mxu0
    %3214 = vdwg.mxu0
    %v3215 = vpack.c.bf16 %v3156, %v3153
    %v3216 = vpack.c.bf16 %v3164, %v3161
    %v3217 = vpack.c.bf16 %v3172, %v3169
    %v3218 = vpack.c.bf16 %v3180, %v3177
    %v3219 = vpack.c.bf16 %v3188, %v3185
    %v3220 = vpack.c.bf16 %v3196, %v3193
    %v3221 = vpack.c.bf16 %v3204, %v3201
    %v3222 = vpack.c.bf16 %v3212, %v3209
    %v3231 = vunpack.c.l.b16 %v3215
    %v3232 = vunpack.c.h.b16 %v3215
    %v3233 = vunpack.c.l.b16 %v3216
    %v3234 = vunpack.c.h.b16 %v3216
    %v3235 = vunpack.c.l.b16 %v3217
    %v3236 = vunpack.c.h.b16 %v3217
    %v3237 = vunpack.c.l.b16 %v3218
    %v3238 = vunpack.c.h.b16 %v3218
    %v3239 = vunpack.c.l.b16 %v3219
    %v3240 = vunpack.c.h.b16 %v3219
    %v3241 = vunpack.c.l.b16 %v3220
    %v3242 = vunpack.c.h.b16 %v3220
    %v3243 = vunpack.c.l.b16 %v3221
    %v3244 = vunpack.c.h.b16 %v3221
    %v3245 = vunpack.c.l.b16 %v3222
    %v3246 = vunpack.c.h.b16 %v3222
    %v3247 = vpack.c.b16 %v3231, %v3231
    %v3248 = vpack.c.b16 %v3232, %v3232
    %v3249 = vpack.c.b16 %v3233, %v3233
    %v3250 = vpack.c.b16 %v3234, %v3234
    %v3251 = vpack.c.b16 %v3235, %v3235
    %v3252 = vpack.c.b16 %v3236, %v3236
    %v3253 = vpack.c.b16 %v3237, %v3237
    %v3254 = vpack.c.b16 %v3238, %v3238
    %v3255 = vpack.c.b16 %v3239, %v3239
    %v3256 = vpack.c.b16 %v3240, %v3240
    %v3257 = vpack.c.b16 %v3241, %v3241
    %v3258 = vpack.c.b16 %v3242, %v3242
    %v3259 = vpack.c.b16 %v3243, %v3243
    %v3260 = vpack.c.b16 %v3244, %v3244
    %v3261 = vpack.c.b16 %v3245, %v3245
    %v3262 = vpack.c.b16 %v3246, %v3246
    %3279 = vst [vmem:[#allocation7] sm:$0xf] %v3247
    %3280 = vst [vmem:[#allocation7 + $0x4] sm:$0xf] %v3248
    %3281 = vst [vmem:[#allocation7 + $0x8] sm:$0xf] %v3249
    %3282 = vst [vmem:[#allocation7 + $0xc] sm:$0xf] %v3250
    %3283 = vst [vmem:[#allocation7 + $0x10] sm:$0xf] %v3251
    %3284 = vst [vmem:[#allocation7 + $0x14] sm:$0xf] %v3252
    %3285 = vst [vmem:[#allocation7 + $0x18] sm:$0xf] %v3253
    %3286 = vst [vmem:[#allocation7 + $0x1c] sm:$0xf] %v3254
    %3287 = vst [vmem:[#allocation7 + $0x20] sm:$0xf] %v3255
    %3288 = vst [vmem:[#allocation7 + $0x24] sm:$0xf] %v3256
    %3289 = vst [vmem:[#allocation7 + $0x28] sm:$0xf] %v3257
    %3290 = vst [vmem:[#allocation7 + $0x2c] sm:$0xf] %v3258
    %3291 = vst [vmem:[#allocation7 + $0x30] sm:$0xf] %v3259
    %3292 = vst [vmem:[#allocation7 + $0x34] sm:$0xf] %v3260
    %3293 = vst [vmem:[#allocation7 + $0x38] sm:$0xf] %v3261
    %3294 = vst [vmem:[#allocation7 + $0x3c] sm:$0xf] %v3262
    %v3295 = vadd.f32 %v3153, %v3156
    %v3296 = vadd.f32 %v3295, %v3161
    %v3297 = vadd.f32 %v3296, %v3164
    %v3298 = vadd.f32 %v3297, %v3169
    %v3299 = vadd.f32 %v3298, %v3172
    %v3300 = vadd.f32 %v3299, %v3177
    %v3301 = vadd.f32 %v3300, %v3180
    %v3302 = vadd.f32 %v3301, %v3185
    %v3303 = vadd.f32 %v3302, %v3188
    %v3304 = vadd.f32 %v3303, %v3193
    %v3305 = vadd.f32 %v3304, %v3196
    %v3306 = vadd.f32 %v3305, %v3201
    %v3307 = vadd.f32 %v3306, %v3204
    %v3308 = vadd.f32 %v3307, %v3209
    %v3309 = vadd.f32 %v3308, %v3212
    %v3310 = vrot.slane %v3309, 4
    %v3311 = vadd.f32 %v3309, %v3310
    %v3312 = vrot.slane %v3311, 2
    %v3313 = vadd.f32 %v3311, %v3312
    %v3314 = vrot.slane %v3313, 1
    %v3315 = vadd.f32 %v3313, %v3314
    %3316 = vst [vmem:[#allocation9] sm:$0x1] %v3315
    %v3317 = vmul.f32 %v3153, %v3153
    %v3318 = vmul.f32 %v3156, %v3156
    %v3319 = vmul.f32 %v3161, %v3161
    %v3320 = vmul.f32 %v3164, %v3164
    %v3321 = vmul.f32 %v3169, %v3169
    %v3322 = vmul.f32 %v3172, %v3172
    %v3323 = vmul.f32 %v3177, %v3177
    %v3324 = vmul.f32 %v3180, %v3180
    %v3325 = vmul.f32 %v3185, %v3185
    %v3326 = vmul.f32 %v3188, %v3188
    %v3327 = vmul.f32 %v3193, %v3193
    %v3328 = vmul.f32 %v3196, %v3196
    %v3329 = vmul.f32 %v3201, %v3201
    %v3330 = vmul.f32 %v3204, %v3204
    %v3331 = vmul.f32 %v3209, %v3209
    %v3332 = vmul.f32 %v3212, %v3212
    %v3333 = vadd.f32 %v3317, %v3318
    %v3334 = vadd.f32 %v3333, %v3319
    %v3335 = vadd.f32 %v3334, %v3320
    %v3336 = vadd.f32 %v3335, %v3321
    %v3337 = vadd.f32 %v3336, %v3322
    %v3338 = vadd.f32 %v3337, %v3323
    %v3339 = vadd.f32 %v3338, %v3324
    %v3340 = vadd.f32 %v3339, %v3325
    %v3341 = vadd.f32 %v3340, %v3326
    %v3342 = vadd.f32 %v3341, %v3327
    %v3343 = vadd.f32 %v3342, %v3328
    %v3344 = vadd.f32 %v3343, %v3329
    %v3345 = vadd.f32 %v3344, %v3330
    %v3346 = vadd.f32 %v3345, %v3331
    %v3347 = vadd.f32 %v3346, %v3332
    %v3348 = vrot.slane %v3347, 4
    %v3349 = vadd.f32 %v3347, %v3348
    %v3350 = vrot.slane %v3349, 2
    %v3351 = vadd.f32 %v3349, %v3350
    %v3352 = vrot.slane %v3351, 1
    %v3353 = vadd.f32 %v3351, %v3352
    %3354 = vst [vmem:[#allocation10] sm:$0x1] %v3353
    // Predicated region
    $region14: #{tpu_custom_call.1} parent=1 // pred_check
      _
    $region15: #{tpu_custom_call.1} parent=1 // pred_check_branch
      %3356 = sbr.rel (0) target = $region17
    $region16: #{tpu_custom_call.1} parent=1 // pred_region
      %s3358 = ssub.s32 1024, 1024
      %3359 = vsyncadd [#allocation3], %s3358
      %s3360 = sshll.u32 [#allocation2], 4
      %s3361 = int_to_ptr.vmem [resolvable:$true] %s3360
      %3366 = dma.vmem_to_hbm [thread:$0]  %s3361, 1024, %s3, [#allocation3], 64, 64, 4
    $region17: #{tpu_custom_call.1} parent=1 // pred_fallthru
      _
    // Predicated region
    $region18: #{tpu_custom_call.1} parent=1 // pred_check
      _
    $region19: #{tpu_custom_call.1} parent=1 // pred_check_branch
      %3368 = sbr.rel (0) target = $region21
    $region20: #{tpu_custom_call.1} parent=1 // pred_region
      %s3370 = ssub.s32 16, 16
      %3371 = vsyncadd [#allocation5], %s3370
      %s3373 = sshll.u32 [#allocation4], 4
      %s3374 = int_to_ptr.vmem [resolvable:$true] %s3373
      %3376 = dma.vmem_to_hbm [thread:$0]  %s3374, 16, %s4, [#allocation5]
    $region21: #{tpu_custom_call.1} parent=1 // pred_fallthru
      _
    // Predicated region
    $region22: #{tpu_custom_call.1} parent=1 // pred_check
      _
    $region23: #{tpu_custom_call.1} parent=1 // pred_check_branch
      %3378 = sbr.rel (0) target = $region25
    $region24: #{tpu_custom_call.1} parent=1 // pred_region
      %s3380 = ssub.s32 16, 16
      %3381 = vsyncadd [#allocation5], %s3380
      %s3383 = sshll.u32 [#allocation6], 4
      %s3384 = int_to_ptr.vmem [resolvable:$true] %s3383
      %3386 = dma.vmem_to_hbm [thread:$0]  %s3384, 16, %s5, [#allocation5]
    $region25: #{tpu_custom_call.1} parent=1 // pred_fallthru
      _
    // Predicated region
    $region26: #{tpu_custom_call.1} parent=1 // pred_check
      _
    $region27: #{tpu_custom_call.1} parent=1 // pred_check_branch
      %3388 = sbr.rel (0) target = $region29
    $region28: #{tpu_custom_call.1} parent=1 // pred_region
      %s3390 = ssub.s32 1024, 1024
      %3391 = vsyncadd [#allocation8], %s3390
      %s3392 = sshll.u32 [#allocation7], 4
      %s3393 = int_to_ptr.vmem [resolvable:$true] %s3392
      %3398 = dma.vmem_to_hbm [thread:$0]  %s3393, 1024, %s6, [#allocation8], 64, 64, 4
    $region29: #{tpu_custom_call.1} parent=1 // pred_fallthru
      _
    // Predicated region
    $region30: #{tpu_custom_call.1} parent=1 // pred_check
      _
    $region31: #{tpu_custom_call.1} parent=1 // pred_check_branch
      %3400 = sbr.rel (0) target = $region33
    $region32: #{tpu_custom_call.1} parent=1 // pred_region
      %s3402 = ssub.s32 16, 16
      %3403 = vsyncadd [#allocation8], %s3402
      %s3405 = sshll.u32 [#allocation9], 4
      %s3406 = int_to_ptr.vmem [resolvable:$true] %s3405
      %3408 = dma.vmem_to_hbm [thread:$0]  %s3406, 16, %s7, [#allocation8]
    $region33: #{tpu_custom_call.1} parent=1 // pred_fallthru
      _
    // Predicated region
    $region34: #{tpu_custom_call.1} parent=1 // pred_check
      _
    $region35: #{tpu_custom_call.1} parent=1 // pred_check_branch
      %3410 = sbr.rel (0) target = $region37
    $region36: #{tpu_custom_call.1} parent=1 // pred_region
      %s3412 = ssub.s32 16, 16
      %3413 = vsyncadd [#allocation11], %s3412
      %s3415 = sshll.u32 [#allocation10], 4
      %s3416 = int_to_ptr.vmem [resolvable:$true] %s3415
      %3418 = dma.vmem_to_hbm [thread:$0]  %s3416, 16, %s8, [#allocation11]
    $region37: #{tpu_custom_call.1} parent=1 // pred_fallthru
      _
    // Predicated region
    $region38: #{tpu_custom_call.1} parent=1 // pred_check
      _
    $region39: #{tpu_custom_call.1} parent=1 // pred_check_branch
      %3420 = sbr.rel (0) target = $region41
    $region40: #{tpu_custom_call.1} parent=1 // pred_region
      %3421 = dma.done [#allocation3], 1024
    $region41: #{tpu_custom_call.1} parent=1 // pred_fallthru
      _
    // Predicated region
    $region42: #{tpu_custom_call.1} parent=1 // pred_check
      _
    $region43: #{tpu_custom_call.1} parent=1 // pred_check_branch
      %3423 = sbr.rel (0) target = $region45
    $region44: #{tpu_custom_call.1} parent=1 // pred_region
      %3424 = dma.done [#allocation5], 16
    $region45: #{tpu_custom_call.1} parent=1 // pred_fallthru
      _
    // Predicated region
    $region46: #{tpu_custom_call.1} parent=1 // pred_check
      _
    $region47: #{tpu_custom_call.1} parent=1 // pred_check_branch
      %3426 = sbr.rel (0) target = $region49
    $region48: #{tpu_custom_call.1} parent=1 // pred_region
      %3427 = dma.done [#allocation5], 16
    $region49: #{tpu_custom_call.1} parent=1 // pred_fallthru
      _
    // Predicated region
    $region50: #{tpu_custom_call.1} parent=1 // pred_check
      _
    $region51: #{tpu_custom_call.1} parent=1 // pred_check_branch
      %3429 = sbr.rel (0) target = $region53
    $region52: #{tpu_custom_call.1} parent=1 // pred_region
      %3430 = dma.done [#allocation8], 1024
    $region53: #{tpu_custom_call.1} parent=1 // pred_fallthru
      _
    // Predicated region
    $region54: #{tpu_custom_call.1} parent=1 // pred_check
      _
    $region55: #{tpu_custom_call.1} parent=1 // pred_check_branch
      %3432 = sbr.rel (0) target = $region57
    $region56: #{tpu_custom_call.1} parent=1 // pred_region
      %3433 = dma.done [#allocation8], 16
    $region57: #{tpu_custom_call.1} parent=1 // pred_fallthru
      _
    // Predicated region
    $region58: #{tpu_custom_call.1} parent=1 // pred_check
      _
    $region59: #{tpu_custom_call.1} parent=1 // pred_check_branch
      %3435 = sbr.rel (0) target = $region61
    $region60: #{tpu_custom_call.1} parent=1 // pred_region
      %3436 = dma.done [#allocation11], 16
    $region61: #{tpu_custom_call.1} parent=1 // pred_fallthru
      _
    %3437 = vsyncpa [#allocation3], 1
    %3438 = vsyncpa [#allocation5], 1
    %3439 = vsyncpa [#allocation8], 1
    %3440 = vsyncpa [#allocation11], 1

</llo_original>
